<compile_context>
chip_gen: v7x
topology: tpu7x:2x2x1
jax: 0.10.0
libtpu: 0.0.40
codegen_flags: <defaults>
</compile_context>

<pallas_src>
import functools

import numpy as np

import jax
import jax.numpy as jnp
from jax.experimental import pallas as pl
from jax.experimental.pallas import tpu as pltpu

_LANE = 128
_VMEM = functools.partial(pl.BlockSpec, memory_space=pltpu.MemorySpace.VMEM)


# ----------------------------------------------------------------------------
# In-kernel math helpers
# ----------------------------------------------------------------------------
def _erf(x):
    # TODO(synk): nn.GELU uses exact erf; Mosaic has no erf primitive, so we use
    # the Abramowitz&Stegun 7.1.26 rational approximation (|err| < 1.5e-7, i.e.
    # at float32 round-off level).
    a1, a2, a3, a4, a5 = 0.254829592, -0.284496736, 1.421413741, -1.453152027, 1.061405429
    p = 0.3275911
    s = jnp.where(x >= 0.0, 1.0, -1.0)
    z = jnp.abs(x)
    t = 1.0 / (1.0 + p * z)
    poly = ((((a5 * t + a4) * t + a3) * t + a2) * t + a1) * t
    return s * (1.0 - poly * jnp.exp(-z * z))


def _gelu(x):
    # exact-erf GELU: 0.5 * x * (1 + erf(x / sqrt(2)))
    return 0.5 * x * (1.0 + _erf(x * 0.7071067811865476))


# ----------------------------------------------------------------------------
# The fused forward kernel
# ----------------------------------------------------------------------------
def _fno_forward_kernel(*refs, out_size):
    """Fully fused FNO forward.

    refs = (x,
            layer1: [P: w1,b1,w2,b2] [four1: wl,bl,M] [four2: ...] [four3: ...]
                    [Q: w1,b1,w2,b2] [norm: g,b]
            layer2: same 19 refs,
            head:   ffw1_w, ffw1_b, ffw2_w, ffw2_b,
            out_ref)
    """
    x_ref, *param_refs, out_ref = refs
    it = iter(param_refs)

    def take(n):
        return tuple(next(it)[...] for _ in range(n))

    def ffw(v):
        # FeedForward: Linear -> tanh -> (dropout = identity) -> Linear
        w1, b1, w2, b2 = take(4)
        h = jnp.tanh(jnp.dot(v, w1, preferred_element_type=jnp.float32) + b1)
        return jnp.dot(h, w2, preferred_element_type=jnp.float32) + b2

    def fourier_block(v):
        # FourierBlock: gelu(Linear(v) + irfftn(fftn(v) @ R, v.shape))
        # The entire spectral branch is the exact real matrix m (precomputed).
        wl, bl, m = take(3)
        v_l = jnp.dot(v, wl, preferred_element_type=jnp.float32) + bl
        v_f = jnp.dot(v, m, preferred_element_type=jnp.float32)
        return _gelu(v_l + v_f)

    def fno_layer(v):
        v = ffw(v)            # P
        v = fourier_block(v)  # four1  (dropout = identity)
        v = fourier_block(v)  # four2
        v = fourier_block(v)  # four3
        return ffw(v)         # Q

    def layer_norm(v):
        g, b = take(2)
        mu = jnp.mean(v, axis=-1, keepdims=True)
        var = jnp.mean((v - mu) * (v - mu), axis=-1, keepdims=True)
        return (v - mu) * jax.lax.rsqrt(var + 1e-5) * g + b

    x = x_ref[...]
    h1 = fno_layer(x)                               # [N, du]
    h1 = layer_norm(h1)
    h1 = jnp.mean(h1, axis=0, keepdims=True)        # global_mean_pool -> [1, du]
    h2 = fno_layer(h1)                              # [1, du]
    h2 = layer_norm(h2)
    h2 = jnp.max(h2, axis=0, keepdims=True)         # global_max_pool  -> [1, du]

    # Head: Linear -> ReLU -> Linear -> Softmax over the class axis.
    hw1, hb1, hw2, hb2 = take(4)
    hidden = jnp.maximum(
        jnp.dot(h2, hw1, preferred_element_type=jnp.float32) + hb1, 0.0)
    logits = jnp.dot(hidden, hw2, preferred_element_type=jnp.float32) + hb2   # [1, 128]
    lane = jax.lax.broadcasted_iota(jnp.int32, logits.shape, 1)
    valid = lane < out_size                         # mask the lane padding (2 -> 128)
    logits = jnp.where(valid, logits, jnp.float32(-1e30))
    mx = jnp.max(logits, axis=-1, keepdims=True)
    e = jnp.where(valid, jnp.exp(logits - mx), 0.0)
    out_ref[...] = e / jnp.sum(e, axis=-1, keepdims=True)


def fno_forward(x, flat_params, *, out_size=2):
    kernel = functools.partial(_fno_forward_kernel, out_size=out_size)
    probs = pl.pallas_call(
        kernel,
        out_shape=jax.ShapeDtypeStruct((1, _LANE), jnp.float32),
        in_specs=[_VMEM() for _ in range(1 + len(flat_params))],
        out_specs=_VMEM(),
    )(x, *flat_params)
    return probs[0, :out_size]                      # flatten -> [out_size]


# ----------------------------------------------------------------------------
# Parameter packing: lane padding + exact spectral-matrix fold
# ----------------------------------------------------------------------------
def _ceil_to(v, m=_LANE):
    return ((v + m - 1) // m) * m


def _pad2d(a, rows=None, cols=None):
    r = a.shape[0] if rows is None else rows
    c = a.shape[1] if cols is None else cols
    return jnp.pad(a, ((0, r - a.shape[0]), (0, c - a.shape[1])))


def _spectral_matrix(r_re, r_im):
    """Exact fold of FourierConv: irfftn(fftn(x) @ R, x.shape) == x @ M (x real).

    fftn(x) = D_N x D_C ; right-multiply by R ; irfftn with s=x.shape keeps the
    full axis-0 length (so (1/N) D_N^H cancels D_N exactly), crops the last axis
    to K = C//2+1 and applies the inverse-real-DFT matrix G.  Since x is real:
        result = x @ Re((D_C @ R)[:, :K] @ G)
    """
    c = int(r_re.shape[0])
    k = np.arange(c)
    D = np.exp(-2j * np.pi * np.outer(k, k) / c)                       # fwd DFT, last axis
    K = c // 2 + 1
    w = np.full((K,), 2.0)
    w[0] = 1.0
    if c % 2 == 0:
        w[-1] = 1.0
    G = (w[:, None] / c) * np.exp(2j * np.pi * np.outer(np.arange(K), k) / c)  # irfft matrix
    R = np.asarray(r_re, np.float64) + 1j * np.asarray(r_im, np.float64)
    M = (D @ R)[:, :K] @ G
    return jnp.asarray(np.real(M), dtype=jnp.float32)


def pack_params(params):
    """Flatten params into the kernel's fixed order, lane-padded, M precomputed."""
    flat = []

    def add_ffw(p):
        w1, b1, w2, b2 = p
        hpad = _ceil_to(w1.shape[1])                # 100 -> 128 (exact: pads are zero)
        flat.extend([_pad2d(w1, cols=hpad), _pad2d(b1, cols=hpad),
                     _pad2d(w2, rows=hpad), b2])

    def add_layer(lp):
        add_ffw(lp["P"])
        for name in ("four1", "four2", "four3"):
            fb = lp[name]
            flat.extend([fb["w"], fb["b"], _spectral_matrix(fb["r_re"], fb["r_im"])])
        add_ffw(lp["Q"])

    add_layer(params["fft"])
    flat.extend([params["norm"]["g"], params["norm"]["b"]])
    add_layer(params["fft2"])
    flat.extend([params["norm2"]["g"], params["norm2"]["b"]])

    hpad = _ceil_to(params["ffw1_w"].shape[1])      # 64  -> 128
    opad = _ceil_to(params["ffw2_w"].shape[1])      # 2   -> 128
    flat.extend([
        _pad2d(params["ffw1_w"], cols=hpad), _pad2d(params["ffw1_b"], cols=hpad),
        _pad2d(params["ffw2_w"], rows=hpad, cols=opad),
        _pad2d(params["ffw2_b"], cols=opad),
    ])
    return tuple(jnp.asarray(a, jnp.float32) for a in flat)


# ----------------------------------------------------------------------------
# Deterministic parameter construction (shapes follow the module's __init__)
# ----------------------------------------------------------------------------
def _init_linear(key, fan_in, fan_out):
    kw, kb = jax.random.split(key)
    bound = 1.0 / (fan_in ** 0.5)
    w = jax.random.uniform(kw, (fan_in, fan_out), jnp.float32, -bound, bound)
    b = jax.random.uniform(kb, (1, fan_out), jnp.float32, -bound, bound)
    return w, b


def init_params(key, da, du, dv, out_size=2, scale=2, units=100):
    def ffw(k, i, o):
        k1, k2 = jax.random.split(k)
        w1, b1 = _init_linear(k1, i, units)
        w2, b2 = _init_linear(k2, units, o)
        return (w1, b1, w2, b2)

    def fblock(k, c):
        k1, k2, k3 = jax.random.split(k, 3)
        w, b = _init_linear(k1, c, c)
        return dict(
            w=w, b=b,
            r_re=jax.random.uniform(k2, (c, c), jnp.float32),   # torch.rand cfloat -> U[0,1)
            r_im=jax.random.uniform(k3, (c, c), jnp.float32),
        )

    def fno_layer_params(k):
        kk = jax.random.split(k, 5)
        return dict(
            P=ffw(kk[0], da, dv),
            four1=fblock(kk[1], dv),
            four2=fblock(kk[2], dv),
            four3=fblock(kk[3], dv),
            Q=ffw(kk[4], dv, du),
        )

    ks = jax.random.split(key, 4)
    ffw1_w, ffw1_b = _init_linear(ks[2], dv, scale * dv)
    ffw2_w, ffw2_b = _init_linear(ks[3], scale * dv, out_size)
    ln = lambda d: dict(g=jnp.ones((1, d), jnp.float32), b=jnp.zeros((1, d), jnp.float32))
    return dict(
        fft=fno_layer_params(ks[0]),
        fft2=fno_layer_params(ks[1]),
        norm=ln(du),
        norm2=ln(du),
        ffw1_w=ffw1_w, ffw1_b=ffw1_b,
        ffw2_w=ffw2_w, ffw2_b=ffw2_b,
    )


# ----------------------------------------------------------------------------
# Pure-JAX reference (uses jnp.fft, exact-erf GELU) for a numerical self-check
# ----------------------------------------------------------------------------
def _reference_forward(x, params):
    def ffw(v, p):
        w1, b1, w2, b2 = p
        return jnp.tanh(v @ w1 + b1) @ w2 + b2

    def fblock(v, p):
        v_l = v @ p["w"] + p["b"]
        fv = jnp.fft.fftn(v)
        rfv = fv @ (p["r_re"] + 1j * p["r_im"])
        v_f = jnp.fft.irfftn(rfv, s=v.shape)
        return jax.nn.gelu(v_l + v_f, approximate=False)

    def layer(v, lp):
        v = ffw(v, lp["P"])
        for n in ("four1", "four2", "four3"):
            v = fblock(v, lp[n])
        return ffw(v, lp["Q"])

    def ln(v, p):
        mu = v.mean(-1, keepdims=True)
        var = ((v - mu) ** 2).mean(-1, keepdims=True)
        return (v - mu) / jnp.sqrt(var + 1e-5) * p["g"] + p["b"]

    h1 = layer(x, params["fft"])
    h1 = ln(h1, params["norm"]).mean(0, keepdims=True)
    h2 = layer(h1, params["fft2"])
    h2 = ln(h2, params["norm2"]).max(0, keepdims=True)
    hh = jnp.maximum(h2 @ params["ffw1_w"] + params["ffw1_b"], 0.0)
    logits = hh @ params["ffw2_w"] + params["ffw2_b"]
    return jax.nn.softmax(logits, axis=-1).reshape(-1)


# ----------------------------------------------------------------------------
if __name__ == "__main__":
    # Small shapes: input_size=(32, 32), d_model=32, 8 graph nodes, output_size=2.
    N, D = 8, 32
    key = jax.random.PRNGKey(0)
    kx, kp = jax.random.split(key)
    x = jax.random.normal(kx, (N, D), jnp.float32)
    params = init_params(kp, da=D, du=D, dv=D, out_size=2, scale=2)
    flat = pack_params(params)

    fwd = jax.jit(functools.partial(fno_forward, out_size=2))
    out = jax.block_until_ready(fwd(x, flat))

    assert out.shape == (2,), out.shape
    assert bool(jnp.isfinite(out).all())

    ref = jax.block_until_ready(_reference_forward(x, params))
    assert bool(jnp.allclose(out, ref, atol=1e-3, rtol=1e-3)), (out, ref)

    print("KERNEL_OK")
</pallas_src>

<mosaic_0001>
module attributes {stable_mosaic.version = 11 : i64} {
  func.func @_fno_forward_kernel(%arg0: memref<8x32xf32, #tpu.memory_space<vmem>>, %arg1: memref<32x128xf32, #tpu.memory_space<vmem>>, %arg2: memref<1x128xf32, #tpu.memory_space<vmem>>, %arg3: memref<128x32xf32, #tpu.memory_space<vmem>>, %arg4: memref<1x32xf32, #tpu.memory_space<vmem>>, %arg5: memref<32x32xf32, #tpu.memory_space<vmem>>, %arg6: memref<1x32xf32, #tpu.memory_space<vmem>>, %arg7: memref<32x32xf32, #tpu.memory_space<vmem>>, %arg8: memref<32x32xf32, #tpu.memory_space<vmem>>, %arg9: memref<1x32xf32, #tpu.memory_space<vmem>>, %arg10: memref<32x32xf32, #tpu.memory_space<vmem>>, %arg11: memref<32x32xf32, #tpu.memory_space<vmem>>, %arg12: memref<1x32xf32, #tpu.memory_space<vmem>>, %arg13: memref<32x32xf32, #tpu.memory_space<vmem>>, %arg14: memref<32x128xf32, #tpu.memory_space<vmem>>, %arg15: memref<1x128xf32, #tpu.memory_space<vmem>>, %arg16: memref<128x32xf32, #tpu.memory_space<vmem>>, %arg17: memref<1x32xf32, #tpu.memory_space<vmem>>, %arg18: memref<1x32xf32, #tpu.memory_space<vmem>>, %arg19: memref<1x32xf32, #tpu.memory_space<vmem>>, %arg20: memref<32x128xf32, #tpu.memory_space<vmem>>, %arg21: memref<1x128xf32, #tpu.memory_space<vmem>>, %arg22: memref<128x32xf32, #tpu.memory_space<vmem>>, %arg23: memref<1x32xf32, #tpu.memory_space<vmem>>, %arg24: memref<32x32xf32, #tpu.memory_space<vmem>>, %arg25: memref<1x32xf32, #tpu.memory_space<vmem>>, %arg26: memref<32x32xf32, #tpu.memory_space<vmem>>, %arg27: memref<32x32xf32, #tpu.memory_space<vmem>>, %arg28: memref<1x32xf32, #tpu.memory_space<vmem>>, %arg29: memref<32x32xf32, #tpu.memory_space<vmem>>, %arg30: memref<32x32xf32, #tpu.memory_space<vmem>>, %arg31: memref<1x32xf32, #tpu.memory_space<vmem>>, %arg32: memref<32x32xf32, #tpu.memory_space<vmem>>, %arg33: memref<32x128xf32, #tpu.memory_space<vmem>>, %arg34: memref<1x128xf32, #tpu.memory_space<vmem>>, %arg35: memref<128x32xf32, #tpu.memory_space<vmem>>, %arg36: memref<1x32xf32, #tpu.memory_space<vmem>>, %arg37: memref<1x32xf32, #tpu.memory_space<vmem>>, %arg38: memref<1x32xf32, #tpu.memory_space<vmem>>, %arg39: memref<32x128xf32, #tpu.memory_space<vmem>>, %arg40: memref<1x128xf32, #tpu.memory_space<vmem>>, %arg41: memref<128x128xf32, #tpu.memory_space<vmem>>, %arg42: memref<1x128xf32, #tpu.memory_space<vmem>>, %arg43: memref<1x128xf32, #tpu.memory_space<vmem>>) attributes {dimension_semantics = [], scalar_prefetch = 0 : i64, scratch_operands = 0 : i64, tpu.core_type = #tpu.core_type<tc>} {
    %c0 = arith.constant 0 : index
    %c0_0 = arith.constant 0 : index
    %0 = vector.load %arg0[%c0, %c0_0] : memref<8x32xf32, #tpu.memory_space<vmem>>, vector<8x32xf32>
    %c0_1 = arith.constant 0 : index
    %c0_2 = arith.constant 0 : index
    %1 = vector.load %arg1[%c0_1, %c0_2] : memref<32x128xf32, #tpu.memory_space<vmem>>, vector<32x128xf32>
    %c0_3 = arith.constant 0 : index
    %c0_4 = arith.constant 0 : index
    %2 = vector.load %arg2[%c0_3, %c0_4] : memref<1x128xf32, #tpu.memory_space<vmem>>, vector<1x128xf32>
    %c0_5 = arith.constant 0 : index
    %c0_6 = arith.constant 0 : index
    %3 = vector.load %arg3[%c0_5, %c0_6] : memref<128x32xf32, #tpu.memory_space<vmem>>, vector<128x32xf32>
    %c0_7 = arith.constant 0 : index
    %c0_8 = arith.constant 0 : index
    %4 = vector.load %arg4[%c0_7, %c0_8] : memref<1x32xf32, #tpu.memory_space<vmem>>, vector<1x32xf32>
    %cst = arith.constant dense<0.000000e+00> : vector<8x128xf32>
    %5 = tpu.matmul %0, %1, %cst {dimension_numbers = #tpu.dot_dimension_numbers<[1], [0], [0], [1], [0, 0, 1, 1], [], []>} : vector<8x32xf32>, vector<32x128xf32>, vector<8x128xf32> -> vector<8x128xf32>
    %6 = vector.broadcast %2 : vector<1x128xf32> to vector<8x128xf32>
    %7 = arith.addf %5, %6 : vector<8x128xf32>
    %8 = math.tanh %7 : vector<8x128xf32>
    %cst_9 = arith.constant dense<0.000000e+00> : vector<8x32xf32>
    %9 = tpu.matmul %8, %3, %cst_9 {dimension_numbers = #tpu.dot_dimension_numbers<[1], [0], [0], [1], [0, 0, 1, 1], [], []>} : vector<8x128xf32>, vector<128x32xf32>, vector<8x32xf32> -> vector<8x32xf32>
    %10 = vector.broadcast %4 : vector<1x32xf32> to vector<8x32xf32>
    %11 = arith.addf %9, %10 : vector<8x32xf32>
    %c0_10 = arith.constant 0 : index
    %c0_11 = arith.constant 0 : index
    %12 = vector.load %arg5[%c0_10, %c0_11] : memref<32x32xf32, #tpu.memory_space<vmem>>, vector<32x32xf32>
    %c0_12 = arith.constant 0 : index
    %c0_13 = arith.constant 0 : index
    %13 = vector.load %arg6[%c0_12, %c0_13] : memref<1x32xf32, #tpu.memory_space<vmem>>, vector<1x32xf32>
    %c0_14 = arith.constant 0 : index
    %c0_15 = arith.constant 0 : index
    %14 = vector.load %arg7[%c0_14, %c0_15] : memref<32x32xf32, #tpu.memory_space<vmem>>, vector<32x32xf32>
    %cst_16 = arith.constant dense<0.000000e+00> : vector<8x32xf32>
    %15 = tpu.matmul %11, %12, %cst_16 {dimension_numbers = #tpu.dot_dimension_numbers<[1], [0], [0], [1], [0, 0, 1, 1], [], []>} : vector<8x32xf32>, vector<32x32xf32>, vector<8x32xf32> -> vector<8x32xf32>
    %16 = vector.broadcast %13 : vector<1x32xf32> to vector<8x32xf32>
    %17 = arith.addf %15, %16 : vector<8x32xf32>
    %cst_17 = arith.constant dense<0.000000e+00> : vector<8x32xf32>
    %18 = tpu.matmul %11, %14, %cst_17 {dimension_numbers = #tpu.dot_dimension_numbers<[1], [0], [0], [1], [0, 0, 1, 1], [], []>} : vector<8x32xf32>, vector<32x32xf32>, vector<8x32xf32> -> vector<8x32xf32>
    %19 = arith.addf %17, %18 : vector<8x32xf32>
    %cst_18 = arith.constant 5.000000e-01 : f32
    %20 = vector.broadcast %cst_18 : f32 to vector<8x32xf32>
    %21 = arith.mulf %20, %19 : vector<8x32xf32>
    %cst_19 = arith.constant 0.707106769 : f32
    %22 = vector.broadcast %cst_19 : f32 to vector<8x32xf32>
    %23 = arith.mulf %19, %22 : vector<8x32xf32>
    %cst_20 = arith.constant 0.000000e+00 : f32
    %24 = vector.broadcast %cst_20 : f32 to vector<8x32xf32>
    %25 = arith.cmpf oge, %23, %24 : vector<8x32xf32>
    %cst_21 = arith.constant 1.000000e+00 : f32
    %cst_22 = arith.constant -1.000000e+00 : f32
    %26 = vector.broadcast %cst_21 : f32 to vector<8x32xf32>
    %27 = vector.broadcast %cst_22 : f32 to vector<8x32xf32>
    %28 = arith.select %25, %26, %27 : vector<8x32xi1>, vector<8x32xf32>
    %29 = math.absf %23 : vector<8x32xf32>
    %cst_23 = arith.constant 0.327591091 : f32
    %30 = vector.broadcast %cst_23 : f32 to vector<8x32xf32>
    %31 = arith.mulf %30, %29 : vector<8x32xf32>
    %cst_24 = arith.constant 1.000000e+00 : f32
    %32 = vector.broadcast %cst_24 : f32 to vector<8x32xf32>
    %33 = arith.addf %32, %31 : vector<8x32xf32>
    %cst_25 = arith.constant 1.000000e+00 : f32
    %34 = vector.broadcast %cst_25 : f32 to vector<8x32xf32>
    %35 = arith.divf %34, %33 : vector<8x32xf32>
    %cst_26 = arith.constant 1.06140542 : f32
    %36 = vector.broadcast %cst_26 : f32 to vector<8x32xf32>
    %37 = arith.mulf %36, %35 : vector<8x32xf32>
    %cst_27 = arith.constant -1.45315206 : f32
    %38 = vector.broadcast %cst_27 : f32 to vector<8x32xf32>
    %39 = arith.addf %37, %38 : vector<8x32xf32>
    %40 = arith.mulf %39, %35 : vector<8x32xf32>
    %cst_28 = arith.constant 1.42141378 : f32
    %41 = vector.broadcast %cst_28 : f32 to vector<8x32xf32>
    %42 = arith.addf %40, %41 : vector<8x32xf32>
    %43 = arith.mulf %42, %35 : vector<8x32xf32>
    %cst_29 = arith.constant -0.284496725 : f32
    %44 = vector.broadcast %cst_29 : f32 to vector<8x32xf32>
    %45 = arith.addf %43, %44 : vector<8x32xf32>
    %46 = arith.mulf %45, %35 : vector<8x32xf32>
    %cst_30 = arith.constant 0.254829586 : f32
    %47 = vector.broadcast %cst_30 : f32 to vector<8x32xf32>
    %48 = arith.addf %46, %47 : vector<8x32xf32>
    %49 = arith.mulf %48, %35 : vector<8x32xf32>
    %cst_31 = arith.constant 0.000000e+00 : f32
    %50 = vector.broadcast %cst_31 : f32 to vector<8x32xf32>
    %51 = arith.subf %50, %29 : vector<8x32xf32>
    %52 = arith.mulf %51, %29 : vector<8x32xf32>
    %53 = math.exp %52 : vector<8x32xf32>
    %54 = arith.mulf %49, %53 : vector<8x32xf32>
    %cst_32 = arith.constant 1.000000e+00 : f32
    %55 = vector.broadcast %cst_32 : f32 to vector<8x32xf32>
    %56 = arith.subf %55, %54 : vector<8x32xf32>
    %57 = arith.mulf %28, %56 : vector<8x32xf32>
    %cst_33 = arith.constant 1.000000e+00 : f32
    %58 = vector.broadcast %cst_33 : f32 to vector<8x32xf32>
    %59 = arith.addf %58, %57 : vector<8x32xf32>
    %60 = arith.mulf %21, %59 : vector<8x32xf32>
    %c0_34 = arith.constant 0 : index
    %c0_35 = arith.constant 0 : index
    %61 = vector.load %arg8[%c0_34, %c0_35] : memref<32x32xf32, #tpu.memory_space<vmem>>, vector<32x32xf32>
    %c0_36 = arith.constant 0 : index
    %c0_37 = arith.constant 0 : index
    %62 = vector.load %arg9[%c0_36, %c0_37] : memref<1x32xf32, #tpu.memory_space<vmem>>, vector<1x32xf32>
    %c0_38 = arith.constant 0 : index
    %c0_39 = arith.constant 0 : index
    %63 = vector.load %arg10[%c0_38, %c0_39] : memref<32x32xf32, #tpu.memory_space<vmem>>, vector<32x32xf32>
    %cst_40 = arith.constant dense<0.000000e+00> : vector<8x32xf32>
    %64 = tpu.matmul %60, %61, %cst_40 {dimension_numbers = #tpu.dot_dimension_numbers<[1], [0], [0], [1], [0, 0, 1, 1], [], []>} : vector<8x32xf32>, vector<32x32xf32>, vector<8x32xf32> -> vector<8x32xf32>
    %65 = vector.broadcast %62 : vector<1x32xf32> to vector<8x32xf32>
    %66 = arith.addf %64, %65 : vector<8x32xf32>
    %cst_41 = arith.constant dense<0.000000e+00> : vector<8x32xf32>
    %67 = tpu.matmul %60, %63, %cst_41 {dimension_numbers = #tpu.dot_dimension_numbers<[1], [0], [0], [1], [0, 0, 1, 1], [], []>} : vector<8x32xf32>, vector<32x32xf32>, vector<8x32xf32> -> vector<8x32xf32>
    %68 = arith.addf %66, %67 : vector<8x32xf32>
    %cst_42 = arith.constant 5.000000e-01 : f32
    %69 = vector.broadcast %cst_42 : f32 to vector<8x32xf32>
    %70 = arith.mulf %69, %68 : vector<8x32xf32>
    %cst_43 = arith.constant 0.707106769 : f32
    %71 = vector.broadcast %cst_43 : f32 to vector<8x32xf32>
    %72 = arith.mulf %68, %71 : vector<8x32xf32>
    %cst_44 = arith.constant 0.000000e+00 : f32
    %73 = vector.broadcast %cst_44 : f32 to vector<8x32xf32>
    %74 = arith.cmpf oge, %72, %73 : vector<8x32xf32>
    %cst_45 = arith.constant 1.000000e+00 : f32
    %cst_46 = arith.constant -1.000000e+00 : f32
    %75 = vector.broadcast %cst_45 : f32 to vector<8x32xf32>
    %76 = vector.broadcast %cst_46 : f32 to vector<8x32xf32>
    %77 = arith.select %74, %75, %76 : vector<8x32xi1>, vector<8x32xf32>
    %78 = math.absf %72 : vector<8x32xf32>
    %cst_47 = arith.constant 0.327591091 : f32
    %79 = vector.broadcast %cst_47 : f32 to vector<8x32xf32>
    %80 = arith.mulf %79, %78 : vector<8x32xf32>
    %cst_48 = arith.constant 1.000000e+00 : f32
    %81 = vector.broadcast %cst_48 : f32 to vector<8x32xf32>
    %82 = arith.addf %81, %80 : vector<8x32xf32>
    %cst_49 = arith.constant 1.000000e+00 : f32
    %83 = vector.broadcast %cst_49 : f32 to vector<8x32xf32>
    %84 = arith.divf %83, %82 : vector<8x32xf32>
    %cst_50 = arith.constant 1.06140542 : f32
    %85 = vector.broadcast %cst_50 : f32 to vector<8x32xf32>
    %86 = arith.mulf %85, %84 : vector<8x32xf32>
    %cst_51 = arith.constant -1.45315206 : f32
    %87 = vector.broadcast %cst_51 : f32 to vector<8x32xf32>
    %88 = arith.addf %86, %87 : vector<8x32xf32>
    %89 = arith.mulf %88, %84 : vector<8x32xf32>
    %cst_52 = arith.constant 1.42141378 : f32
    %90 = vector.broadcast %cst_52 : f32 to vector<8x32xf32>
    %91 = arith.addf %89, %90 : vector<8x32xf32>
    %92 = arith.mulf %91, %84 : vector<8x32xf32>
    %cst_53 = arith.constant -0.284496725 : f32
    %93 = vector.broadcast %cst_53 : f32 to vector<8x32xf32>
    %94 = arith.addf %92, %93 : vector<8x32xf32>
    %95 = arith.mulf %94, %84 : vector<8x32xf32>
    %cst_54 = arith.constant 0.254829586 : f32
    %96 = vector.broadcast %cst_54 : f32 to vector<8x32xf32>
    %97 = arith.addf %95, %96 : vector<8x32xf32>
    %98 = arith.mulf %97, %84 : vector<8x32xf32>
    %cst_55 = arith.constant 0.000000e+00 : f32
    %99 = vector.broadcast %cst_55 : f32 to vector<8x32xf32>
    %100 = arith.subf %99, %78 : vector<8x32xf32>
    %101 = arith.mulf %100, %78 : vector<8x32xf32>
    %102 = math.exp %101 : vector<8x32xf32>
    %103 = arith.mulf %98, %102 : vector<8x32xf32>
    %cst_56 = arith.constant 1.000000e+00 : f32
    %104 = vector.broadcast %cst_56 : f32 to vector<8x32xf32>
    %105 = arith.subf %104, %103 : vector<8x32xf32>
    %106 = arith.mulf %77, %105 : vector<8x32xf32>
    %cst_57 = arith.constant 1.000000e+00 : f32
    %107 = vector.broadcast %cst_57 : f32 to vector<8x32xf32>
    %108 = arith.addf %107, %106 : vector<8x32xf32>
    %109 = arith.mulf %70, %108 : vector<8x32xf32>
    %c0_58 = arith.constant 0 : index
    %c0_59 = arith.constant 0 : index
    %110 = vector.load %arg11[%c0_58, %c0_59] : memref<32x32xf32, #tpu.memory_space<vmem>>, vector<32x32xf32>
    %c0_60 = arith.constant 0 : index
    %c0_61 = arith.constant 0 : index
    %111 = vector.load %arg12[%c0_60, %c0_61] : memref<1x32xf32, #tpu.memory_space<vmem>>, vector<1x32xf32>
    %c0_62 = arith.constant 0 : index
    %c0_63 = arith.constant 0 : index
    %112 = vector.load %arg13[%c0_62, %c0_63] : memref<32x32xf32, #tpu.memory_space<vmem>>, vector<32x32xf32>
    %cst_64 = arith.constant dense<0.000000e+00> : vector<8x32xf32>
    %113 = tpu.matmul %109, %110, %cst_64 {dimension_numbers = #tpu.dot_dimension_numbers<[1], [0], [0], [1], [0, 0, 1, 1], [], []>} : vector<8x32xf32>, vector<32x32xf32>, vector<8x32xf32> -> vector<8x32xf32>
    %114 = vector.broadcast %111 : vector<1x32xf32> to vector<8x32xf32>
    %115 = arith.addf %113, %114 : vector<8x32xf32>
    %cst_65 = arith.constant dense<0.000000e+00> : vector<8x32xf32>
    %116 = tpu.matmul %109, %112, %cst_65 {dimension_numbers = #tpu.dot_dimension_numbers<[1], [0], [0], [1], [0, 0, 1, 1], [], []>} : vector<8x32xf32>, vector<32x32xf32>, vector<8x32xf32> -> vector<8x32xf32>
    %117 = arith.addf %115, %116 : vector<8x32xf32>
    %cst_66 = arith.constant 5.000000e-01 : f32
    %118 = vector.broadcast %cst_66 : f32 to vector<8x32xf32>
    %119 = arith.mulf %118, %117 : vector<8x32xf32>
    %cst_67 = arith.constant 0.707106769 : f32
    %120 = vector.broadcast %cst_67 : f32 to vector<8x32xf32>
    %121 = arith.mulf %117, %120 : vector<8x32xf32>
    %cst_68 = arith.constant 0.000000e+00 : f32
    %122 = vector.broadcast %cst_68 : f32 to vector<8x32xf32>
    %123 = arith.cmpf oge, %121, %122 : vector<8x32xf32>
    %cst_69 = arith.constant 1.000000e+00 : f32
    %cst_70 = arith.constant -1.000000e+00 : f32
    %124 = vector.broadcast %cst_69 : f32 to vector<8x32xf32>
    %125 = vector.broadcast %cst_70 : f32 to vector<8x32xf32>
    %126 = arith.select %123, %124, %125 : vector<8x32xi1>, vector<8x32xf32>
    %127 = math.absf %121 : vector<8x32xf32>
    %cst_71 = arith.constant 0.327591091 : f32
    %128 = vector.broadcast %cst_71 : f32 to vector<8x32xf32>
    %129 = arith.mulf %128, %127 : vector<8x32xf32>
    %cst_72 = arith.constant 1.000000e+00 : f32
    %130 = vector.broadcast %cst_72 : f32 to vector<8x32xf32>
    %131 = arith.addf %130, %129 : vector<8x32xf32>
    %cst_73 = arith.constant 1.000000e+00 : f32
    %132 = vector.broadcast %cst_73 : f32 to vector<8x32xf32>
    %133 = arith.divf %132, %131 : vector<8x32xf32>
    %cst_74 = arith.constant 1.06140542 : f32
    %134 = vector.broadcast %cst_74 : f32 to vector<8x32xf32>
    %135 = arith.mulf %134, %133 : vector<8x32xf32>
    %cst_75 = arith.constant -1.45315206 : f32
    %136 = vector.broadcast %cst_75 : f32 to vector<8x32xf32>
    %137 = arith.addf %135, %136 : vector<8x32xf32>
    %138 = arith.mulf %137, %133 : vector<8x32xf32>
    %cst_76 = arith.constant 1.42141378 : f32
    %139 = vector.broadcast %cst_76 : f32 to vector<8x32xf32>
    %140 = arith.addf %138, %139 : vector<8x32xf32>
    %141 = arith.mulf %140, %133 : vector<8x32xf32>
    %cst_77 = arith.constant -0.284496725 : f32
    %142 = vector.broadcast %cst_77 : f32 to vector<8x32xf32>
    %143 = arith.addf %141, %142 : vector<8x32xf32>
    %144 = arith.mulf %143, %133 : vector<8x32xf32>
    %cst_78 = arith.constant 0.254829586 : f32
    %145 = vector.broadcast %cst_78 : f32 to vector<8x32xf32>
    %146 = arith.addf %144, %145 : vector<8x32xf32>
    %147 = arith.mulf %146, %133 : vector<8x32xf32>
    %cst_79 = arith.constant 0.000000e+00 : f32
    %148 = vector.broadcast %cst_79 : f32 to vector<8x32xf32>
    %149 = arith.subf %148, %127 : vector<8x32xf32>
    %150 = arith.mulf %149, %127 : vector<8x32xf32>
    %151 = math.exp %150 : vector<8x32xf32>
    %152 = arith.mulf %147, %151 : vector<8x32xf32>
    %cst_80 = arith.constant 1.000000e+00 : f32
    %153 = vector.broadcast %cst_80 : f32 to vector<8x32xf32>
    %154 = arith.subf %153, %152 : vector<8x32xf32>
    %155 = arith.mulf %126, %154 : vector<8x32xf32>
    %cst_81 = arith.constant 1.000000e+00 : f32
    %156 = vector.broadcast %cst_81 : f32 to vector<8x32xf32>
    %157 = arith.addf %156, %155 : vector<8x32xf32>
    %158 = arith.mulf %119, %157 : vector<8x32xf32>
    %c0_82 = arith.constant 0 : index
    %c0_83 = arith.constant 0 : index
    %159 = vector.load %arg14[%c0_82, %c0_83] : memref<32x128xf32, #tpu.memory_space<vmem>>, vector<32x128xf32>
    %c0_84 = arith.constant 0 : index
    %c0_85 = arith.constant 0 : index
    %160 = vector.load %arg15[%c0_84, %c0_85] : memref<1x128xf32, #tpu.memory_space<vmem>>, vector<1x128xf32>
    %c0_86 = arith.constant 0 : index
    %c0_87 = arith.constant 0 : index
    %161 = vector.load %arg16[%c0_86, %c0_87] : memref<128x32xf32, #tpu.memory_space<vmem>>, vector<128x32xf32>
    %c0_88 = arith.constant 0 : index
    %c0_89 = arith.constant 0 : index
    %162 = vector.load %arg17[%c0_88, %c0_89] : memref<1x32xf32, #tpu.memory_space<vmem>>, vector<1x32xf32>
    %cst_90 = arith.constant dense<0.000000e+00> : vector<8x128xf32>
    %163 = tpu.matmul %158, %159, %cst_90 {dimension_numbers = #tpu.dot_dimension_numbers<[1], [0], [0], [1], [0, 0, 1, 1], [], []>} : vector<8x32xf32>, vector<32x128xf32>, vector<8x128xf32> -> vector<8x128xf32>
    %164 = vector.broadcast %160 : vector<1x128xf32> to vector<8x128xf32>
    %165 = arith.addf %163, %164 : vector<8x128xf32>
    %166 = math.tanh %165 : vector<8x128xf32>
    %cst_91 = arith.constant dense<0.000000e+00> : vector<8x32xf32>
    %167 = tpu.matmul %166, %161, %cst_91 {dimension_numbers = #tpu.dot_dimension_numbers<[1], [0], [0], [1], [0, 0, 1, 1], [], []>} : vector<8x128xf32>, vector<128x32xf32>, vector<8x32xf32> -> vector<8x32xf32>
    %168 = vector.broadcast %162 : vector<1x32xf32> to vector<8x32xf32>
    %169 = arith.addf %167, %168 : vector<8x32xf32>
    %c0_92 = arith.constant 0 : index
    %c0_93 = arith.constant 0 : index
    %170 = vector.load %arg18[%c0_92, %c0_93] : memref<1x32xf32, #tpu.memory_space<vmem>>, vector<1x32xf32>
    %c0_94 = arith.constant 0 : index
    %c0_95 = arith.constant 0 : index
    %171 = vector.load %arg19[%c0_94, %c0_95] : memref<1x32xf32, #tpu.memory_space<vmem>>, vector<1x32xf32>
    %cst_96 = arith.constant dense<0.000000e+00> : vector<8xf32>
    %172 = vector.multi_reduction <add>, %169, %cst_96 [1] : vector<8x32xf32> to vector<8xf32>
    %173 = vector.shape_cast %172 : vector<8xf32> to vector<8x1xf32>
    %cst_97 = arith.constant 3.200000e+01 : f32
    %174 = vector.broadcast %cst_97 : f32 to vector<8x1xf32>
    %175 = arith.divf %173, %174 : vector<8x1xf32>
    %176 = vector.broadcast %175 : vector<8x1xf32> to vector<8x32xf32>
    %177 = arith.subf %169, %176 : vector<8x32xf32>
    %178 = vector.broadcast %175 : vector<8x1xf32> to vector<8x32xf32>
    %179 = arith.subf %169, %178 : vector<8x32xf32>
    %180 = arith.mulf %177, %179 : vector<8x32xf32>
    %cst_98 = arith.constant dense<0.000000e+00> : vector<8xf32>
    %181 = vector.multi_reduction <add>, %180, %cst_98 [1] : vector<8x32xf32> to vector<8xf32>
    %182 = vector.shape_cast %181 : vector<8xf32> to vector<8x1xf32>
    %cst_99 = arith.constant 3.200000e+01 : f32
    %183 = vector.broadcast %cst_99 : f32 to vector<8x1xf32>
    %184 = arith.divf %182, %183 : vector<8x1xf32>
    %185 = vector.broadcast %175 : vector<8x1xf32> to vector<8x32xf32>
    %186 = arith.subf %169, %185 : vector<8x32xf32>
    %cst_100 = arith.constant 9.99999974E-6 : f32
    %187 = vector.broadcast %cst_100 : f32 to vector<8x1xf32>
    %188 = arith.addf %184, %187 : vector<8x1xf32>
    %189 = math.rsqrt %188 : vector<8x1xf32>
    %190 = vector.broadcast %189 : vector<8x1xf32> to vector<8x32xf32>
    %191 = arith.mulf %186, %190 : vector<8x32xf32>
    %192 = vector.broadcast %170 : vector<1x32xf32> to vector<8x32xf32>
    %193 = arith.mulf %191, %192 : vector<8x32xf32>
    %194 = vector.broadcast %171 : vector<1x32xf32> to vector<8x32xf32>
    %195 = arith.addf %193, %194 : vector<8x32xf32>
    %cst_101 = arith.constant dense<0.000000e+00> : vector<32xf32>
    %196 = vector.multi_reduction <add>, %195, %cst_101 [0] : vector<8x32xf32> to vector<32xf32>
    %197 = vector.shape_cast %196 : vector<32xf32> to vector<1x32xf32>
    %cst_102 = arith.constant 8.000000e+00 : f32
    %198 = vector.broadcast %cst_102 : f32 to vector<1x32xf32>
    %199 = arith.divf %197, %198 : vector<1x32xf32>
    %c0_103 = arith.constant 0 : index
    %c0_104 = arith.constant 0 : index
    %200 = vector.load %arg20[%c0_103, %c0_104] : memref<32x128xf32, #tpu.memory_space<vmem>>, vector<32x128xf32>
    %c0_105 = arith.constant 0 : index
    %c0_106 = arith.constant 0 : index
    %201 = vector.load %arg21[%c0_105, %c0_106] : memref<1x128xf32, #tpu.memory_space<vmem>>, vector<1x128xf32>
    %c0_107 = arith.constant 0 : index
    %c0_108 = arith.constant 0 : index
    %202 = vector.load %arg22[%c0_107, %c0_108] : memref<128x32xf32, #tpu.memory_space<vmem>>, vector<128x32xf32>
    %c0_109 = arith.constant 0 : index
    %c0_110 = arith.constant 0 : index
    %203 = vector.load %arg23[%c0_109, %c0_110] : memref<1x32xf32, #tpu.memory_space<vmem>>, vector<1x32xf32>
    %cst_111 = arith.constant dense<0.000000e+00> : vector<1x128xf32>
    %204 = tpu.matmul %199, %200, %cst_111 {dimension_numbers = #tpu.dot_dimension_numbers<[1], [0], [0], [1], [0, 0, 1, 1], [], []>} : vector<1x32xf32>, vector<32x128xf32>, vector<1x128xf32> -> vector<1x128xf32>
    %205 = arith.addf %204, %201 : vector<1x128xf32>
    %206 = math.tanh %205 : vector<1x128xf32>
    %cst_112 = arith.constant dense<0.000000e+00> : vector<1x32xf32>
    %207 = tpu.matmul %206, %202, %cst_112 {dimension_numbers = #tpu.dot_dimension_numbers<[1], [0], [0], [1], [0, 0, 1, 1], [], []>} : vector<1x128xf32>, vector<128x32xf32>, vector<1x32xf32> -> vector<1x32xf32>
    %208 = arith.addf %207, %203 : vector<1x32xf32>
    %c0_113 = arith.constant 0 : index
    %c0_114 = arith.constant 0 : index
    %209 = vector.load %arg24[%c0_113, %c0_114] : memref<32x32xf32, #tpu.memory_space<vmem>>, vector<32x32xf32>
    %c0_115 = arith.constant 0 : index
    %c0_116 = arith.constant 0 : index
    %210 = vector.load %arg25[%c0_115, %c0_116] : memref<1x32xf32, #tpu.memory_space<vmem>>, vector<1x32xf32>
    %c0_117 = arith.constant 0 : index
    %c0_118 = arith.constant 0 : index
    %211 = vector.load %arg26[%c0_117, %c0_118] : memref<32x32xf32, #tpu.memory_space<vmem>>, vector<32x32xf32>
    %cst_119 = arith.constant dense<0.000000e+00> : vector<1x32xf32>
    %212 = tpu.matmul %208, %209, %cst_119 {dimension_numbers = #tpu.dot_dimension_numbers<[1], [0], [0], [1], [0, 0, 1, 1], [], []>} : vector<1x32xf32>, vector<32x32xf32>, vector<1x32xf32> -> vector<1x32xf32>
    %213 = arith.addf %212, %210 : vector<1x32xf32>
    %cst_120 = arith.constant dense<0.000000e+00> : vector<1x32xf32>
    %214 = tpu.matmul %208, %211, %cst_120 {dimension_numbers = #tpu.dot_dimension_numbers<[1], [0], [0], [1], [0, 0, 1, 1], [], []>} : vector<1x32xf32>, vector<32x32xf32>, vector<1x32xf32> -> vector<1x32xf32>
    %215 = arith.addf %213, %214 : vector<1x32xf32>
    %cst_121 = arith.constant 5.000000e-01 : f32
    %216 = vector.broadcast %cst_121 : f32 to vector<1x32xf32>
    %217 = arith.mulf %216, %215 : vector<1x32xf32>
    %cst_122 = arith.constant 0.707106769 : f32
    %218 = vector.broadcast %cst_122 : f32 to vector<1x32xf32>
    %219 = arith.mulf %215, %218 : vector<1x32xf32>
    %cst_123 = arith.constant 0.000000e+00 : f32
    %220 = vector.broadcast %cst_123 : f32 to vector<1x32xf32>
    %221 = arith.cmpf oge, %219, %220 : vector<1x32xf32>
    %cst_124 = arith.constant 1.000000e+00 : f32
    %cst_125 = arith.constant -1.000000e+00 : f32
    %222 = vector.broadcast %cst_124 : f32 to vector<1x32xf32>
    %223 = vector.broadcast %cst_125 : f32 to vector<1x32xf32>
    %224 = arith.select %221, %222, %223 : vector<1x32xi1>, vector<1x32xf32>
    %225 = math.absf %219 : vector<1x32xf32>
    %cst_126 = arith.constant 0.327591091 : f32
    %226 = vector.broadcast %cst_126 : f32 to vector<1x32xf32>
    %227 = arith.mulf %226, %225 : vector<1x32xf32>
    %cst_127 = arith.constant 1.000000e+00 : f32
    %228 = vector.broadcast %cst_127 : f32 to vector<1x32xf32>
    %229 = arith.addf %228, %227 : vector<1x32xf32>
    %cst_128 = arith.constant 1.000000e+00 : f32
    %230 = vector.broadcast %cst_128 : f32 to vector<1x32xf32>
    %231 = arith.divf %230, %229 : vector<1x32xf32>
    %cst_129 = arith.constant 1.06140542 : f32
    %232 = vector.broadcast %cst_129 : f32 to vector<1x32xf32>
    %233 = arith.mulf %232, %231 : vector<1x32xf32>
    %cst_130 = arith.constant -1.45315206 : f32
    %234 = vector.broadcast %cst_130 : f32 to vector<1x32xf32>
    %235 = arith.addf %233, %234 : vector<1x32xf32>
    %236 = arith.mulf %235, %231 : vector<1x32xf32>
    %cst_131 = arith.constant 1.42141378 : f32
    %237 = vector.broadcast %cst_131 : f32 to vector<1x32xf32>
    %238 = arith.addf %236, %237 : vector<1x32xf32>
    %239 = arith.mulf %238, %231 : vector<1x32xf32>
    %cst_132 = arith.constant -0.284496725 : f32
    %240 = vector.broadcast %cst_132 : f32 to vector<1x32xf32>
    %241 = arith.addf %239, %240 : vector<1x32xf32>
    %242 = arith.mulf %241, %231 : vector<1x32xf32>
    %cst_133 = arith.constant 0.254829586 : f32
    %243 = vector.broadcast %cst_133 : f32 to vector<1x32xf32>
    %244 = arith.addf %242, %243 : vector<1x32xf32>
    %245 = arith.mulf %244, %231 : vector<1x32xf32>
    %cst_134 = arith.constant 0.000000e+00 : f32
    %246 = vector.broadcast %cst_134 : f32 to vector<1x32xf32>
    %247 = arith.subf %246, %225 : vector<1x32xf32>
    %248 = arith.mulf %247, %225 : vector<1x32xf32>
    %249 = math.exp %248 : vector<1x32xf32>
    %250 = arith.mulf %245, %249 : vector<1x32xf32>
    %cst_135 = arith.constant 1.000000e+00 : f32
    %251 = vector.broadcast %cst_135 : f32 to vector<1x32xf32>
    %252 = arith.subf %251, %250 : vector<1x32xf32>
    %253 = arith.mulf %224, %252 : vector<1x32xf32>
    %cst_136 = arith.constant 1.000000e+00 : f32
    %254 = vector.broadcast %cst_136 : f32 to vector<1x32xf32>
    %255 = arith.addf %254, %253 : vector<1x32xf32>
    %256 = arith.mulf %217, %255 : vector<1x32xf32>
    %c0_137 = arith.constant 0 : index
    %c0_138 = arith.constant 0 : index
    %257 = vector.load %arg27[%c0_137, %c0_138] : memref<32x32xf32, #tpu.memory_space<vmem>>, vector<32x32xf32>
    %c0_139 = arith.constant 0 : index
    %c0_140 = arith.constant 0 : index
    %258 = vector.load %arg28[%c0_139, %c0_140] : memref<1x32xf32, #tpu.memory_space<vmem>>, vector<1x32xf32>
    %c0_141 = arith.constant 0 : index
    %c0_142 = arith.constant 0 : index
    %259 = vector.load %arg29[%c0_141, %c0_142] : memref<32x32xf32, #tpu.memory_space<vmem>>, vector<32x32xf32>
    %cst_143 = arith.constant dense<0.000000e+00> : vector<1x32xf32>
    %260 = tpu.matmul %256, %257, %cst_143 {dimension_numbers = #tpu.dot_dimension_numbers<[1], [0], [0], [1], [0, 0, 1, 1], [], []>} : vector<1x32xf32>, vector<32x32xf32>, vector<1x32xf32> -> vector<1x32xf32>
    %261 = arith.addf %260, %258 : vector<1x32xf32>
    %cst_144 = arith.constant dense<0.000000e+00> : vector<1x32xf32>
    %262 = tpu.matmul %256, %259, %cst_144 {dimension_numbers = #tpu.dot_dimension_numbers<[1], [0], [0], [1], [0, 0, 1, 1], [], []>} : vector<1x32xf32>, vector<32x32xf32>, vector<1x32xf32> -> vector<1x32xf32>
    %263 = arith.addf %261, %262 : vector<1x32xf32>
    %cst_145 = arith.constant 5.000000e-01 : f32
    %264 = vector.broadcast %cst_145 : f32 to vector<1x32xf32>
    %265 = arith.mulf %264, %263 : vector<1x32xf32>
    %cst_146 = arith.constant 0.707106769 : f32
    %266 = vector.broadcast %cst_146 : f32 to vector<1x32xf32>
    %267 = arith.mulf %263, %266 : vector<1x32xf32>
    %cst_147 = arith.constant 0.000000e+00 : f32
    %268 = vector.broadcast %cst_147 : f32 to vector<1x32xf32>
    %269 = arith.cmpf oge, %267, %268 : vector<1x32xf32>
    %cst_148 = arith.constant 1.000000e+00 : f32
    %cst_149 = arith.constant -1.000000e+00 : f32
    %270 = vector.broadcast %cst_148 : f32 to vector<1x32xf32>
    %271 = vector.broadcast %cst_149 : f32 to vector<1x32xf32>
    %272 = arith.select %269, %270, %271 : vector<1x32xi1>, vector<1x32xf32>
    %273 = math.absf %267 : vector<1x32xf32>
    %cst_150 = arith.constant 0.327591091 : f32
    %274 = vector.broadcast %cst_150 : f32 to vector<1x32xf32>
    %275 = arith.mulf %274, %273 : vector<1x32xf32>
    %cst_151 = arith.constant 1.000000e+00 : f32
    %276 = vector.broadcast %cst_151 : f32 to vector<1x32xf32>
    %277 = arith.addf %276, %275 : vector<1x32xf32>
    %cst_152 = arith.constant 1.000000e+00 : f32
    %278 = vector.broadcast %cst_152 : f32 to vector<1x32xf32>
    %279 = arith.divf %278, %277 : vector<1x32xf32>
    %cst_153 = arith.constant 1.06140542 : f32
    %280 = vector.broadcast %cst_153 : f32 to vector<1x32xf32>
    %281 = arith.mulf %280, %279 : vector<1x32xf32>
    %cst_154 = arith.constant -1.45315206 : f32
    %282 = vector.broadcast %cst_154 : f32 to vector<1x32xf32>
    %283 = arith.addf %281, %282 : vector<1x32xf32>
    %284 = arith.mulf %283, %279 : vector<1x32xf32>
    %cst_155 = arith.constant 1.42141378 : f32
    %285 = vector.broadcast %cst_155 : f32 to vector<1x32xf32>
    %286 = arith.addf %284, %285 : vector<1x32xf32>
    %287 = arith.mulf %286, %279 : vector<1x32xf32>
    %cst_156 = arith.constant -0.284496725 : f32
    %288 = vector.broadcast %cst_156 : f32 to vector<1x32xf32>
    %289 = arith.addf %287, %288 : vector<1x32xf32>
    %290 = arith.mulf %289, %279 : vector<1x32xf32>
    %cst_157 = arith.constant 0.254829586 : f32
    %291 = vector.broadcast %cst_157 : f32 to vector<1x32xf32>
    %292 = arith.addf %290, %291 : vector<1x32xf32>
    %293 = arith.mulf %292, %279 : vector<1x32xf32>
    %cst_158 = arith.constant 0.000000e+00 : f32
    %294 = vector.broadcast %cst_158 : f32 to vector<1x32xf32>
    %295 = arith.subf %294, %273 : vector<1x32xf32>
    %296 = arith.mulf %295, %273 : vector<1x32xf32>
    %297 = math.exp %296 : vector<1x32xf32>
    %298 = arith.mulf %293, %297 : vector<1x32xf32>
    %cst_159 = arith.constant 1.000000e+00 : f32
    %299 = vector.broadcast %cst_159 : f32 to vector<1x32xf32>
    %300 = arith.subf %299, %298 : vector<1x32xf32>
    %301 = arith.mulf %272, %300 : vector<1x32xf32>
    %cst_160 = arith.constant 1.000000e+00 : f32
    %302 = vector.broadcast %cst_160 : f32 to vector<1x32xf32>
    %303 = arith.addf %302, %301 : vector<1x32xf32>
    %304 = arith.mulf %265, %303 : vector<1x32xf32>
    %c0_161 = arith.constant 0 : index
    %c0_162 = arith.constant 0 : index
    %305 = vector.load %arg30[%c0_161, %c0_162] : memref<32x32xf32, #tpu.memory_space<vmem>>, vector<32x32xf32>
    %c0_163 = arith.constant 0 : index
    %c0_164 = arith.constant 0 : index
    %306 = vector.load %arg31[%c0_163, %c0_164] : memref<1x32xf32, #tpu.memory_space<vmem>>, vector<1x32xf32>
    %c0_165 = arith.constant 0 : index
    %c0_166 = arith.constant 0 : index
    %307 = vector.load %arg32[%c0_165, %c0_166] : memref<32x32xf32, #tpu.memory_space<vmem>>, vector<32x32xf32>
    %cst_167 = arith.constant dense<0.000000e+00> : vector<1x32xf32>
    %308 = tpu.matmul %304, %305, %cst_167 {dimension_numbers = #tpu.dot_dimension_numbers<[1], [0], [0], [1], [0, 0, 1, 1], [], []>} : vector<1x32xf32>, vector<32x32xf32>, vector<1x32xf32> -> vector<1x32xf32>
    %309 = arith.addf %308, %306 : vector<1x32xf32>
    %cst_168 = arith.constant dense<0.000000e+00> : vector<1x32xf32>
    %310 = tpu.matmul %304, %307, %cst_168 {dimension_numbers = #tpu.dot_dimension_numbers<[1], [0], [0], [1], [0, 0, 1, 1], [], []>} : vector<1x32xf32>, vector<32x32xf32>, vector<1x32xf32> -> vector<1x32xf32>
    %311 = arith.addf %309, %310 : vector<1x32xf32>
    %cst_169 = arith.constant 5.000000e-01 : f32
    %312 = vector.broadcast %cst_169 : f32 to vector<1x32xf32>
    %313 = arith.mulf %312, %311 : vector<1x32xf32>
    %cst_170 = arith.constant 0.707106769 : f32
    %314 = vector.broadcast %cst_170 : f32 to vector<1x32xf32>
    %315 = arith.mulf %311, %314 : vector<1x32xf32>
    %cst_171 = arith.constant 0.000000e+00 : f32
    %316 = vector.broadcast %cst_171 : f32 to vector<1x32xf32>
    %317 = arith.cmpf oge, %315, %316 : vector<1x32xf32>
    %cst_172 = arith.constant 1.000000e+00 : f32
    %cst_173 = arith.constant -1.000000e+00 : f32
    %318 = vector.broadcast %cst_172 : f32 to vector<1x32xf32>
    %319 = vector.broadcast %cst_173 : f32 to vector<1x32xf32>
    %320 = arith.select %317, %318, %319 : vector<1x32xi1>, vector<1x32xf32>
    %321 = math.absf %315 : vector<1x32xf32>
    %cst_174 = arith.constant 0.327591091 : f32
    %322 = vector.broadcast %cst_174 : f32 to vector<1x32xf32>
    %323 = arith.mulf %322, %321 : vector<1x32xf32>
    %cst_175 = arith.constant 1.000000e+00 : f32
    %324 = vector.broadcast %cst_175 : f32 to vector<1x32xf32>
    %325 = arith.addf %324, %323 : vector<1x32xf32>
    %cst_176 = arith.constant 1.000000e+00 : f32
    %326 = vector.broadcast %cst_176 : f32 to vector<1x32xf32>
    %327 = arith.divf %326, %325 : vector<1x32xf32>
    %cst_177 = arith.constant 1.06140542 : f32
    %328 = vector.broadcast %cst_177 : f32 to vector<1x32xf32>
    %329 = arith.mulf %328, %327 : vector<1x32xf32>
    %cst_178 = arith.constant -1.45315206 : f32
    %330 = vector.broadcast %cst_178 : f32 to vector<1x32xf32>
    %331 = arith.addf %329, %330 : vector<1x32xf32>
    %332 = arith.mulf %331, %327 : vector<1x32xf32>
    %cst_179 = arith.constant 1.42141378 : f32
    %333 = vector.broadcast %cst_179 : f32 to vector<1x32xf32>
    %334 = arith.addf %332, %333 : vector<1x32xf32>
    %335 = arith.mulf %334, %327 : vector<1x32xf32>
    %cst_180 = arith.constant -0.284496725 : f32
    %336 = vector.broadcast %cst_180 : f32 to vector<1x32xf32>
    %337 = arith.addf %335, %336 : vector<1x32xf32>
    %338 = arith.mulf %337, %327 : vector<1x32xf32>
    %cst_181 = arith.constant 0.254829586 : f32
    %339 = vector.broadcast %cst_181 : f32 to vector<1x32xf32>
    %340 = arith.addf %338, %339 : vector<1x32xf32>
    %341 = arith.mulf %340, %327 : vector<1x32xf32>
    %cst_182 = arith.constant 0.000000e+00 : f32
    %342 = vector.broadcast %cst_182 : f32 to vector<1x32xf32>
    %343 = arith.subf %342, %321 : vector<1x32xf32>
    %344 = arith.mulf %343, %321 : vector<1x32xf32>
    %345 = math.exp %344 : vector<1x32xf32>
    %346 = arith.mulf %341, %345 : vector<1x32xf32>
    %cst_183 = arith.constant 1.000000e+00 : f32
    %347 = vector.broadcast %cst_183 : f32 to vector<1x32xf32>
    %348 = arith.subf %347, %346 : vector<1x32xf32>
    %349 = arith.mulf %320, %348 : vector<1x32xf32>
    %cst_184 = arith.constant 1.000000e+00 : f32
    %350 = vector.broadcast %cst_184 : f32 to vector<1x32xf32>
    %351 = arith.addf %350, %349 : vector<1x32xf32>
    %352 = arith.mulf %313, %351 : vector<1x32xf32>
    %c0_185 = arith.constant 0 : index
    %c0_186 = arith.constant 0 : index
    %353 = vector.load %arg33[%c0_185, %c0_186] : memref<32x128xf32, #tpu.memory_space<vmem>>, vector<32x128xf32>
    %c0_187 = arith.constant 0 : index
    %c0_188 = arith.constant 0 : index
    %354 = vector.load %arg34[%c0_187, %c0_188] : memref<1x128xf32, #tpu.memory_space<vmem>>, vector<1x128xf32>
    %c0_189 = arith.constant 0 : index
    %c0_190 = arith.constant 0 : index
    %355 = vector.load %arg35[%c0_189, %c0_190] : memref<128x32xf32, #tpu.memory_space<vmem>>, vector<128x32xf32>
    %c0_191 = arith.constant 0 : index
    %c0_192 = arith.constant 0 : index
    %356 = vector.load %arg36[%c0_191, %c0_192] : memref<1x32xf32, #tpu.memory_space<vmem>>, vector<1x32xf32>
    %cst_193 = arith.constant dense<0.000000e+00> : vector<1x128xf32>
    %357 = tpu.matmul %352, %353, %cst_193 {dimension_numbers = #tpu.dot_dimension_numbers<[1], [0], [0], [1], [0, 0, 1, 1], [], []>} : vector<1x32xf32>, vector<32x128xf32>, vector<1x128xf32> -> vector<1x128xf32>
    %358 = arith.addf %357, %354 : vector<1x128xf32>
    %359 = math.tanh %358 : vector<1x128xf32>
    %cst_194 = arith.constant dense<0.000000e+00> : vector<1x32xf32>
    %360 = tpu.matmul %359, %355, %cst_194 {dimension_numbers = #tpu.dot_dimension_numbers<[1], [0], [0], [1], [0, 0, 1, 1], [], []>} : vector<1x128xf32>, vector<128x32xf32>, vector<1x32xf32> -> vector<1x32xf32>
    %361 = arith.addf %360, %356 : vector<1x32xf32>
    %c0_195 = arith.constant 0 : index
    %c0_196 = arith.constant 0 : index
    %362 = vector.load %arg37[%c0_195, %c0_196] : memref<1x32xf32, #tpu.memory_space<vmem>>, vector<1x32xf32>
    %c0_197 = arith.constant 0 : index
    %c0_198 = arith.constant 0 : index
    %363 = vector.load %arg38[%c0_197, %c0_198] : memref<1x32xf32, #tpu.memory_space<vmem>>, vector<1x32xf32>
    %cst_199 = arith.constant dense<0.000000e+00> : vector<1xf32>
    %364 = vector.multi_reduction <add>, %361, %cst_199 [1] : vector<1x32xf32> to vector<1xf32>
    %365 = vector.shape_cast %364 : vector<1xf32> to vector<1x1xf32>
    %cst_200 = arith.constant 3.200000e+01 : f32
    %366 = vector.broadcast %cst_200 : f32 to vector<1x1xf32>
    %367 = arith.divf %365, %366 : vector<1x1xf32>
    %368 = vector.broadcast %367 : vector<1x1xf32> to vector<1x32xf32>
    %369 = arith.subf %361, %368 : vector<1x32xf32>
    %370 = vector.broadcast %367 : vector<1x1xf32> to vector<1x32xf32>
    %371 = arith.subf %361, %370 : vector<1x32xf32>
    %372 = arith.mulf %369, %371 : vector<1x32xf32>
    %cst_201 = arith.constant dense<0.000000e+00> : vector<1xf32>
    %373 = vector.multi_reduction <add>, %372, %cst_201 [1] : vector<1x32xf32> to vector<1xf32>
    %374 = vector.shape_cast %373 : vector<1xf32> to vector<1x1xf32>
    %cst_202 = arith.constant 3.200000e+01 : f32
    %375 = vector.broadcast %cst_202 : f32 to vector<1x1xf32>
    %376 = arith.divf %374, %375 : vector<1x1xf32>
    %377 = vector.broadcast %367 : vector<1x1xf32> to vector<1x32xf32>
    %378 = arith.subf %361, %377 : vector<1x32xf32>
    %cst_203 = arith.constant 9.99999974E-6 : f32
    %379 = vector.broadcast %cst_203 : f32 to vector<1x1xf32>
    %380 = arith.addf %376, %379 : vector<1x1xf32>
    %381 = math.rsqrt %380 : vector<1x1xf32>
    %382 = vector.broadcast %381 : vector<1x1xf32> to vector<1x32xf32>
    %383 = arith.mulf %378, %382 : vector<1x32xf32>
    %384 = arith.mulf %383, %362 : vector<1x32xf32>
    %385 = arith.addf %384, %363 : vector<1x32xf32>
    %cst_204 = arith.constant dense<0xFF800000> : vector<32xf32>
    %386 = vector.multi_reduction <maximumf>, %385, %cst_204 [0] : vector<1x32xf32> to vector<32xf32>
    %387 = vector.shape_cast %386 : vector<32xf32> to vector<1x32xf32>
    %c0_205 = arith.constant 0 : index
    %c0_206 = arith.constant 0 : index
    %388 = vector.load %arg39[%c0_205, %c0_206] : memref<32x128xf32, #tpu.memory_space<vmem>>, vector<32x128xf32>
    %c0_207 = arith.constant 0 : index
    %c0_208 = arith.constant 0 : index
    %389 = vector.load %arg40[%c0_207, %c0_208] : memref<1x128xf32, #tpu.memory_space<vmem>>, vector<1x128xf32>
    %c0_209 = arith.constant 0 : index
    %c0_210 = arith.constant 0 : index
    %390 = vector.load %arg41[%c0_209, %c0_210] : memref<128x128xf32, #tpu.memory_space<vmem>>, vector<128x128xf32>
    %c0_211 = arith.constant 0 : index
    %c0_212 = arith.constant 0 : index
    %391 = vector.load %arg42[%c0_211, %c0_212] : memref<1x128xf32, #tpu.memory_space<vmem>>, vector<1x128xf32>
    %cst_213 = arith.constant dense<0.000000e+00> : vector<1x128xf32>
    %392 = tpu.matmul %387, %388, %cst_213 {dimension_numbers = #tpu.dot_dimension_numbers<[1], [0], [0], [1], [0, 0, 1, 1], [], []>} : vector<1x32xf32>, vector<32x128xf32>, vector<1x128xf32> -> vector<1x128xf32>
    %393 = arith.addf %392, %389 : vector<1x128xf32>
    %cst_214 = arith.constant 0.000000e+00 : f32
    %394 = vector.broadcast %cst_214 : f32 to vector<1x128xf32>
    %395 = arith.maximumf %393, %394 : vector<1x128xf32>
    %cst_215 = arith.constant dense<0.000000e+00> : vector<1x128xf32>
    %396 = tpu.matmul %395, %390, %cst_215 {dimension_numbers = #tpu.dot_dimension_numbers<[1], [0], [0], [1], [0, 0, 1, 1], [], []>} : vector<1x128xf32>, vector<128x128xf32>, vector<1x128xf32> -> vector<1x128xf32>
    %397 = arith.addf %396, %391 : vector<1x128xf32>
    %398 = tpu.iota {dimensions = array<i32: 1>} : vector<1x128xi32>
    %c2_i32 = arith.constant 2 : i32
    %399 = vector.broadcast %c2_i32 : i32 to vector<1x128xi32>
    %400 = arith.cmpi slt, %398, %399 : vector<1x128xi32>
    %cst_216 = arith.constant -1.000000e+30 : f32
    %401 = vector.broadcast %cst_216 : f32 to vector<1x128xf32>
    %402 = arith.select %400, %397, %401 : vector<1x128xi1>, vector<1x128xf32>
    %cst_217 = arith.constant dense<0xFF800000> : vector<1xf32>
    %403 = vector.multi_reduction <maximumf>, %402, %cst_217 [1] : vector<1x128xf32> to vector<1xf32>
    %404 = vector.shape_cast %403 : vector<1xf32> to vector<1x1xf32>
    %405 = vector.broadcast %404 : vector<1x1xf32> to vector<1x128xf32>
    %406 = arith.subf %402, %405 : vector<1x128xf32>
    %407 = math.exp %406 : vector<1x128xf32>
    %cst_218 = arith.constant 0.000000e+00 : f32
    %408 = vector.broadcast %cst_218 : f32 to vector<1x128xf32>
    %409 = arith.select %400, %407, %408 : vector<1x128xi1>, vector<1x128xf32>
    %cst_219 = arith.constant dense<0.000000e+00> : vector<1xf32>
    %410 = vector.multi_reduction <add>, %409, %cst_219 [1] : vector<1x128xf32> to vector<1xf32>
    %411 = vector.shape_cast %410 : vector<1xf32> to vector<1x1xf32>
    %412 = vector.broadcast %411 : vector<1x1xf32> to vector<1x128xf32>
    %413 = arith.divf %409, %412 : vector<1x128xf32>
    %c0_220 = arith.constant 0 : index
    %c0_221 = arith.constant 0 : index
    %414 = vector.load %arg43[%c0_220, %c0_221] : memref<1x128xf32, #tpu.memory_space<vmem>>, vector<1x128xf32>
    tpu.vector_store %arg43[%c0_220, %c0_221], %413 {strides = array<i32>} : memref<1x128xf32, #tpu.memory_space<vmem>>, vector<1x128xf32>,
    return
  }
}

</mosaic_0001>

<llo_original>
// kernel: fno_forward.1
$region0: #{fno_forward.1}
  #allocation0 [shape = 'u32[]', space=smem, size = 0x4, offset = 0x4, fixed_abs, tag = 'smem constant byte address 0x4 - core index']
  #allocation1 [shape = 'u32[144,128]{1,0:T(1,128)}', space=vmem, size = 0x12000, scoped, tag = 'internal scratch']
  %s0 = inlined_call_operand.smem [shape: u32[44], index: -1, kind: input, shape index: {}]
  %s1 = sld [smem:[%s0]]
  %s2 = scalar_lea.smem %s0, 1
  %s3 = sld [smem:[%s2]]
  %s4 = scalar_lea.smem %s0, 2
  %s5 = sld [smem:[%s4]]
  %s6 = scalar_lea.smem %s0, 3
  %s7 = sld [smem:[%s6]]
  %s8 = scalar_lea.smem %s0, 4
  %s9 = sld [smem:[%s8]]
  %s10 = scalar_lea.smem %s0, 5
  %s11 = sld [smem:[%s10]]
  %s12 = scalar_lea.smem %s0, 6
  %s13 = sld [smem:[%s12]]
  %s14 = scalar_lea.smem %s0, 7
  %s15 = sld [smem:[%s14]]
  %s16 = scalar_lea.smem %s0, 8
  %s17 = sld [smem:[%s16]]
  %s18 = scalar_lea.smem %s0, 9
  %s19 = sld [smem:[%s18]]
  %s20 = scalar_lea.smem %s0, 10
  %s21 = sld [smem:[%s20]]
  %s22 = scalar_lea.smem %s0, 11
  %s23 = sld [smem:[%s22]]
  %s24 = scalar_lea.smem %s0, 12
  %s25 = sld [smem:[%s24]]
  %s26 = scalar_lea.smem %s0, 13
  %s27 = sld [smem:[%s26]]
  %s28 = scalar_lea.smem %s0, 14
  %s29 = sld [smem:[%s28]]
  %s30 = scalar_lea.smem %s0, 15
  %s31 = sld [smem:[%s30]]
  %s32 = scalar_lea.smem %s0, 16
  %s33 = sld [smem:[%s32]]
  %s34 = scalar_lea.smem %s0, 17
  %s35 = sld [smem:[%s34]]
  %s36 = scalar_lea.smem %s0, 18
  %s37 = sld [smem:[%s36]]
  %s38 = scalar_lea.smem %s0, 19
  %s39 = sld [smem:[%s38]]
  %s40 = scalar_lea.smem %s0, 20
  %s41 = sld [smem:[%s40]]
  %s42 = scalar_lea.smem %s0, 21
  %s43 = sld [smem:[%s42]]
  %s44 = scalar_lea.smem %s0, 22
  %s45 = sld [smem:[%s44]]
  %s46 = scalar_lea.smem %s0, 23
  %s47 = sld [smem:[%s46]]
  %s48 = scalar_lea.smem %s0, 24
  %s49 = sld [smem:[%s48]]
  %s50 = scalar_lea.smem %s0, 25
  %s51 = sld [smem:[%s50]]
  %s52 = scalar_lea.smem %s0, 26
  %s53 = sld [smem:[%s52]]
  %s54 = scalar_lea.smem %s0, 27
  %s55 = sld [smem:[%s54]]
  %s56 = scalar_lea.smem %s0, 28
  %s57 = sld [smem:[%s56]]
  %s58 = scalar_lea.smem %s0, 29
  %s59 = sld [smem:[%s58]]
  %s60 = scalar_lea.smem %s0, 30
  %s61 = sld [smem:[%s60]]
  %s62 = scalar_lea.smem %s0, 31
  %s63 = sld [smem:[%s62]]
  %s64 = scalar_lea.smem %s0, 32
  %s65 = sld [smem:[%s64]]
  %s66 = scalar_lea.smem %s0, 33
  %s67 = sld [smem:[%s66]]
  %s68 = scalar_lea.smem %s0, 34
  %s69 = sld [smem:[%s68]]
  %s70 = scalar_lea.smem %s0, 35
  %s71 = sld [smem:[%s70]]
  %s72 = scalar_lea.smem %s0, 36
  %s73 = sld [smem:[%s72]]
  %s74 = scalar_lea.smem %s0, 37
  %s75 = sld [smem:[%s74]]
  %s76 = scalar_lea.smem %s0, 38
  %s77 = sld [smem:[%s76]]
  %s78 = scalar_lea.smem %s0, 39
  %s79 = sld [smem:[%s78]]
  %s80 = scalar_lea.smem %s0, 40
  %s81 = sld [smem:[%s80]]
  %s82 = scalar_lea.smem %s0, 41
  %s83 = sld [smem:[%s82]]
  %s84 = scalar_lea.smem %s0, 42
  %s85 = sld [smem:[%s84]]
  %s86 = scalar_lea.smem %s0, 43
  %s87 = sld [smem:[%s86]]
  %s88 = sld [smem:[#allocation0]]
  $region226: #{fno_forward.1} parent=0
    _
  %s90 = ssub.s32 1, %s88
  %s91 = scalar_select 0, %s90, %s88
  $region1: #{fno_forward.1} parent=0
    #allocation2 [shape = 'u8[4096]{0}', space=vmem, size = 0x1000, scoped, tag = 'input window, operand 0, single buffered']
    #allocation3 [shape = 's32[1]{0}', space=sflag, size = 0x4, scoped, tag = 'scoped memory for fno_forward.1']
    #allocation4 [shape = 'u8[512]{0}', space=vmem, size = 0x400, scoped, tag = 'input window, operand 12, single buffered']
    #allocation5 [shape = 's32[1]{0}', space=sflag, size = 0x4, scoped, tag = 'scoped memory for fno_forward.1']
    #allocation6 [shape = 'u8[512]{0}', space=vmem, size = 0x400, scoped, tag = 'input window, operand 15, single buffered']
    #allocation7 [shape = 'u8[512]{0}', space=vmem, size = 0x400, scoped, tag = 'input window, operand 17, single buffered']
    #allocation8 [shape = 's32[1]{0}', space=sflag, size = 0x4, scoped, tag = 'scoped memory for fno_forward.1']
    #allocation9 [shape = 'u8[512]{0}', space=vmem, size = 0x400, scoped, tag = 'input window, operand 18, single buffered']
    #allocation10 [shape = 'u8[512]{0}', space=vmem, size = 0x400, scoped, tag = 'input window, operand 19, single buffered']
    #allocation11 [shape = 's32[1]{0}', space=sflag, size = 0x4, scoped, tag = 'scoped memory for fno_forward.1']
    #allocation12 [shape = 'u8[512]{0}', space=vmem, size = 0x400, scoped, tag = 'input window, operand 25, single buffered']
    #allocation13 [shape = 'u8[512]{0}', space=vmem, size = 0x400, scoped, tag = 'input window, operand 34, single buffered']
    #allocation14 [shape = 's32[1]{0}', space=sflag, size = 0x4, scoped, tag = 'scoped memory for fno_forward.1']
    #allocation15 [shape = 'u8[512]{0}', space=vmem, size = 0x400, scoped, tag = 'input window, operand 36, single buffered']
    #allocation16 [shape = 'u8[512]{0}', space=vmem, size = 0x400, scoped, tag = 'input window, operand 37, single buffered']
    #allocation17 [shape = 's32[1]{0}', space=sflag, size = 0x4, scoped, tag = 'scoped memory for fno_forward.1']
    #allocation18 [shape = 'u8[512]{0}', space=vmem, size = 0x400, scoped, tag = 'input window, operand 38, single buffered']
    %92 = vsyncpa [#allocation3], 0
    %93 = vsyncpa [#allocation5], 0
    %94 = vsyncpa [#allocation8], 0
    %95 = vsyncpa [#allocation11], 0
    %96 = vsyncpa [#allocation14], 0
    %97 = vsyncpa [#allocation17], 0
    // Predicated region
    $region2: #{fno_forward.1} parent=1 // pred_check
      _
    $region3: #{fno_forward.1} parent=1 // pred_check_branch
      %99 = sbr.rel (0) target = $region5
    $region4: #{fno_forward.1} parent=1 // pred_region
      %s101 = ssub.s32 128, 128
      %102 = vsyncadd [#allocation3], %s101
      %s104 = sshll.u32 [#allocation2], 4
      %s105 = int_to_ptr.vmem [resolvable:$true] %s104
      %107 = dma.hbm_to_vmem [thread:$0]  %s1, 128, %s105, [#allocation3]
    $region5: #{fno_forward.1} parent=1 // pred_fallthru
      _
    // Predicated region
    $region6: #{fno_forward.1} parent=1 // pred_check
      _
    $region7: #{fno_forward.1} parent=1 // pred_check_branch
      %109 = sbr.rel (0) target = $region9
    $region8: #{fno_forward.1} parent=1 // pred_region
      _
    $region9: #{fno_forward.1} parent=1 // pred_fallthru
      _
    // Predicated region
    $region10: #{fno_forward.1} parent=1 // pred_check
      _
    $region11: #{fno_forward.1} parent=1 // pred_check_branch
      %111 = sbr.rel (0) target = $region13
    $region12: #{fno_forward.1} parent=1 // pred_region
      _
    $region13: #{fno_forward.1} parent=1 // pred_fallthru
      _
    // Predicated region
    $region14: #{fno_forward.1} parent=1 // pred_check
      _
    $region15: #{fno_forward.1} parent=1 // pred_check_branch
      %113 = sbr.rel (0) target = $region17
    $region16: #{fno_forward.1} parent=1 // pred_region
      _
    $region17: #{fno_forward.1} parent=1 // pred_fallthru
      _
    // Predicated region
    $region18: #{fno_forward.1} parent=1 // pred_check
      _
    $region19: #{fno_forward.1} parent=1 // pred_check_branch
      %115 = sbr.rel (0) target = $region21
    $region20: #{fno_forward.1} parent=1 // pred_region
      _
    $region21: #{fno_forward.1} parent=1 // pred_fallthru
      _
    // Predicated region
    $region22: #{fno_forward.1} parent=1 // pred_check
      _
    $region23: #{fno_forward.1} parent=1 // pred_check_branch
      %117 = sbr.rel (0) target = $region25
    $region24: #{fno_forward.1} parent=1 // pred_region
      _
    $region25: #{fno_forward.1} parent=1 // pred_fallthru
      _
    // Predicated region
    $region26: #{fno_forward.1} parent=1 // pred_check
      _
    $region27: #{fno_forward.1} parent=1 // pred_check_branch
      %119 = sbr.rel (0) target = $region29
    $region28: #{fno_forward.1} parent=1 // pred_region
      _
    $region29: #{fno_forward.1} parent=1 // pred_fallthru
      _
    // Predicated region
    $region30: #{fno_forward.1} parent=1 // pred_check
      _
    $region31: #{fno_forward.1} parent=1 // pred_check_branch
      %121 = sbr.rel (0) target = $region33
    $region32: #{fno_forward.1} parent=1 // pred_region
      _
    $region33: #{fno_forward.1} parent=1 // pred_fallthru
      _
    // Predicated region
    $region34: #{fno_forward.1} parent=1 // pred_check
      _
    $region35: #{fno_forward.1} parent=1 // pred_check_branch
      %123 = sbr.rel (0) target = $region37
    $region36: #{fno_forward.1} parent=1 // pred_region
      _
    $region37: #{fno_forward.1} parent=1 // pred_fallthru
      _
    // Predicated region
    $region38: #{fno_forward.1} parent=1 // pred_check
      _
    $region39: #{fno_forward.1} parent=1 // pred_check_branch
      %125 = sbr.rel (0) target = $region41
    $region40: #{fno_forward.1} parent=1 // pred_region
      _
    $region41: #{fno_forward.1} parent=1 // pred_fallthru
      _
    // Predicated region
    $region42: #{fno_forward.1} parent=1 // pred_check
      _
    $region43: #{fno_forward.1} parent=1 // pred_check_branch
      %127 = sbr.rel (0) target = $region45
    $region44: #{fno_forward.1} parent=1 // pred_region
      _
    $region45: #{fno_forward.1} parent=1 // pred_fallthru
      _
    // Predicated region
    $region46: #{fno_forward.1} parent=1 // pred_check
      _
    $region47: #{fno_forward.1} parent=1 // pred_check_branch
      %129 = sbr.rel (0) target = $region49
    $region48: #{fno_forward.1} parent=1 // pred_region
      _
    $region49: #{fno_forward.1} parent=1 // pred_fallthru
      _
    // Predicated region
    $region50: #{fno_forward.1} parent=1 // pred_check
      _
    $region51: #{fno_forward.1} parent=1 // pred_check_branch
      %131 = sbr.rel (0) target = $region53
    $region52: #{fno_forward.1} parent=1 // pred_region
      %s133 = ssub.s32 16, 16
      %134 = vsyncadd [#allocation5], %s133
      %s136 = sshll.u32 [#allocation4], 4
      %s137 = int_to_ptr.vmem [resolvable:$true] %s136
      %139 = dma.hbm_to_vmem [thread:$0]  %s25, 16, %s137, [#allocation5]
    $region53: #{fno_forward.1} parent=1 // pred_fallthru
      _
    // Predicated region
    $region54: #{fno_forward.1} parent=1 // pred_check
      _
    $region55: #{fno_forward.1} parent=1 // pred_check_branch
      %141 = sbr.rel (0) target = $region57
    $region56: #{fno_forward.1} parent=1 // pred_region
      _
    $region57: #{fno_forward.1} parent=1 // pred_fallthru
      _
    // Predicated region
    $region58: #{fno_forward.1} parent=1 // pred_check
      _
    $region59: #{fno_forward.1} parent=1 // pred_check_branch
      %143 = sbr.rel (0) target = $region61
    $region60: #{fno_forward.1} parent=1 // pred_region
      _
    $region61: #{fno_forward.1} parent=1 // pred_fallthru
      _
    // Predicated region
    $region62: #{fno_forward.1} parent=1 // pred_check
      _
    $region63: #{fno_forward.1} parent=1 // pred_check_branch
      %145 = sbr.rel (0) target = $region65
    $region64: #{fno_forward.1} parent=1 // pred_region
      %s147 = ssub.s32 16, 16
      %148 = vsyncadd [#allocation5], %s147
      %s150 = sshll.u32 [#allocation6], 4
      %s151 = int_to_ptr.vmem [resolvable:$true] %s150
      %153 = dma.hbm_to_vmem [thread:$0]  %s31, 16, %s151, [#allocation5]
    $region65: #{fno_forward.1} parent=1 // pred_fallthru
      _
    // Predicated region
    $region66: #{fno_forward.1} parent=1 // pred_check
      _
    $region67: #{fno_forward.1} parent=1 // pred_check_branch
      %155 = sbr.rel (0) target = $region69
    $region68: #{fno_forward.1} parent=1 // pred_region
      _
    $region69: #{fno_forward.1} parent=1 // pred_fallthru
      _
    // Predicated region
    $region70: #{fno_forward.1} parent=1 // pred_check
      _
    $region71: #{fno_forward.1} parent=1 // pred_check_branch
      %157 = sbr.rel (0) target = $region73
    $region72: #{fno_forward.1} parent=1 // pred_region
      %s159 = ssub.s32 16, 16
      %160 = vsyncadd [#allocation8], %s159
      %s162 = sshll.u32 [#allocation7], 4
      %s163 = int_to_ptr.vmem [resolvable:$true] %s162
      %165 = dma.hbm_to_vmem [thread:$0]  %s35, 16, %s163, [#allocation8]
    $region73: #{fno_forward.1} parent=1 // pred_fallthru
      _
    // Predicated region
    $region74: #{fno_forward.1} parent=1 // pred_check
      _
    $region75: #{fno_forward.1} parent=1 // pred_check_branch
      %167 = sbr.rel (0) target = $region77
    $region76: #{fno_forward.1} parent=1 // pred_region
      %s169 = ssub.s32 16, 16
      %170 = vsyncadd [#allocation8], %s169
      %s172 = sshll.u32 [#allocation9], 4
      %s173 = int_to_ptr.vmem [resolvable:$true] %s172
      %175 = dma.hbm_to_vmem [thread:$0]  %s37, 16, %s173, [#allocation8]
    $region77: #{fno_forward.1} parent=1 // pred_fallthru
      _
    // Predicated region
    $region78: #{fno_forward.1} parent=1 // pred_check
      _
    $region79: #{fno_forward.1} parent=1 // pred_check_branch
      %177 = sbr.rel (0) target = $region81
    $region80: #{fno_forward.1} parent=1 // pred_region
      %s179 = ssub.s32 16, 16
      %180 = vsyncadd [#allocation11], %s179
      %s182 = sshll.u32 [#allocation10], 4
      %s183 = int_to_ptr.vmem [resolvable:$true] %s182
      %185 = dma.hbm_to_vmem [thread:$0]  %s39, 16, %s183, [#allocation11]
    $region81: #{fno_forward.1} parent=1 // pred_fallthru
      _
    // Predicated region
    $region82: #{fno_forward.1} parent=1 // pred_check
      _
    $region83: #{fno_forward.1} parent=1 // pred_check_branch
      %187 = sbr.rel (0) target = $region85
    $region84: #{fno_forward.1} parent=1 // pred_region
      _
    $region85: #{fno_forward.1} parent=1 // pred_fallthru
      _
    // Predicated region
    $region86: #{fno_forward.1} parent=1 // pred_check
      _
    $region87: #{fno_forward.1} parent=1 // pred_check_branch
      %189 = sbr.rel (0) target = $region89
    $region88: #{fno_forward.1} parent=1 // pred_region
      _
    $region89: #{fno_forward.1} parent=1 // pred_fallthru
      _
    // Predicated region
    $region90: #{fno_forward.1} parent=1 // pred_check
      _
    $region91: #{fno_forward.1} parent=1 // pred_check_branch
      %191 = sbr.rel (0) target = $region93
    $region92: #{fno_forward.1} parent=1 // pred_region
      _
    $region93: #{fno_forward.1} parent=1 // pred_fallthru
      _
    // Predicated region
    $region94: #{fno_forward.1} parent=1 // pred_check
      _
    $region95: #{fno_forward.1} parent=1 // pred_check_branch
      %193 = sbr.rel (0) target = $region97
    $region96: #{fno_forward.1} parent=1 // pred_region
      _
    $region97: #{fno_forward.1} parent=1 // pred_fallthru
      _
    // Predicated region
    $region98: #{fno_forward.1} parent=1 // pred_check
      _
    $region99: #{fno_forward.1} parent=1 // pred_check_branch
      %195 = sbr.rel (0) target = $region101
    $region100: #{fno_forward.1} parent=1 // pred_region
      _
    $region101: #{fno_forward.1} parent=1 // pred_fallthru
      _
    // Predicated region
    $region102: #{fno_forward.1} parent=1 // pred_check
      _
    $region103: #{fno_forward.1} parent=1 // pred_check_branch
      %197 = sbr.rel (0) target = $region105
    $region104: #{fno_forward.1} parent=1 // pred_region
      %s199 = ssub.s32 16, 16
      %200 = vsyncadd [#allocation11], %s199
      %s202 = sshll.u32 [#allocation12], 4
      %s203 = int_to_ptr.vmem [resolvable:$true] %s202
      %205 = dma.hbm_to_vmem [thread:$0]  %s51, 16, %s203, [#allocation11]
    $region105: #{fno_forward.1} parent=1 // pred_fallthru
      _
    // Predicated region
    $region106: #{fno_forward.1} parent=1 // pred_check
      _
    $region107: #{fno_forward.1} parent=1 // pred_check_branch
      %207 = sbr.rel (0) target = $region109
    $region108: #{fno_forward.1} parent=1 // pred_region
      _
    $region109: #{fno_forward.1} parent=1 // pred_fallthru
      _
    // Predicated region
    $region110: #{fno_forward.1} parent=1 // pred_check
      _
    $region111: #{fno_forward.1} parent=1 // pred_check_branch
      %209 = sbr.rel (0) target = $region113
    $region112: #{fno_forward.1} parent=1 // pred_region
      _
    $region113: #{fno_forward.1} parent=1 // pred_fallthru
      _
    // Predicated region
    $region114: #{fno_forward.1} parent=1 // pred_check
      _
    $region115: #{fno_forward.1} parent=1 // pred_check_branch
      %211 = sbr.rel (0) target = $region117
    $region116: #{fno_forward.1} parent=1 // pred_region
      _
    $region117: #{fno_forward.1} parent=1 // pred_fallthru
      _
    // Predicated region
    $region118: #{fno_forward.1} parent=1 // pred_check
      _
    $region119: #{fno_forward.1} parent=1 // pred_check_branch
      %213 = sbr.rel (0) target = $region121
    $region120: #{fno_forward.1} parent=1 // pred_region
      _
    $region121: #{fno_forward.1} parent=1 // pred_fallthru
      _
    // Predicated region
    $region122: #{fno_forward.1} parent=1 // pred_check
      _
    $region123: #{fno_forward.1} parent=1 // pred_check_branch
      %215 = sbr.rel (0) target = $region125
    $region124: #{fno_forward.1} parent=1 // pred_region
      _
    $region125: #{fno_forward.1} parent=1 // pred_fallthru
      _
    // Predicated region
    $region126: #{fno_forward.1} parent=1 // pred_check
      _
    $region127: #{fno_forward.1} parent=1 // pred_check_branch
      %217 = sbr.rel (0) target = $region129
    $region128: #{fno_forward.1} parent=1 // pred_region
      _
    $region129: #{fno_forward.1} parent=1 // pred_fallthru
      _
    // Predicated region
    $region130: #{fno_forward.1} parent=1 // pred_check
      _
    $region131: #{fno_forward.1} parent=1 // pred_check_branch
      %219 = sbr.rel (0) target = $region133
    $region132: #{fno_forward.1} parent=1 // pred_region
      _
    $region133: #{fno_forward.1} parent=1 // pred_fallthru
      _
    // Predicated region
    $region134: #{fno_forward.1} parent=1 // pred_check
      _
    $region135: #{fno_forward.1} parent=1 // pred_check_branch
      %221 = sbr.rel (0) target = $region137
    $region136: #{fno_forward.1} parent=1 // pred_region
      _
    $region137: #{fno_forward.1} parent=1 // pred_fallthru
      _
    // Predicated region
    $region138: #{fno_forward.1} parent=1 // pred_check
      _
    $region139: #{fno_forward.1} parent=1 // pred_check_branch
      %223 = sbr.rel (0) target = $region141
    $region140: #{fno_forward.1} parent=1 // pred_region
      %s225 = ssub.s32 16, 16
      %226 = vsyncadd [#allocation14], %s225
      %s228 = sshll.u32 [#allocation13], 4
      %s229 = int_to_ptr.vmem [resolvable:$true] %s228
      %231 = dma.hbm_to_vmem [thread:$0]  %s69, 16, %s229, [#allocation14]
    $region141: #{fno_forward.1} parent=1 // pred_fallthru
      _
    // Predicated region
    $region142: #{fno_forward.1} parent=1 // pred_check
      _
    $region143: #{fno_forward.1} parent=1 // pred_check_branch
      %233 = sbr.rel (0) target = $region145
    $region144: #{fno_forward.1} parent=1 // pred_region
      _
    $region145: #{fno_forward.1} parent=1 // pred_fallthru
      _
    // Predicated region
    $region146: #{fno_forward.1} parent=1 // pred_check
      _
    $region147: #{fno_forward.1} parent=1 // pred_check_branch
      %235 = sbr.rel (0) target = $region149
    $region148: #{fno_forward.1} parent=1 // pred_region
      %s237 = ssub.s32 16, 16
      %238 = vsyncadd [#allocation14], %s237
      %s240 = sshll.u32 [#allocation15], 4
      %s241 = int_to_ptr.vmem [resolvable:$true] %s240
      %243 = dma.hbm_to_vmem [thread:$0]  %s73, 16, %s241, [#allocation14]
    $region149: #{fno_forward.1} parent=1 // pred_fallthru
      _
    // Predicated region
    $region150: #{fno_forward.1} parent=1 // pred_check
      _
    $region151: #{fno_forward.1} parent=1 // pred_check_branch
      %245 = sbr.rel (0) target = $region153
    $region152: #{fno_forward.1} parent=1 // pred_region
      %s247 = ssub.s32 16, 16
      %248 = vsyncadd [#allocation17], %s247
      %s250 = sshll.u32 [#allocation16], 4
      %s251 = int_to_ptr.vmem [resolvable:$true] %s250
      %253 = dma.hbm_to_vmem [thread:$0]  %s75, 16, %s251, [#allocation17]
    $region153: #{fno_forward.1} parent=1 // pred_fallthru
      _
    // Predicated region
    $region154: #{fno_forward.1} parent=1 // pred_check
      _
    $region155: #{fno_forward.1} parent=1 // pred_check_branch
      %255 = sbr.rel (0) target = $region157
    $region156: #{fno_forward.1} parent=1 // pred_region
      %s257 = ssub.s32 16, 16
      %258 = vsyncadd [#allocation17], %s257
      %s260 = sshll.u32 [#allocation18], 4
      %s261 = int_to_ptr.vmem [resolvable:$true] %s260
      %263 = dma.hbm_to_vmem [thread:$0]  %s77, 16, %s261, [#allocation17]
    $region157: #{fno_forward.1} parent=1 // pred_fallthru
      _
    // Predicated region
    $region158: #{fno_forward.1} parent=1 // pred_check
      _
    $region159: #{fno_forward.1} parent=1 // pred_check_branch
      %265 = sbr.rel (0) target = $region161
    $region160: #{fno_forward.1} parent=1 // pred_region
      _
    $region161: #{fno_forward.1} parent=1 // pred_fallthru
      _
    // Predicated region
    $region162: #{fno_forward.1} parent=1 // pred_check
      _
    $region163: #{fno_forward.1} parent=1 // pred_check_branch
      %267 = sbr.rel (0) target = $region165
    $region164: #{fno_forward.1} parent=1 // pred_region
      _
    $region165: #{fno_forward.1} parent=1 // pred_fallthru
      _
    // Predicated region
    $region166: #{fno_forward.1} parent=1 // pred_check
      _
    $region167: #{fno_forward.1} parent=1 // pred_check_branch
      %269 = sbr.rel (0) target = $region169
    $region168: #{fno_forward.1} parent=1 // pred_region
      _
    $region169: #{fno_forward.1} parent=1 // pred_fallthru
      _
    // Predicated region
    $region170: #{fno_forward.1} parent=1 // pred_check
      _
    $region171: #{fno_forward.1} parent=1 // pred_check_branch
      %271 = sbr.rel (0) target = $region173
    $region172: #{fno_forward.1} parent=1 // pred_region
      _
    $region173: #{fno_forward.1} parent=1 // pred_fallthru
      _
    // Predicated region
    $region174: #{fno_forward.1} parent=1 // pred_check
      _
    $region175: #{fno_forward.1} parent=1 // pred_check_branch
      %273 = sbr.rel (0) target = $region177
    $region176: #{fno_forward.1} parent=1 // pred_region
      %274 = dma.done [#allocation3], 128
    $region177: #{fno_forward.1} parent=1 // pred_fallthru
      _
    // Predicated region
    $region178: #{fno_forward.1} parent=1 // pred_check
      _
    $region179: #{fno_forward.1} parent=1 // pred_check_branch
      %276 = sbr.rel (0) target = $region181
    $region180: #{fno_forward.1} parent=1 // pred_region
      %277 = dma.done [#allocation5], 16
    $region181: #{fno_forward.1} parent=1 // pred_fallthru
      _
    // Predicated region
    $region182: #{fno_forward.1} parent=1 // pred_check
      _
    $region183: #{fno_forward.1} parent=1 // pred_check_branch
      %279 = sbr.rel (0) target = $region185
    $region184: #{fno_forward.1} parent=1 // pred_region
      %280 = dma.done [#allocation5], 16
    $region185: #{fno_forward.1} parent=1 // pred_fallthru
      _
    // Predicated region
    $region186: #{fno_forward.1} parent=1 // pred_check
      _
    $region187: #{fno_forward.1} parent=1 // pred_check_branch
      %282 = sbr.rel (0) target = $region189
    $region188: #{fno_forward.1} parent=1 // pred_region
      %283 = dma.done [#allocation8], 16
    $region189: #{fno_forward.1} parent=1 // pred_fallthru
      _
    // Predicated region
    $region190: #{fno_forward.1} parent=1 // pred_check
      _
    $region191: #{fno_forward.1} parent=1 // pred_check_branch
      %285 = sbr.rel (0) target = $region193
    $region192: #{fno_forward.1} parent=1 // pred_region
      %286 = dma.done [#allocation8], 16
    $region193: #{fno_forward.1} parent=1 // pred_fallthru
      _
    // Predicated region
    $region194: #{fno_forward.1} parent=1 // pred_check
      _
    $region195: #{fno_forward.1} parent=1 // pred_check_branch
      %288 = sbr.rel (0) target = $region197
    $region196: #{fno_forward.1} parent=1 // pred_region
      %289 = dma.done [#allocation11], 16
    $region197: #{fno_forward.1} parent=1 // pred_fallthru
      _
    // Predicated region
    $region198: #{fno_forward.1} parent=1 // pred_check
      _
    $region199: #{fno_forward.1} parent=1 // pred_check_branch
      %291 = sbr.rel (0) target = $region201
    $region200: #{fno_forward.1} parent=1 // pred_region
      %292 = dma.done [#allocation11], 16
    $region201: #{fno_forward.1} parent=1 // pred_fallthru
      _
    // Predicated region
    $region202: #{fno_forward.1} parent=1 // pred_check
      _
    $region203: #{fno_forward.1} parent=1 // pred_check_branch
      %294 = sbr.rel (0) target = $region205
    $region204: #{fno_forward.1} parent=1 // pred_region
      %295 = dma.done [#allocation14], 16
    $region205: #{fno_forward.1} parent=1 // pred_fallthru
      _
    // Predicated region
    $region206: #{fno_forward.1} parent=1 // pred_check
      _
    $region207: #{fno_forward.1} parent=1 // pred_check_branch
      %297 = sbr.rel (0) target = $region209
    $region208: #{fno_forward.1} parent=1 // pred_region
      %298 = dma.done [#allocation14], 16
    $region209: #{fno_forward.1} parent=1 // pred_fallthru
      _
    // Predicated region
    $region210: #{fno_forward.1} parent=1 // pred_check
      _
    $region211: #{fno_forward.1} parent=1 // pred_check_branch
      %300 = sbr.rel (0) target = $region213
    $region212: #{fno_forward.1} parent=1 // pred_region
      %301 = dma.done [#allocation17], 16
    $region213: #{fno_forward.1} parent=1 // pred_fallthru
      _
    // Predicated region
    $region214: #{fno_forward.1} parent=1 // pred_check
      _
    $region215: #{fno_forward.1} parent=1 // pred_check_branch
      %303 = sbr.rel (0) target = $region217
    $region216: #{fno_forward.1} parent=1 // pred_region
      %304 = dma.done [#allocation17], 16
    $region217: #{fno_forward.1} parent=1 // pred_fallthru
      _
    %v305 = vld [vmem:[#allocation2] sm:$0xff]
    %v306 = vld [vmem:[%s3] sm:$0xff]
    %v307 = vld [vmem:[%s3 + $0x8] sm:$0xff]
    %v308 = vld [vmem:[%s3 + $0x10] sm:$0xff]
    %v309 = vld [vmem:[%s3 + $0x18] sm:$0xff]
    %v310 = vld [vmem:[%s5] sm:$0x1]
    %v311 = vld [vmem:[%s7] sm:$0xff]
    %v312 = vld [vmem:[%s7 + $0x8] sm:$0xff]
    %v313 = vld [vmem:[%s7 + $0x10] sm:$0xff]
    %v314 = vld [vmem:[%s7 + $0x18] sm:$0xff]
    %v315 = vld [vmem:[%s7 + $0x20] sm:$0xff]
    %v316 = vld [vmem:[%s7 + $0x28] sm:$0xff]
    %v317 = vld [vmem:[%s7 + $0x30] sm:$0xff]
    %v318 = vld [vmem:[%s7 + $0x38] sm:$0xff]
    %v319 = vld [vmem:[%s7 + $0x40] sm:$0xff]
    %v320 = vld [vmem:[%s7 + $0x48] sm:$0xff]
    %v321 = vld [vmem:[%s7 + $0x50] sm:$0xff]
    %v322 = vld [vmem:[%s7 + $0x58] sm:$0xff]
    %v323 = vld [vmem:[%s7 + $0x60] sm:$0xff]
    %v324 = vld [vmem:[%s7 + $0x68] sm:$0xff]
    %v325 = vld [vmem:[%s7 + $0x70] sm:$0xff]
    %v326 = vld [vmem:[%s7 + $0x78] sm:$0xff]
    %v327 = vld [vmem:[%s9] sm:$0x1]
    %v329 = vlaneseq
    %v330 = vshrl.u32 %v329, 7
    %v331 = vsub.s32 0, %v330
    %v332 = vrot.slane %v310, %v331
    %vm334 = vcmask 261120
    %v336 = vsel %vm334, %v305, 0
    %338 = vmatprep.subr.mxu0 0.0
    %339 = vmatpush1.msra.mxu0 %v306
    %340 = vmatprep.subr.mxu0 0.0
    %341 = vmatpush1.msra.mxu0 %v307
    %342 = vmatprep.subr.mxu0 0.0
    %343 = vmatpush1.msra.mxu0 %v308
    %344 = vmatprep.subr.mxu0 0.0
    %345 = vmatpush1.msra.mxu0 %v309
    %346 = vmatprep.subr.mxu0 0.0
    %347 = vmatpush1.msra.mxu0 0.0
    %348 = vmatprep.subr.mxu0 0.0
    %349 = vmatpush1.msra.mxu0 0.0
    %350 = vmatprep.subr.mxu0 0.0
    %351 = vmatpush1.msra.mxu0 0.0
    %352 = vmatprep.subr.mxu0 0.0
    %353 = vmatpush1.msra.mxu0 0.0
    %354 = vmatprep.subr.mxu0 0.0
    %355 = vmatpush1.msra.mxu0 0.0
    %356 = vmatprep.subr.mxu0 0.0
    %357 = vmatpush1.msra.mxu0 0.0
    %358 = vmatprep.subr.mxu0 0.0
    %359 = vmatpush1.msra.mxu0 0.0
    %360 = vmatprep.subr.mxu0 0.0
    %361 = vmatpush1.msra.mxu0 0.0
    %362 = vmatprep.subr.mxu0 0.0
    %363 = vmatpush1.msra.mxu0 0.0
    %364 = vmatprep.subr.mxu0 0.0
    %365 = vmatpush1.msra.mxu0 0.0
    %366 = vmatprep.subr.mxu0 0.0
    %367 = vmatpush1.msra.mxu0 0.0
    %368 = vmatprep.subr.mxu0 0.0
    %369 = vmatpush1.msra.mxu0 0.0
    %370 = vmatprep.subr.mxu0 0.0
    %371 = vmatpush1.msra.mxu0 0.0
    %372 = vmatprep.subr.mxu0 0.0
    %373 = vmatpush1.msra.mxu0 0.0
    %374 = vmatprep.subr.mxu0 0.0
    %375 = vmatpush1.msra.mxu0 0.0
    %376 = vmatprep.subr.mxu0 0.0
    %377 = vmatpush1.msra.mxu0 0.0
    %378 = vmatprep.subr.mxu0 0.0
    %379 = vmatpush1.msra.mxu0 0.0
    %380 = vmatprep.subr.mxu0 0.0
    %381 = vmatpush1.msra.mxu0 0.0
    %382 = vmatprep.subr.mxu0 0.0
    %383 = vmatpush1.msra.mxu0 0.0
    %384 = vmatprep.subr.mxu0 0.0
    %385 = vmatpush1.msra.mxu0 0.0
    %386 = vmatprep.subr.mxu0 0.0
    %387 = vmatpush1.msra.mxu0 0.0
    %388 = vmatprep.subr.mxu0 0.0
    %389 = vmatpush1.msra.mxu0 0.0
    %390 = vmatprep.subr.mxu0 0.0
    %391 = vmatpush1.msra.mxu0 0.0
    %392 = vmatprep.subr.mxu0 0.0
    %393 = vmatpush1.msra.mxu0 0.0
    %394 = vmatprep.subr.mxu0 0.0
    %395 = vmatpush1.msra.mxu0 0.0
    %396 = vmatprep.subr.mxu0 0.0
    %397 = vmatpush1.msra.mxu0 0.0
    %398 = vmatprep.subr.mxu0 0.0
    %399 = vmatpush1.msra.mxu0 0.0
    %400 = vmatprep.subr.mxu0 0.0
    %401 = vmatpush1.msra.mxu0 0.0
    %402 = vmatprep.mubr.f32.mxu0 0.0
    %403 = vmatmul.mubr.f32.gmra.mrb[0].mxu0 %v336
    %v404 = vpop.f32.mrb[0].mxu0
    %v405 = vadd.f32 %v332, %v404
    %v406 = vpop.f32.mrb[0].mxu0
    %407 = vdwg.mxu0
    %v408 = vtanh.pop %v405
    %v410 = vlaneseq
    %v411 = vshrl.u32 %v410, 7
    %v412 = vsub.s32 0, %v411
    %v413 = vrot.slane %v327, %v412
    %415 = vmatprep.subr.mxu0 0.0
    %416 = vmatpush1.msra.mxu0 %v311
    %417 = vmatprep.subr.mxu0 0.0
    %418 = vmatpush1.msra.mxu0 %v312
    %419 = vmatprep.subr.mxu0 0.0
    %420 = vmatpush1.msra.mxu0 %v313
    %421 = vmatprep.subr.mxu0 0.0
    %422 = vmatpush1.msra.mxu0 %v314
    %423 = vmatprep.subr.mxu0 0.0
    %424 = vmatpush1.msra.mxu0 %v315
    %425 = vmatprep.subr.mxu0 0.0
    %426 = vmatpush1.msra.mxu0 %v316
    %427 = vmatprep.subr.mxu0 0.0
    %428 = vmatpush1.msra.mxu0 %v317
    %429 = vmatprep.subr.mxu0 0.0
    %430 = vmatpush1.msra.mxu0 %v318
    %431 = vmatprep.subr.mxu0 0.0
    %432 = vmatpush1.msra.mxu0 %v319
    %433 = vmatprep.subr.mxu0 0.0
    %434 = vmatpush1.msra.mxu0 %v320
    %435 = vmatprep.subr.mxu0 0.0
    %436 = vmatpush1.msra.mxu0 %v321
    %437 = vmatprep.subr.mxu0 0.0
    %438 = vmatpush1.msra.mxu0 %v322
    %439 = vmatprep.subr.mxu0 0.0
    %440 = vmatpush1.msra.mxu0 %v323
    %441 = vmatprep.subr.mxu0 0.0
    %442 = vmatpush1.msra.mxu0 %v324
    %443 = vmatprep.subr.mxu0 0.0
    %444 = vmatpush1.msra.mxu0 %v325
    %445 = vmatprep.subr.mxu0 0.0
    %446 = vmatpush1.msra.mxu0 %v326
    %447 = vmatprep.subr.mxu0 0.0
    %448 = vmatpush1.msra.mxu0 0.0
    %449 = vmatprep.subr.mxu0 0.0
    %450 = vmatpush1.msra.mxu0 0.0
    %451 = vmatprep.subr.mxu0 0.0
    %452 = vmatpush1.msra.mxu0 0.0
    %453 = vmatprep.subr.mxu0 0.0
    %454 = vmatpush1.msra.mxu0 0.0
    %455 = vmatprep.subr.mxu0 0.0
    %456 = vmatpush1.msra.mxu0 0.0
    %457 = vmatprep.subr.mxu0 0.0
    %458 = vmatpush1.msra.mxu0 0.0
    %459 = vmatprep.subr.mxu0 0.0
    %460 = vmatpush1.msra.mxu0 0.0
    %461 = vmatprep.subr.mxu0 0.0
    %462 = vmatpush1.msra.mxu0 0.0
    %463 = vmatprep.subr.mxu0 0.0
    %464 = vmatpush1.msra.mxu0 0.0
    %465 = vmatprep.subr.mxu0 0.0
    %466 = vmatpush1.msra.mxu0 0.0
    %467 = vmatprep.subr.mxu0 0.0
    %468 = vmatpush1.msra.mxu0 0.0
    %469 = vmatprep.subr.mxu0 0.0
    %470 = vmatpush1.msra.mxu0 0.0
    %471 = vmatprep.subr.mxu0 0.0
    %472 = vmatpush1.msra.mxu0 0.0
    %473 = vmatprep.subr.mxu0 0.0
    %474 = vmatpush1.msra.mxu0 0.0
    %475 = vmatprep.subr.mxu0 0.0
    %476 = vmatpush1.msra.mxu0 0.0
    %477 = vmatprep.subr.mxu0 0.0
    %478 = vmatpush1.msra.mxu0 0.0
    %479 = vmatprep.mubr.f32.mxu0 0.0
    %480 = vmatmul.mubr.f32.gmra.mrb[0].mxu0 %v408
    %v481 = vpop.f32.mrb[0].mxu0
    %v482 = vadd.f32 %v413, %v481
    %v483 = vpop.f32.mrb[0].mxu0
    %484 = vdwg.mxu0
    %v485 = vld [vmem:[%s11] sm:$0xff]
    %v486 = vld [vmem:[%s11 + $0x8] sm:$0xff]
    %v487 = vld [vmem:[%s11 + $0x10] sm:$0xff]
    %v488 = vld [vmem:[%s11 + $0x18] sm:$0xff]
    %v489 = vld [vmem:[%s13] sm:$0x1]
    %v490 = vld [vmem:[%s15] sm:$0xff]
    %v491 = vld [vmem:[%s15 + $0x8] sm:$0xff]
    %v492 = vld [vmem:[%s15 + $0x10] sm:$0xff]
    %v493 = vld [vmem:[%s15 + $0x18] sm:$0xff]
    %v495 = vlaneseq
    %v496 = vshrl.u32 %v495, 7
    %v497 = vsub.s32 0, %v496
    %v498 = vrot.slane %v489, %v497
    %v501 = vsel %vm334, %v482, 0
    %503 = vmatprep.subr.mxu0 0.0
    %504 = vmatpush1.msra.mxu0 %v485
    %505 = vmatprep.subr.mxu0 0.0
    %506 = vmatpush1.msra.mxu0 %v486
    %507 = vmatprep.subr.mxu0 0.0
    %508 = vmatpush1.msra.mxu0 %v487
    %509 = vmatprep.subr.mxu0 0.0
    %510 = vmatpush1.msra.mxu0 %v488
    %511 = vmatprep.subr.mxu0 0.0
    %512 = vmatpush1.msra.mxu0 0.0
    %513 = vmatprep.subr.mxu0 0.0
    %514 = vmatpush1.msra.mxu0 0.0
    %515 = vmatprep.subr.mxu0 0.0
    %516 = vmatpush1.msra.mxu0 0.0
    %517 = vmatprep.subr.mxu0 0.0
    %518 = vmatpush1.msra.mxu0 0.0
    %519 = vmatprep.subr.mxu0 0.0
    %520 = vmatpush1.msra.mxu0 0.0
    %521 = vmatprep.subr.mxu0 0.0
    %522 = vmatpush1.msra.mxu0 0.0
    %523 = vmatprep.subr.mxu0 0.0
    %524 = vmatpush1.msra.mxu0 0.0
    %525 = vmatprep.subr.mxu0 0.0
    %526 = vmatpush1.msra.mxu0 0.0
    %527 = vmatprep.subr.mxu0 0.0
    %528 = vmatpush1.msra.mxu0 0.0
    %529 = vmatprep.subr.mxu0 0.0
    %530 = vmatpush1.msra.mxu0 0.0
    %531 = vmatprep.subr.mxu0 0.0
    %532 = vmatpush1.msra.mxu0 0.0
    %533 = vmatprep.subr.mxu0 0.0
    %534 = vmatpush1.msra.mxu0 0.0
    %535 = vmatprep.subr.mxu0 0.0
    %536 = vmatpush1.msra.mxu0 0.0
    %537 = vmatprep.subr.mxu0 0.0
    %538 = vmatpush1.msra.mxu0 0.0
    %539 = vmatprep.subr.mxu0 0.0
    %540 = vmatpush1.msra.mxu0 0.0
    %541 = vmatprep.subr.mxu0 0.0
    %542 = vmatpush1.msra.mxu0 0.0
    %543 = vmatprep.subr.mxu0 0.0
    %544 = vmatpush1.msra.mxu0 0.0
    %545 = vmatprep.subr.mxu0 0.0
    %546 = vmatpush1.msra.mxu0 0.0
    %547 = vmatprep.subr.mxu0 0.0
    %548 = vmatpush1.msra.mxu0 0.0
    %549 = vmatprep.subr.mxu0 0.0
    %550 = vmatpush1.msra.mxu0 0.0
    %551 = vmatprep.subr.mxu0 0.0
    %552 = vmatpush1.msra.mxu0 0.0
    %553 = vmatprep.subr.mxu0 0.0
    %554 = vmatpush1.msra.mxu0 0.0
    %555 = vmatprep.subr.mxu0 0.0
    %556 = vmatpush1.msra.mxu0 0.0
    %557 = vmatprep.subr.mxu0 0.0
    %558 = vmatpush1.msra.mxu0 0.0
    %559 = vmatprep.subr.mxu0 0.0
    %560 = vmatpush1.msra.mxu0 0.0
    %561 = vmatprep.subr.mxu0 0.0
    %562 = vmatpush1.msra.mxu0 0.0
    %563 = vmatprep.subr.mxu0 0.0
    %564 = vmatpush1.msra.mxu0 0.0
    %565 = vmatprep.subr.mxu0 0.0
    %566 = vmatpush1.msra.mxu0 0.0
    %567 = vmatprep.mubr.f32.mxu0 0.0
    %568 = vmatmul.mubr.f32.gmra.mrb[0].mxu0 %v501
    %v569 = vpop.f32.mrb[0].mxu0
    %v570 = vadd.f32 %v498, %v569
    %v571 = vpop.f32.mrb[0].mxu0
    %572 = vdwg.mxu0
    %573 = vmatprep.subr.mxu0 0.0
    %574 = vmatpush1.msra.mxu0 %v490
    %575 = vmatprep.subr.mxu0 0.0
    %576 = vmatpush1.msra.mxu0 %v491
    %577 = vmatprep.subr.mxu0 0.0
    %578 = vmatpush1.msra.mxu0 %v492
    %579 = vmatprep.subr.mxu0 0.0
    %580 = vmatpush1.msra.mxu0 %v493
    %581 = vmatprep.subr.mxu0 0.0
    %582 = vmatpush1.msra.mxu0 0.0
    %583 = vmatprep.subr.mxu0 0.0
    %584 = vmatpush1.msra.mxu0 0.0
    %585 = vmatprep.subr.mxu0 0.0
    %586 = vmatpush1.msra.mxu0 0.0
    %587 = vmatprep.subr.mxu0 0.0
    %588 = vmatpush1.msra.mxu0 0.0
    %589 = vmatprep.subr.mxu0 0.0
    %590 = vmatpush1.msra.mxu0 0.0
    %591 = vmatprep.subr.mxu0 0.0
    %592 = vmatpush1.msra.mxu0 0.0
    %593 = vmatprep.subr.mxu0 0.0
    %594 = vmatpush1.msra.mxu0 0.0
    %595 = vmatprep.subr.mxu0 0.0
    %596 = vmatpush1.msra.mxu0 0.0
    %597 = vmatprep.subr.mxu0 0.0
    %598 = vmatpush1.msra.mxu0 0.0
    %599 = vmatprep.subr.mxu0 0.0
    %600 = vmatpush1.msra.mxu0 0.0
    %601 = vmatprep.subr.mxu0 0.0
    %602 = vmatpush1.msra.mxu0 0.0
    %603 = vmatprep.subr.mxu0 0.0
    %604 = vmatpush1.msra.mxu0 0.0
    %605 = vmatprep.subr.mxu0 0.0
    %606 = vmatpush1.msra.mxu0 0.0
    %607 = vmatprep.subr.mxu0 0.0
    %608 = vmatpush1.msra.mxu0 0.0
    %609 = vmatprep.subr.mxu0 0.0
    %610 = vmatpush1.msra.mxu0 0.0
    %611 = vmatprep.subr.mxu0 0.0
    %612 = vmatpush1.msra.mxu0 0.0
    %613 = vmatprep.subr.mxu0 0.0
    %614 = vmatpush1.msra.mxu0 0.0
    %615 = vmatprep.subr.mxu0 0.0
    %616 = vmatpush1.msra.mxu0 0.0
    %617 = vmatprep.subr.mxu0 0.0
    %618 = vmatpush1.msra.mxu0 0.0
    %619 = vmatprep.subr.mxu0 0.0
    %620 = vmatpush1.msra.mxu0 0.0
    %621 = vmatprep.subr.mxu0 0.0
    %622 = vmatpush1.msra.mxu0 0.0
    %623 = vmatprep.subr.mxu0 0.0
    %624 = vmatpush1.msra.mxu0 0.0
    %625 = vmatprep.subr.mxu0 0.0
    %626 = vmatpush1.msra.mxu0 0.0
    %627 = vmatprep.subr.mxu0 0.0
    %628 = vmatpush1.msra.mxu0 0.0
    %629 = vmatprep.subr.mxu0 0.0
    %630 = vmatpush1.msra.mxu0 0.0
    %631 = vmatprep.subr.mxu0 0.0
    %632 = vmatpush1.msra.mxu0 0.0
    %633 = vmatprep.subr.mxu0 0.0
    %634 = vmatpush1.msra.mxu0 0.0
    %635 = vmatprep.subr.mxu0 0.0
    %636 = vmatpush1.msra.mxu0 0.0
    %637 = vmatprep.mubr.f32.mxu0 0.0
    %638 = vmatmul.mubr.f32.gmra.mrb[0].mxu0 %v501
    %v639 = vpop.f32.mrb[0].mxu0
    %v640 = vadd.f32 0.0, %v639
    %v641 = vpop.f32.mrb[0].mxu0
    %642 = vdwg.mxu0
    %v643 = vadd.f32 %v570, %v640
    %v644 = vmul.f32 %v643, 0.5
    %v645 = vmul.f32 %v643, 0.70710677
    %vm646 = vcmp.ge.f32.partialorder %v645, 0.0
    %v647 = vsel %vm646, 1.0, -1.0
    %v648 = vand.u32 2147483647, %v645
    %v649 = vmul.f32 %v648, 0.3275911
    %v650 = vadd.f32 %v649, 1.0
    %v651 = vrcp.pop %v650
    %v652 = vmul.f32 1.0, %v651
    %v653 = vmul.f32 %v652, 1.0614054
    %v654 = vadd.f32 %v653, -1.4531521
    %v655 = vmul.f32 %v654, %v652
    %v656 = vadd.f32 %v655, 1.4214138
    %v657 = vmul.f32 %v656, %v652
    %v658 = vadd.f32 %v657, -0.28449672
    %v659 = vmul.f32 %v658, %v652
    %v660 = vadd.f32 %v659, 0.2548296
    %v661 = vmul.f32 %v660, %v652
    %v662 = vsub.f32 0.0, %v648
    %v663 = vmul.f32 %v662, %v648
    %v664 = vmul.f32 %v663, 1.442695
    %v665 = vpow.pop %v664
    %v666 = vmul.f32 %v661, %v665
    %v667 = vsub.f32 1.0, %v666
    %v668 = vmul.f32 %v647, %v667
    %v669 = vadd.f32 %v668, 1.0
    %v670 = vmul.f32 %v644, %v669
    %v671 = vld [vmem:[%s17] sm:$0xff]
    %v672 = vld [vmem:[%s17 + $0x8] sm:$0xff]
    %v673 = vld [vmem:[%s17 + $0x10] sm:$0xff]
    %v674 = vld [vmem:[%s17 + $0x18] sm:$0xff]
    %v675 = vld [vmem:[%s19] sm:$0x1]
    %v676 = vld [vmem:[%s21] sm:$0xff]
    %v677 = vld [vmem:[%s21 + $0x8] sm:$0xff]
    %v678 = vld [vmem:[%s21 + $0x10] sm:$0xff]
    %v679 = vld [vmem:[%s21 + $0x18] sm:$0xff]
    %v681 = vlaneseq
    %v682 = vshrl.u32 %v681, 7
    %v683 = vsub.s32 0, %v682
    %v684 = vrot.slane %v675, %v683
    %v687 = vsel %vm334, %v670, 0
    %689 = vmatprep.subr.mxu0 0.0
    %690 = vmatpush1.msra.mxu0 %v671
    %691 = vmatprep.subr.mxu0 0.0
    %692 = vmatpush1.msra.mxu0 %v672
    %693 = vmatprep.subr.mxu0 0.0
    %694 = vmatpush1.msra.mxu0 %v673
    %695 = vmatprep.subr.mxu0 0.0
    %696 = vmatpush1.msra.mxu0 %v674
    %697 = vmatprep.subr.mxu0 0.0
    %698 = vmatpush1.msra.mxu0 0.0
    %699 = vmatprep.subr.mxu0 0.0
    %700 = vmatpush1.msra.mxu0 0.0
    %701 = vmatprep.subr.mxu0 0.0
    %702 = vmatpush1.msra.mxu0 0.0
    %703 = vmatprep.subr.mxu0 0.0
    %704 = vmatpush1.msra.mxu0 0.0
    %705 = vmatprep.subr.mxu0 0.0
    %706 = vmatpush1.msra.mxu0 0.0
    %707 = vmatprep.subr.mxu0 0.0
    %708 = vmatpush1.msra.mxu0 0.0
    %709 = vmatprep.subr.mxu0 0.0
    %710 = vmatpush1.msra.mxu0 0.0
    %711 = vmatprep.subr.mxu0 0.0
    %712 = vmatpush1.msra.mxu0 0.0
    %713 = vmatprep.subr.mxu0 0.0
    %714 = vmatpush1.msra.mxu0 0.0
    %715 = vmatprep.subr.mxu0 0.0
    %716 = vmatpush1.msra.mxu0 0.0
    %717 = vmatprep.subr.mxu0 0.0
    %718 = vmatpush1.msra.mxu0 0.0
    %719 = vmatprep.subr.mxu0 0.0
    %720 = vmatpush1.msra.mxu0 0.0
    %721 = vmatprep.subr.mxu0 0.0
    %722 = vmatpush1.msra.mxu0 0.0
    %723 = vmatprep.subr.mxu0 0.0
    %724 = vmatpush1.msra.mxu0 0.0
    %725 = vmatprep.subr.mxu0 0.0
    %726 = vmatpush1.msra.mxu0 0.0
    %727 = vmatprep.subr.mxu0 0.0
    %728 = vmatpush1.msra.mxu0 0.0
    %729 = vmatprep.subr.mxu0 0.0
    %730 = vmatpush1.msra.mxu0 0.0
    %731 = vmatprep.subr.mxu0 0.0
    %732 = vmatpush1.msra.mxu0 0.0
    %733 = vmatprep.subr.mxu0 0.0
    %734 = vmatpush1.msra.mxu0 0.0
    %735 = vmatprep.subr.mxu0 0.0
    %736 = vmatpush1.msra.mxu0 0.0
    %737 = vmatprep.subr.mxu0 0.0
    %738 = vmatpush1.msra.mxu0 0.0
    %739 = vmatprep.subr.mxu0 0.0
    %740 = vmatpush1.msra.mxu0 0.0
    %741 = vmatprep.subr.mxu0 0.0
    %742 = vmatpush1.msra.mxu0 0.0
    %743 = vmatprep.subr.mxu0 0.0
    %744 = vmatpush1.msra.mxu0 0.0
    %745 = vmatprep.subr.mxu0 0.0
    %746 = vmatpush1.msra.mxu0 0.0
    %747 = vmatprep.subr.mxu0 0.0
    %748 = vmatpush1.msra.mxu0 0.0
    %749 = vmatprep.subr.mxu0 0.0
    %750 = vmatpush1.msra.mxu0 0.0
    %751 = vmatprep.subr.mxu0 0.0
    %752 = vmatpush1.msra.mxu0 0.0
    %753 = vmatprep.mubr.f32.mxu0 0.0
    %754 = vmatmul.mubr.f32.gmra.mrb[0].mxu0 %v687
    %v755 = vpop.f32.mrb[0].mxu0
    %v756 = vadd.f32 %v684, %v755
    %v757 = vpop.f32.mrb[0].mxu0
    %758 = vdwg.mxu0
    %759 = vmatprep.subr.mxu0 0.0
    %760 = vmatpush1.msra.mxu0 %v676
    %761 = vmatprep.subr.mxu0 0.0
    %762 = vmatpush1.msra.mxu0 %v677
    %763 = vmatprep.subr.mxu0 0.0
    %764 = vmatpush1.msra.mxu0 %v678
    %765 = vmatprep.subr.mxu0 0.0
    %766 = vmatpush1.msra.mxu0 %v679
    %767 = vmatprep.subr.mxu0 0.0
    %768 = vmatpush1.msra.mxu0 0.0
    %769 = vmatprep.subr.mxu0 0.0
    %770 = vmatpush1.msra.mxu0 0.0
    %771 = vmatprep.subr.mxu0 0.0
    %772 = vmatpush1.msra.mxu0 0.0
    %773 = vmatprep.subr.mxu0 0.0
    %774 = vmatpush1.msra.mxu0 0.0
    %775 = vmatprep.subr.mxu0 0.0
    %776 = vmatpush1.msra.mxu0 0.0
    %777 = vmatprep.subr.mxu0 0.0
    %778 = vmatpush1.msra.mxu0 0.0
    %779 = vmatprep.subr.mxu0 0.0
    %780 = vmatpush1.msra.mxu0 0.0
    %781 = vmatprep.subr.mxu0 0.0
    %782 = vmatpush1.msra.mxu0 0.0
    %783 = vmatprep.subr.mxu0 0.0
    %784 = vmatpush1.msra.mxu0 0.0
    %785 = vmatprep.subr.mxu0 0.0
    %786 = vmatpush1.msra.mxu0 0.0
    %787 = vmatprep.subr.mxu0 0.0
    %788 = vmatpush1.msra.mxu0 0.0
    %789 = vmatprep.subr.mxu0 0.0
    %790 = vmatpush1.msra.mxu0 0.0
    %791 = vmatprep.subr.mxu0 0.0
    %792 = vmatpush1.msra.mxu0 0.0
    %793 = vmatprep.subr.mxu0 0.0
    %794 = vmatpush1.msra.mxu0 0.0
    %795 = vmatprep.subr.mxu0 0.0
    %796 = vmatpush1.msra.mxu0 0.0
    %797 = vmatprep.subr.mxu0 0.0
    %798 = vmatpush1.msra.mxu0 0.0
    %799 = vmatprep.subr.mxu0 0.0
    %800 = vmatpush1.msra.mxu0 0.0
    %801 = vmatprep.subr.mxu0 0.0
    %802 = vmatpush1.msra.mxu0 0.0
    %803 = vmatprep.subr.mxu0 0.0
    %804 = vmatpush1.msra.mxu0 0.0
    %805 = vmatprep.subr.mxu0 0.0
    %806 = vmatpush1.msra.mxu0 0.0
    %807 = vmatprep.subr.mxu0 0.0
    %808 = vmatpush1.msra.mxu0 0.0
    %809 = vmatprep.subr.mxu0 0.0
    %810 = vmatpush1.msra.mxu0 0.0
    %811 = vmatprep.subr.mxu0 0.0
    %812 = vmatpush1.msra.mxu0 0.0
    %813 = vmatprep.subr.mxu0 0.0
    %814 = vmatpush1.msra.mxu0 0.0
    %815 = vmatprep.subr.mxu0 0.0
    %816 = vmatpush1.msra.mxu0 0.0
    %817 = vmatprep.subr.mxu0 0.0
    %818 = vmatpush1.msra.mxu0 0.0
    %819 = vmatprep.subr.mxu0 0.0
    %820 = vmatpush1.msra.mxu0 0.0
    %821 = vmatprep.subr.mxu0 0.0
    %822 = vmatpush1.msra.mxu0 0.0
    %823 = vmatprep.mubr.f32.mxu0 0.0
    %824 = vmatmul.mubr.f32.gmra.mrb[0].mxu0 %v687
    %v825 = vpop.f32.mrb[0].mxu0
    %v826 = vadd.f32 0.0, %v825
    %v827 = vpop.f32.mrb[0].mxu0
    %828 = vdwg.mxu0
    %v829 = vadd.f32 %v756, %v826
    %v830 = vmul.f32 %v829, 0.5
    %v831 = vmul.f32 %v829, 0.70710677
    %vm832 = vcmp.ge.f32.partialorder %v831, 0.0
    %v833 = vsel %vm832, 1.0, -1.0
    %v834 = vand.u32 2147483647, %v831
    %v835 = vmul.f32 %v834, 0.3275911
    %v836 = vadd.f32 %v835, 1.0
    %v837 = vrcp.pop %v836
    %v838 = vmul.f32 1.0, %v837
    %v839 = vmul.f32 %v838, 1.0614054
    %v840 = vadd.f32 %v839, -1.4531521
    %v841 = vmul.f32 %v840, %v838
    %v842 = vadd.f32 %v841, 1.4214138
    %v843 = vmul.f32 %v842, %v838
    %v844 = vadd.f32 %v843, -0.28449672
    %v845 = vmul.f32 %v844, %v838
    %v846 = vadd.f32 %v845, 0.2548296
    %v847 = vmul.f32 %v846, %v838
    %v848 = vsub.f32 0.0, %v834
    %v849 = vmul.f32 %v848, %v834
    %v850 = vmul.f32 %v849, 1.442695
    %v851 = vpow.pop %v850
    %v852 = vmul.f32 %v847, %v851
    %v853 = vsub.f32 1.0, %v852
    %v854 = vmul.f32 %v833, %v853
    %v855 = vadd.f32 %v854, 1.0
    %v856 = vmul.f32 %v830, %v855
    %v857 = vld [vmem:[%s23] sm:$0xff]
    %v858 = vld [vmem:[%s23 + $0x8] sm:$0xff]
    %v859 = vld [vmem:[%s23 + $0x10] sm:$0xff]
    %v860 = vld [vmem:[%s23 + $0x18] sm:$0xff]
    %v861 = vld [vmem:[#allocation4] sm:$0x1]
    %v862 = vld [vmem:[%s27] sm:$0xff]
    %v863 = vld [vmem:[%s27 + $0x8] sm:$0xff]
    %v864 = vld [vmem:[%s27 + $0x10] sm:$0xff]
    %v865 = vld [vmem:[%s27 + $0x18] sm:$0xff]
    %v867 = vlaneseq
    %v868 = vshrl.u32 %v867, 7
    %v869 = vsub.s32 0, %v868
    %v870 = vrot.slane %v861, %v869
    %v873 = vsel %vm334, %v856, 0
    %875 = vmatprep.subr.mxu0 0.0
    %876 = vmatpush1.msra.mxu0 %v857
    %877 = vmatprep.subr.mxu0 0.0
    %878 = vmatpush1.msra.mxu0 %v858
    %879 = vmatprep.subr.mxu0 0.0
    %880 = vmatpush1.msra.mxu0 %v859
    %881 = vmatprep.subr.mxu0 0.0
    %882 = vmatpush1.msra.mxu0 %v860
    %883 = vmatprep.subr.mxu0 0.0
    %884 = vmatpush1.msra.mxu0 0.0
    %885 = vmatprep.subr.mxu0 0.0
    %886 = vmatpush1.msra.mxu0 0.0
    %887 = vmatprep.subr.mxu0 0.0
    %888 = vmatpush1.msra.mxu0 0.0
    %889 = vmatprep.subr.mxu0 0.0
    %890 = vmatpush1.msra.mxu0 0.0
    %891 = vmatprep.subr.mxu0 0.0
    %892 = vmatpush1.msra.mxu0 0.0
    %893 = vmatprep.subr.mxu0 0.0
    %894 = vmatpush1.msra.mxu0 0.0
    %895 = vmatprep.subr.mxu0 0.0
    %896 = vmatpush1.msra.mxu0 0.0
    %897 = vmatprep.subr.mxu0 0.0
    %898 = vmatpush1.msra.mxu0 0.0
    %899 = vmatprep.subr.mxu0 0.0
    %900 = vmatpush1.msra.mxu0 0.0
    %901 = vmatprep.subr.mxu0 0.0
    %902 = vmatpush1.msra.mxu0 0.0
    %903 = vmatprep.subr.mxu0 0.0
    %904 = vmatpush1.msra.mxu0 0.0
    %905 = vmatprep.subr.mxu0 0.0
    %906 = vmatpush1.msra.mxu0 0.0
    %907 = vmatprep.subr.mxu0 0.0
    %908 = vmatpush1.msra.mxu0 0.0
    %909 = vmatprep.subr.mxu0 0.0
    %910 = vmatpush1.msra.mxu0 0.0
    %911 = vmatprep.subr.mxu0 0.0
    %912 = vmatpush1.msra.mxu0 0.0
    %913 = vmatprep.subr.mxu0 0.0
    %914 = vmatpush1.msra.mxu0 0.0
    %915 = vmatprep.subr.mxu0 0.0
    %916 = vmatpush1.msra.mxu0 0.0
    %917 = vmatprep.subr.mxu0 0.0
    %918 = vmatpush1.msra.mxu0 0.0
    %919 = vmatprep.subr.mxu0 0.0
    %920 = vmatpush1.msra.mxu0 0.0
    %921 = vmatprep.subr.mxu0 0.0
    %922 = vmatpush1.msra.mxu0 0.0
    %923 = vmatprep.subr.mxu0 0.0
    %924 = vmatpush1.msra.mxu0 0.0
    %925 = vmatprep.subr.mxu0 0.0
    %926 = vmatpush1.msra.mxu0 0.0
    %927 = vmatprep.subr.mxu0 0.0
    %928 = vmatpush1.msra.mxu0 0.0
    %929 = vmatprep.subr.mxu0 0.0
    %930 = vmatpush1.msra.mxu0 0.0
    %931 = vmatprep.subr.mxu0 0.0
    %932 = vmatpush1.msra.mxu0 0.0
    %933 = vmatprep.subr.mxu0 0.0
    %934 = vmatpush1.msra.mxu0 0.0
    %935 = vmatprep.subr.mxu0 0.0
    %936 = vmatpush1.msra.mxu0 0.0
    %937 = vmatprep.subr.mxu0 0.0
    %938 = vmatpush1.msra.mxu0 0.0
    %939 = vmatprep.mubr.f32.mxu0 0.0
    %940 = vmatmul.mubr.f32.gmra.mrb[0].mxu0 %v873
    %v941 = vpop.f32.mrb[0].mxu0
    %v942 = vadd.f32 %v870, %v941
    %v943 = vpop.f32.mrb[0].mxu0
    %944 = vdwg.mxu0
    %945 = vmatprep.subr.mxu0 0.0
    %946 = vmatpush1.msra.mxu0 %v862
    %947 = vmatprep.subr.mxu0 0.0
    %948 = vmatpush1.msra.mxu0 %v863
    %949 = vmatprep.subr.mxu0 0.0
    %950 = vmatpush1.msra.mxu0 %v864
    %951 = vmatprep.subr.mxu0 0.0
    %952 = vmatpush1.msra.mxu0 %v865
    %953 = vmatprep.subr.mxu0 0.0
    %954 = vmatpush1.msra.mxu0 0.0
    %955 = vmatprep.subr.mxu0 0.0
    %956 = vmatpush1.msra.mxu0 0.0
    %957 = vmatprep.subr.mxu0 0.0
    %958 = vmatpush1.msra.mxu0 0.0
    %959 = vmatprep.subr.mxu0 0.0
    %960 = vmatpush1.msra.mxu0 0.0
    %961 = vmatprep.subr.mxu0 0.0
    %962 = vmatpush1.msra.mxu0 0.0
    %963 = vmatprep.subr.mxu0 0.0
    %964 = vmatpush1.msra.mxu0 0.0
    %965 = vmatprep.subr.mxu0 0.0
    %966 = vmatpush1.msra.mxu0 0.0
    %967 = vmatprep.subr.mxu0 0.0
    %968 = vmatpush1.msra.mxu0 0.0
    %969 = vmatprep.subr.mxu0 0.0
    %970 = vmatpush1.msra.mxu0 0.0
    %971 = vmatprep.subr.mxu0 0.0
    %972 = vmatpush1.msra.mxu0 0.0
    %973 = vmatprep.subr.mxu0 0.0
    %974 = vmatpush1.msra.mxu0 0.0
    %975 = vmatprep.subr.mxu0 0.0
    %976 = vmatpush1.msra.mxu0 0.0
    %977 = vmatprep.subr.mxu0 0.0
    %978 = vmatpush1.msra.mxu0 0.0
    %979 = vmatprep.subr.mxu0 0.0
    %980 = vmatpush1.msra.mxu0 0.0
    %981 = vmatprep.subr.mxu0 0.0
    %982 = vmatpush1.msra.mxu0 0.0
    %983 = vmatprep.subr.mxu0 0.0
    %984 = vmatpush1.msra.mxu0 0.0
    %985 = vmatprep.subr.mxu0 0.0
    %986 = vmatpush1.msra.mxu0 0.0
    %987 = vmatprep.subr.mxu0 0.0
    %988 = vmatpush1.msra.mxu0 0.0
    %989 = vmatprep.subr.mxu0 0.0
    %990 = vmatpush1.msra.mxu0 0.0
    %991 = vmatprep.subr.mxu0 0.0
    %992 = vmatpush1.msra.mxu0 0.0
    %993 = vmatprep.subr.mxu0 0.0
    %994 = vmatpush1.msra.mxu0 0.0
    %995 = vmatprep.subr.mxu0 0.0
    %996 = vmatpush1.msra.mxu0 0.0
    %997 = vmatprep.subr.mxu0 0.0
    %998 = vmatpush1.msra.mxu0 0.0
    %999 = vmatprep.subr.mxu0 0.0
    %1000 = vmatpush1.msra.mxu0 0.0
    %1001 = vmatprep.subr.mxu0 0.0
    %1002 = vmatpush1.msra.mxu0 0.0
    %1003 = vmatprep.subr.mxu0 0.0
    %1004 = vmatpush1.msra.mxu0 0.0
    %1005 = vmatprep.subr.mxu0 0.0
    %1006 = vmatpush1.msra.mxu0 0.0
    %1007 = vmatprep.subr.mxu0 0.0
    %1008 = vmatpush1.msra.mxu0 0.0
    %1009 = vmatprep.mubr.f32.mxu0 0.0
    %1010 = vmatmul.mubr.f32.gmra.mrb[0].mxu0 %v873
    %v1011 = vpop.f32.mrb[0].mxu0
    %v1012 = vadd.f32 0.0, %v1011
    %v1013 = vpop.f32.mrb[0].mxu0
    %1014 = vdwg.mxu0
    %v1015 = vadd.f32 %v942, %v1012
    %v1016 = vmul.f32 %v1015, 0.5
    %v1017 = vmul.f32 %v1015, 0.70710677
    %vm1018 = vcmp.ge.f32.partialorder %v1017, 0.0
    %v1019 = vsel %vm1018, 1.0, -1.0
    %v1020 = vand.u32 2147483647, %v1017
    %v1021 = vmul.f32 %v1020, 0.3275911
    %v1022 = vadd.f32 %v1021, 1.0
    %v1023 = vrcp.pop %v1022
    %v1024 = vmul.f32 1.0, %v1023
    %v1025 = vmul.f32 %v1024, 1.0614054
    %v1026 = vadd.f32 %v1025, -1.4531521
    %v1027 = vmul.f32 %v1026, %v1024
    %v1028 = vadd.f32 %v1027, 1.4214138
    %v1029 = vmul.f32 %v1028, %v1024
    %v1030 = vadd.f32 %v1029, -0.28449672
    %v1031 = vmul.f32 %v1030, %v1024
    %v1032 = vadd.f32 %v1031, 0.2548296
    %v1033 = vmul.f32 %v1032, %v1024
    %v1034 = vsub.f32 0.0, %v1020
    %v1035 = vmul.f32 %v1034, %v1020
    %v1036 = vmul.f32 %v1035, 1.442695
    %v1037 = vpow.pop %v1036
    %v1038 = vmul.f32 %v1033, %v1037
    %v1039 = vsub.f32 1.0, %v1038
    %v1040 = vmul.f32 %v1019, %v1039
    %v1041 = vadd.f32 %v1040, 1.0
    %v1042 = vmul.f32 %v1016, %v1041
    %v1043 = vld [vmem:[%s29] sm:$0xff]
    %v1044 = vld [vmem:[%s29 + $0x8] sm:$0xff]
    %v1045 = vld [vmem:[%s29 + $0x10] sm:$0xff]
    %v1046 = vld [vmem:[%s29 + $0x18] sm:$0xff]
    %v1047 = vld [vmem:[#allocation6] sm:$0x1]
    %v1048 = vld [vmem:[%s33] sm:$0xff]
    %v1049 = vld [vmem:[%s33 + $0x8] sm:$0xff]
    %v1050 = vld [vmem:[%s33 + $0x10] sm:$0xff]
    %v1051 = vld [vmem:[%s33 + $0x18] sm:$0xff]
    %v1052 = vld [vmem:[%s33 + $0x20] sm:$0xff]
    %v1053 = vld [vmem:[%s33 + $0x28] sm:$0xff]
    %v1054 = vld [vmem:[%s33 + $0x30] sm:$0xff]
    %v1055 = vld [vmem:[%s33 + $0x38] sm:$0xff]
    %v1056 = vld [vmem:[%s33 + $0x40] sm:$0xff]
    %v1057 = vld [vmem:[%s33 + $0x48] sm:$0xff]
    %v1058 = vld [vmem:[%s33 + $0x50] sm:$0xff]
    %v1059 = vld [vmem:[%s33 + $0x58] sm:$0xff]
    %v1060 = vld [vmem:[%s33 + $0x60] sm:$0xff]
    %v1061 = vld [vmem:[%s33 + $0x68] sm:$0xff]
    %v1062 = vld [vmem:[%s33 + $0x70] sm:$0xff]
    %v1063 = vld [vmem:[%s33 + $0x78] sm:$0xff]
    %v1064 = vld [vmem:[#allocation7] sm:$0x1]
    %v1066 = vlaneseq
    %v1067 = vshrl.u32 %v1066, 7
    %v1068 = vsub.s32 0, %v1067
    %v1069 = vrot.slane %v1047, %v1068
    %v1072 = vsel %vm334, %v1042, 0
    %1074 = vmatprep.subr.mxu0 0.0
    %1075 = vmatpush1.msra.mxu0 %v1043
    %1076 = vmatprep.subr.mxu0 0.0
    %1077 = vmatpush1.msra.mxu0 %v1044
    %1078 = vmatprep.subr.mxu0 0.0
    %1079 = vmatpush1.msra.mxu0 %v1045
    %1080 = vmatprep.subr.mxu0 0.0
    %1081 = vmatpush1.msra.mxu0 %v1046
    %1082 = vmatprep.subr.mxu0 0.0
    %1083 = vmatpush1.msra.mxu0 0.0
    %1084 = vmatprep.subr.mxu0 0.0
    %1085 = vmatpush1.msra.mxu0 0.0
    %1086 = vmatprep.subr.mxu0 0.0
    %1087 = vmatpush1.msra.mxu0 0.0
    %1088 = vmatprep.subr.mxu0 0.0
    %1089 = vmatpush1.msra.mxu0 0.0
    %1090 = vmatprep.subr.mxu0 0.0
    %1091 = vmatpush1.msra.mxu0 0.0
    %1092 = vmatprep.subr.mxu0 0.0
    %1093 = vmatpush1.msra.mxu0 0.0
    %1094 = vmatprep.subr.mxu0 0.0
    %1095 = vmatpush1.msra.mxu0 0.0
    %1096 = vmatprep.subr.mxu0 0.0
    %1097 = vmatpush1.msra.mxu0 0.0
    %1098 = vmatprep.subr.mxu0 0.0
    %1099 = vmatpush1.msra.mxu0 0.0
    %1100 = vmatprep.subr.mxu0 0.0
    %1101 = vmatpush1.msra.mxu0 0.0
    %1102 = vmatprep.subr.mxu0 0.0
    %1103 = vmatpush1.msra.mxu0 0.0
    %1104 = vmatprep.subr.mxu0 0.0
    %1105 = vmatpush1.msra.mxu0 0.0
    %1106 = vmatprep.subr.mxu0 0.0
    %1107 = vmatpush1.msra.mxu0 0.0
    %1108 = vmatprep.subr.mxu0 0.0
    %1109 = vmatpush1.msra.mxu0 0.0
    %1110 = vmatprep.subr.mxu0 0.0
    %1111 = vmatpush1.msra.mxu0 0.0
    %1112 = vmatprep.subr.mxu0 0.0
    %1113 = vmatpush1.msra.mxu0 0.0
    %1114 = vmatprep.subr.mxu0 0.0
    %1115 = vmatpush1.msra.mxu0 0.0
    %1116 = vmatprep.subr.mxu0 0.0
    %1117 = vmatpush1.msra.mxu0 0.0
    %1118 = vmatprep.subr.mxu0 0.0
    %1119 = vmatpush1.msra.mxu0 0.0
    %1120 = vmatprep.subr.mxu0 0.0
    %1121 = vmatpush1.msra.mxu0 0.0
    %1122 = vmatprep.subr.mxu0 0.0
    %1123 = vmatpush1.msra.mxu0 0.0
    %1124 = vmatprep.subr.mxu0 0.0
    %1125 = vmatpush1.msra.mxu0 0.0
    %1126 = vmatprep.subr.mxu0 0.0
    %1127 = vmatpush1.msra.mxu0 0.0
    %1128 = vmatprep.subr.mxu0 0.0
    %1129 = vmatpush1.msra.mxu0 0.0
    %1130 = vmatprep.subr.mxu0 0.0
    %1131 = vmatpush1.msra.mxu0 0.0
    %1132 = vmatprep.subr.mxu0 0.0
    %1133 = vmatpush1.msra.mxu0 0.0
    %1134 = vmatprep.subr.mxu0 0.0
    %1135 = vmatpush1.msra.mxu0 0.0
    %1136 = vmatprep.subr.mxu0 0.0
    %1137 = vmatpush1.msra.mxu0 0.0
    %1138 = vmatprep.mubr.f32.mxu0 0.0
    %1139 = vmatmul.mubr.f32.gmra.mrb[0].mxu0 %v1072
    %v1140 = vpop.f32.mrb[0].mxu0
    %v1141 = vadd.f32 %v1069, %v1140
    %v1142 = vpop.f32.mrb[0].mxu0
    %1143 = vdwg.mxu0
    %v1144 = vtanh.pop %v1141
    %v1146 = vlaneseq
    %v1147 = vshrl.u32 %v1146, 7
    %v1148 = vsub.s32 0, %v1147
    %v1149 = vrot.slane %v1064, %v1148
    %1151 = vmatprep.subr.mxu0 0.0
    %1152 = vmatpush1.msra.mxu0 %v1048
    %1153 = vmatprep.subr.mxu0 0.0
    %1154 = vmatpush1.msra.mxu0 %v1049
    %1155 = vmatprep.subr.mxu0 0.0
    %1156 = vmatpush1.msra.mxu0 %v1050
    %1157 = vmatprep.subr.mxu0 0.0
    %1158 = vmatpush1.msra.mxu0 %v1051
    %1159 = vmatprep.subr.mxu0 0.0
    %1160 = vmatpush1.msra.mxu0 %v1052
    %1161 = vmatprep.subr.mxu0 0.0
    %1162 = vmatpush1.msra.mxu0 %v1053
    %1163 = vmatprep.subr.mxu0 0.0
    %1164 = vmatpush1.msra.mxu0 %v1054
    %1165 = vmatprep.subr.mxu0 0.0
    %1166 = vmatpush1.msra.mxu0 %v1055
    %1167 = vmatprep.subr.mxu0 0.0
    %1168 = vmatpush1.msra.mxu0 %v1056
    %1169 = vmatprep.subr.mxu0 0.0
    %1170 = vmatpush1.msra.mxu0 %v1057
    %1171 = vmatprep.subr.mxu0 0.0
    %1172 = vmatpush1.msra.mxu0 %v1058
    %1173 = vmatprep.subr.mxu0 0.0
    %1174 = vmatpush1.msra.mxu0 %v1059
    %1175 = vmatprep.subr.mxu0 0.0
    %1176 = vmatpush1.msra.mxu0 %v1060
    %1177 = vmatprep.subr.mxu0 0.0
    %1178 = vmatpush1.msra.mxu0 %v1061
    %1179 = vmatprep.subr.mxu0 0.0
    %1180 = vmatpush1.msra.mxu0 %v1062
    %1181 = vmatprep.subr.mxu0 0.0
    %1182 = vmatpush1.msra.mxu0 %v1063
    %1183 = vmatprep.subr.mxu0 0.0
    %1184 = vmatpush1.msra.mxu0 0.0
    %1185 = vmatprep.subr.mxu0 0.0
    %1186 = vmatpush1.msra.mxu0 0.0
    %1187 = vmatprep.subr.mxu0 0.0
    %1188 = vmatpush1.msra.mxu0 0.0
    %1189 = vmatprep.subr.mxu0 0.0
    %1190 = vmatpush1.msra.mxu0 0.0
    %1191 = vmatprep.subr.mxu0 0.0
    %1192 = vmatpush1.msra.mxu0 0.0
    %1193 = vmatprep.subr.mxu0 0.0
    %1194 = vmatpush1.msra.mxu0 0.0
    %1195 = vmatprep.subr.mxu0 0.0
    %1196 = vmatpush1.msra.mxu0 0.0
    %1197 = vmatprep.subr.mxu0 0.0
    %1198 = vmatpush1.msra.mxu0 0.0
    %1199 = vmatprep.subr.mxu0 0.0
    %1200 = vmatpush1.msra.mxu0 0.0
    %1201 = vmatprep.subr.mxu0 0.0
    %1202 = vmatpush1.msra.mxu0 0.0
    %1203 = vmatprep.subr.mxu0 0.0
    %1204 = vmatpush1.msra.mxu0 0.0
    %1205 = vmatprep.subr.mxu0 0.0
    %1206 = vmatpush1.msra.mxu0 0.0
    %1207 = vmatprep.subr.mxu0 0.0
    %1208 = vmatpush1.msra.mxu0 0.0
    %1209 = vmatprep.subr.mxu0 0.0
    %1210 = vmatpush1.msra.mxu0 0.0
    %1211 = vmatprep.subr.mxu0 0.0
    %1212 = vmatpush1.msra.mxu0 0.0
    %1213 = vmatprep.subr.mxu0 0.0
    %1214 = vmatpush1.msra.mxu0 0.0
    %1215 = vmatprep.mubr.f32.mxu0 0.0
    %1216 = vmatmul.mubr.f32.gmra.mrb[0].mxu0 %v1144
    %v1217 = vpop.f32.mrb[0].mxu0
    %v1218 = vadd.f32 %v1149, %v1217
    %v1219 = vpop.f32.mrb[0].mxu0
    %1220 = vdwg.mxu0
    %v1221 = vld [vmem:[#allocation9] sm:$0x1]
    %v1222 = vld [vmem:[#allocation10] sm:$0x1]
    %v1223 = vsel %vm334, %v1218, 0.0
    %1224 = vadd.xlane.f32.xlu0 %v1223
    %v1225 = vpop.xlane.xlu0 %1224
    %v1226 = vrcp.pop 32.0
    %v1227 = vmul.f32 %v1225, %v1226
    %v1228 = vsub.f32 %v1218, %v1227
    %v1229 = vmul.f32 %v1228, %v1228
    %v1230 = vsel %vm334, %v1229, 0.0
    %1231 = vadd.xlane.f32.xlu0 %v1230
    %v1232 = vpop.xlane.xlu0 %1231
    %v1233 = vmul.f32 %v1232, %v1226
    %v1234 = vadd.f32 %v1233, 1e-05
    %v1235 = vrsqrt.pop %v1234
    %v1236 = vmul.f32 %v1228, %v1235
    %v1238 = vlaneseq
    %v1239 = vshrl.u32 %v1238, 7
    %v1240 = vsub.s32 0, %v1239
    %v1241 = vrot.slane %v1221, %v1240
    %v1243 = vmul.f32 %v1236, %v1241
    %v1245 = vlaneseq
    %v1246 = vshrl.u32 %v1245, 7
    %v1247 = vsub.s32 0, %v1246
    %v1248 = vrot.slane %v1222, %v1247
    %v1250 = vadd.f32 %v1243, %v1248
    %v1251 = vsel %vm334, %v1250, 0.0
    %v1252 = vrot.slane %v1251, 4
    %v1253 = vadd.f32 %v1251, %v1252
    %v1254 = vrot.slane %v1253, 2
    %v1255 = vadd.f32 %v1253, %v1254
    %v1256 = vrot.slane %v1255, 1
    %v1257 = vadd.f32 %v1255, %v1256
    %v1258 = vrcp.pop 8.0
    %v1259 = vmul.f32 %v1257, %v1258
    %v1260 = vld [vmem:[%s41] sm:$0xff]
    %v1261 = vld [vmem:[%s41 + $0x8] sm:$0xff]
    %v1262 = vld [vmem:[%s41 + $0x10] sm:$0xff]
    %v1263 = vld [vmem:[%s41 + $0x18] sm:$0xff]
    %v1264 = vld [vmem:[%s43] sm:$0x1]
    %v1265 = vld [vmem:[%s45] sm:$0xff]
    %v1266 = vld [vmem:[%s45 + $0x8] sm:$0xff]
    %v1267 = vld [vmem:[%s45 + $0x10] sm:$0xff]
    %v1268 = vld [vmem:[%s45 + $0x18] sm:$0xff]
    %v1269 = vld [vmem:[%s45 + $0x20] sm:$0xff]
    %v1270 = vld [vmem:[%s45 + $0x28] sm:$0xff]
    %v1271 = vld [vmem:[%s45 + $0x30] sm:$0xff]
    %v1272 = vld [vmem:[%s45 + $0x38] sm:$0xff]
    %v1273 = vld [vmem:[%s45 + $0x40] sm:$0xff]
    %v1274 = vld [vmem:[%s45 + $0x48] sm:$0xff]
    %v1275 = vld [vmem:[%s45 + $0x50] sm:$0xff]
    %v1276 = vld [vmem:[%s45 + $0x58] sm:$0xff]
    %v1277 = vld [vmem:[%s45 + $0x60] sm:$0xff]
    %v1278 = vld [vmem:[%s45 + $0x68] sm:$0xff]
    %v1279 = vld [vmem:[%s45 + $0x70] sm:$0xff]
    %v1280 = vld [vmem:[%s45 + $0x78] sm:$0xff]
    %v1281 = vld [vmem:[%s47] sm:$0x1]
    %v1283 = vsel %vm334, %v1259, 0
    %1285 = vmatprep.subr.mxu0 0.0
    %1286 = vmatpush1.msra.mxu0 %v1260
    %1287 = vmatprep.subr.mxu0 0.0
    %1288 = vmatpush1.msra.mxu0 %v1261
    %1289 = vmatprep.subr.mxu0 0.0
    %1290 = vmatpush1.msra.mxu0 %v1262
    %1291 = vmatprep.subr.mxu0 0.0
    %1292 = vmatpush1.msra.mxu0 %v1263
    %1293 = vmatprep.subr.mxu0 0.0
    %1294 = vmatpush1.msra.mxu0 0.0
    %1295 = vmatprep.subr.mxu0 0.0
    %1296 = vmatpush1.msra.mxu0 0.0
    %1297 = vmatprep.subr.mxu0 0.0
    %1298 = vmatpush1.msra.mxu0 0.0
    %1299 = vmatprep.subr.mxu0 0.0
    %1300 = vmatpush1.msra.mxu0 0.0
    %1301 = vmatprep.subr.mxu0 0.0
    %1302 = vmatpush1.msra.mxu0 0.0
    %1303 = vmatprep.subr.mxu0 0.0
    %1304 = vmatpush1.msra.mxu0 0.0
    %1305 = vmatprep.subr.mxu0 0.0
    %1306 = vmatpush1.msra.mxu0 0.0
    %1307 = vmatprep.subr.mxu0 0.0
    %1308 = vmatpush1.msra.mxu0 0.0
    %1309 = vmatprep.subr.mxu0 0.0
    %1310 = vmatpush1.msra.mxu0 0.0
    %1311 = vmatprep.subr.mxu0 0.0
    %1312 = vmatpush1.msra.mxu0 0.0
    %1313 = vmatprep.subr.mxu0 0.0
    %1314 = vmatpush1.msra.mxu0 0.0
    %1315 = vmatprep.subr.mxu0 0.0
    %1316 = vmatpush1.msra.mxu0 0.0
    %1317 = vmatprep.subr.mxu0 0.0
    %1318 = vmatpush1.msra.mxu0 0.0
    %1319 = vmatprep.subr.mxu0 0.0
    %1320 = vmatpush1.msra.mxu0 0.0
    %1321 = vmatprep.subr.mxu0 0.0
    %1322 = vmatpush1.msra.mxu0 0.0
    %1323 = vmatprep.subr.mxu0 0.0
    %1324 = vmatpush1.msra.mxu0 0.0
    %1325 = vmatprep.subr.mxu0 0.0
    %1326 = vmatpush1.msra.mxu0 0.0
    %1327 = vmatprep.subr.mxu0 0.0
    %1328 = vmatpush1.msra.mxu0 0.0
    %1329 = vmatprep.subr.mxu0 0.0
    %1330 = vmatpush1.msra.mxu0 0.0
    %1331 = vmatprep.subr.mxu0 0.0
    %1332 = vmatpush1.msra.mxu0 0.0
    %1333 = vmatprep.subr.mxu0 0.0
    %1334 = vmatpush1.msra.mxu0 0.0
    %1335 = vmatprep.subr.mxu0 0.0
    %1336 = vmatpush1.msra.mxu0 0.0
    %1337 = vmatprep.subr.mxu0 0.0
    %1338 = vmatpush1.msra.mxu0 0.0
    %1339 = vmatprep.subr.mxu0 0.0
    %1340 = vmatpush1.msra.mxu0 0.0
    %1341 = vmatprep.subr.mxu0 0.0
    %1342 = vmatpush1.msra.mxu0 0.0
    %1343 = vmatprep.subr.mxu0 0.0
    %1344 = vmatpush1.msra.mxu0 0.0
    %1345 = vmatprep.subr.mxu0 0.0
    %1346 = vmatpush1.msra.mxu0 0.0
    %1347 = vmatprep.subr.mxu0 0.0
    %1348 = vmatpush1.msra.mxu0 0.0
    %1349 = vmatprep.mubr.f32.mxu0 0.0
    %1350 = vmatmul.mubr.f32.gmra.mrb[0].mxu0 %v1283
    %v1351 = vpop.f32.mrb[0].mxu0
    %v1352 = vadd.f32 %v1264, %v1351
    %v1353 = vpop.f32.mrb[0].mxu0
    %1354 = vdwg.mxu0
    %v1355 = vtanh.pop %v1352
    %1356 = vmatprep.subr.mxu0 0.0
    %1357 = vmatpush1.msra.mxu0 %v1265
    %1358 = vmatprep.subr.mxu0 0.0
    %1359 = vmatpush1.msra.mxu0 %v1266
    %1360 = vmatprep.subr.mxu0 0.0
    %1361 = vmatpush1.msra.mxu0 %v1267
    %1362 = vmatprep.subr.mxu0 0.0
    %1363 = vmatpush1.msra.mxu0 %v1268
    %1364 = vmatprep.subr.mxu0 0.0
    %1365 = vmatpush1.msra.mxu0 %v1269
    %1366 = vmatprep.subr.mxu0 0.0
    %1367 = vmatpush1.msra.mxu0 %v1270
    %1368 = vmatprep.subr.mxu0 0.0
    %1369 = vmatpush1.msra.mxu0 %v1271
    %1370 = vmatprep.subr.mxu0 0.0
    %1371 = vmatpush1.msra.mxu0 %v1272
    %1372 = vmatprep.subr.mxu0 0.0
    %1373 = vmatpush1.msra.mxu0 %v1273
    %1374 = vmatprep.subr.mxu0 0.0
    %1375 = vmatpush1.msra.mxu0 %v1274
    %1376 = vmatprep.subr.mxu0 0.0
    %1377 = vmatpush1.msra.mxu0 %v1275
    %1378 = vmatprep.subr.mxu0 0.0
    %1379 = vmatpush1.msra.mxu0 %v1276
    %1380 = vmatprep.subr.mxu0 0.0
    %1381 = vmatpush1.msra.mxu0 %v1277
    %1382 = vmatprep.subr.mxu0 0.0
    %1383 = vmatpush1.msra.mxu0 %v1278
    %1384 = vmatprep.subr.mxu0 0.0
    %1385 = vmatpush1.msra.mxu0 %v1279
    %1386 = vmatprep.subr.mxu0 0.0
    %1387 = vmatpush1.msra.mxu0 %v1280
    %1388 = vmatprep.subr.mxu0 0.0
    %1389 = vmatpush1.msra.mxu0 0.0
    %1390 = vmatprep.subr.mxu0 0.0
    %1391 = vmatpush1.msra.mxu0 0.0
    %1392 = vmatprep.subr.mxu0 0.0
    %1393 = vmatpush1.msra.mxu0 0.0
    %1394 = vmatprep.subr.mxu0 0.0
    %1395 = vmatpush1.msra.mxu0 0.0
    %1396 = vmatprep.subr.mxu0 0.0
    %1397 = vmatpush1.msra.mxu0 0.0
    %1398 = vmatprep.subr.mxu0 0.0
    %1399 = vmatpush1.msra.mxu0 0.0
    %1400 = vmatprep.subr.mxu0 0.0
    %1401 = vmatpush1.msra.mxu0 0.0
    %1402 = vmatprep.subr.mxu0 0.0
    %1403 = vmatpush1.msra.mxu0 0.0
    %1404 = vmatprep.subr.mxu0 0.0
    %1405 = vmatpush1.msra.mxu0 0.0
    %1406 = vmatprep.subr.mxu0 0.0
    %1407 = vmatpush1.msra.mxu0 0.0
    %1408 = vmatprep.subr.mxu0 0.0
    %1409 = vmatpush1.msra.mxu0 0.0
    %1410 = vmatprep.subr.mxu0 0.0
    %1411 = vmatpush1.msra.mxu0 0.0
    %1412 = vmatprep.subr.mxu0 0.0
    %1413 = vmatpush1.msra.mxu0 0.0
    %1414 = vmatprep.subr.mxu0 0.0
    %1415 = vmatpush1.msra.mxu0 0.0
    %1416 = vmatprep.subr.mxu0 0.0
    %1417 = vmatpush1.msra.mxu0 0.0
    %1418 = vmatprep.subr.mxu0 0.0
    %1419 = vmatpush1.msra.mxu0 0.0
    %1420 = vmatprep.mubr.f32.mxu0 0.0
    %1421 = vmatmul.mubr.f32.gmra.mrb[0].mxu0 %v1355
    %v1422 = vpop.f32.mrb[0].mxu0
    %v1423 = vadd.f32 %v1281, %v1422
    %v1424 = vpop.f32.mrb[0].mxu0
    %1425 = vdwg.mxu0
    %v1426 = vld [vmem:[%s49] sm:$0xff]
    %v1427 = vld [vmem:[%s49 + $0x8] sm:$0xff]
    %v1428 = vld [vmem:[%s49 + $0x10] sm:$0xff]
    %v1429 = vld [vmem:[%s49 + $0x18] sm:$0xff]
    %v1430 = vld [vmem:[#allocation12] sm:$0x1]
    %v1431 = vld [vmem:[%s53] sm:$0xff]
    %v1432 = vld [vmem:[%s53 + $0x8] sm:$0xff]
    %v1433 = vld [vmem:[%s53 + $0x10] sm:$0xff]
    %v1434 = vld [vmem:[%s53 + $0x18] sm:$0xff]
    %v1436 = vsel %vm334, %v1423, 0
    %1438 = vmatprep.subr.mxu0 0.0
    %1439 = vmatpush1.msra.mxu0 %v1426
    %1440 = vmatprep.subr.mxu0 0.0
    %1441 = vmatpush1.msra.mxu0 %v1427
    %1442 = vmatprep.subr.mxu0 0.0
    %1443 = vmatpush1.msra.mxu0 %v1428
    %1444 = vmatprep.subr.mxu0 0.0
    %1445 = vmatpush1.msra.mxu0 %v1429
    %1446 = vmatprep.subr.mxu0 0.0
    %1447 = vmatpush1.msra.mxu0 0.0
    %1448 = vmatprep.subr.mxu0 0.0
    %1449 = vmatpush1.msra.mxu0 0.0
    %1450 = vmatprep.subr.mxu0 0.0
    %1451 = vmatpush1.msra.mxu0 0.0
    %1452 = vmatprep.subr.mxu0 0.0
    %1453 = vmatpush1.msra.mxu0 0.0
    %1454 = vmatprep.subr.mxu0 0.0
    %1455 = vmatpush1.msra.mxu0 0.0
    %1456 = vmatprep.subr.mxu0 0.0
    %1457 = vmatpush1.msra.mxu0 0.0
    %1458 = vmatprep.subr.mxu0 0.0
    %1459 = vmatpush1.msra.mxu0 0.0
    %1460 = vmatprep.subr.mxu0 0.0
    %1461 = vmatpush1.msra.mxu0 0.0
    %1462 = vmatprep.subr.mxu0 0.0
    %1463 = vmatpush1.msra.mxu0 0.0
    %1464 = vmatprep.subr.mxu0 0.0
    %1465 = vmatpush1.msra.mxu0 0.0
    %1466 = vmatprep.subr.mxu0 0.0
    %1467 = vmatpush1.msra.mxu0 0.0
    %1468 = vmatprep.subr.mxu0 0.0
    %1469 = vmatpush1.msra.mxu0 0.0
    %1470 = vmatprep.subr.mxu0 0.0
    %1471 = vmatpush1.msra.mxu0 0.0
    %1472 = vmatprep.subr.mxu0 0.0
    %1473 = vmatpush1.msra.mxu0 0.0
    %1474 = vmatprep.subr.mxu0 0.0
    %1475 = vmatpush1.msra.mxu0 0.0
    %1476 = vmatprep.subr.mxu0 0.0
    %1477 = vmatpush1.msra.mxu0 0.0
    %1478 = vmatprep.subr.mxu0 0.0
    %1479 = vmatpush1.msra.mxu0 0.0
    %1480 = vmatprep.subr.mxu0 0.0
    %1481 = vmatpush1.msra.mxu0 0.0
    %1482 = vmatprep.subr.mxu0 0.0
    %1483 = vmatpush1.msra.mxu0 0.0
    %1484 = vmatprep.subr.mxu0 0.0
    %1485 = vmatpush1.msra.mxu0 0.0
    %1486 = vmatprep.subr.mxu0 0.0
    %1487 = vmatpush1.msra.mxu0 0.0
    %1488 = vmatprep.subr.mxu0 0.0
    %1489 = vmatpush1.msra.mxu0 0.0
    %1490 = vmatprep.subr.mxu0 0.0
    %1491 = vmatpush1.msra.mxu0 0.0
    %1492 = vmatprep.subr.mxu0 0.0
    %1493 = vmatpush1.msra.mxu0 0.0
    %1494 = vmatprep.subr.mxu0 0.0
    %1495 = vmatpush1.msra.mxu0 0.0
    %1496 = vmatprep.subr.mxu0 0.0
    %1497 = vmatpush1.msra.mxu0 0.0
    %1498 = vmatprep.subr.mxu0 0.0
    %1499 = vmatpush1.msra.mxu0 0.0
    %1500 = vmatprep.subr.mxu0 0.0
    %1501 = vmatpush1.msra.mxu0 0.0
    %1502 = vmatprep.mubr.f32.mxu0 0.0
    %1503 = vmatmul.mubr.f32.gmra.mrb[0].mxu0 %v1436
    %v1504 = vpop.f32.mrb[0].mxu0
    %v1505 = vadd.f32 %v1430, %v1504
    %v1506 = vpop.f32.mrb[0].mxu0
    %1507 = vdwg.mxu0
    %1508 = vmatprep.subr.mxu0 0.0
    %1509 = vmatpush1.msra.mxu0 %v1431
    %1510 = vmatprep.subr.mxu0 0.0
    %1511 = vmatpush1.msra.mxu0 %v1432
    %1512 = vmatprep.subr.mxu0 0.0
    %1513 = vmatpush1.msra.mxu0 %v1433
    %1514 = vmatprep.subr.mxu0 0.0
    %1515 = vmatpush1.msra.mxu0 %v1434
    %1516 = vmatprep.subr.mxu0 0.0
    %1517 = vmatpush1.msra.mxu0 0.0
    %1518 = vmatprep.subr.mxu0 0.0
    %1519 = vmatpush1.msra.mxu0 0.0
    %1520 = vmatprep.subr.mxu0 0.0
    %1521 = vmatpush1.msra.mxu0 0.0
    %1522 = vmatprep.subr.mxu0 0.0
    %1523 = vmatpush1.msra.mxu0 0.0
    %1524 = vmatprep.subr.mxu0 0.0
    %1525 = vmatpush1.msra.mxu0 0.0
    %1526 = vmatprep.subr.mxu0 0.0
    %1527 = vmatpush1.msra.mxu0 0.0
    %1528 = vmatprep.subr.mxu0 0.0
    %1529 = vmatpush1.msra.mxu0 0.0
    %1530 = vmatprep.subr.mxu0 0.0
    %1531 = vmatpush1.msra.mxu0 0.0
    %1532 = vmatprep.subr.mxu0 0.0
    %1533 = vmatpush1.msra.mxu0 0.0
    %1534 = vmatprep.subr.mxu0 0.0
    %1535 = vmatpush1.msra.mxu0 0.0
    %1536 = vmatprep.subr.mxu0 0.0
    %1537 = vmatpush1.msra.mxu0 0.0
    %1538 = vmatprep.subr.mxu0 0.0
    %1539 = vmatpush1.msra.mxu0 0.0
    %1540 = vmatprep.subr.mxu0 0.0
    %1541 = vmatpush1.msra.mxu0 0.0
    %1542 = vmatprep.subr.mxu0 0.0
    %1543 = vmatpush1.msra.mxu0 0.0
    %1544 = vmatprep.subr.mxu0 0.0
    %1545 = vmatpush1.msra.mxu0 0.0
    %1546 = vmatprep.subr.mxu0 0.0
    %1547 = vmatpush1.msra.mxu0 0.0
    %1548 = vmatprep.subr.mxu0 0.0
    %1549 = vmatpush1.msra.mxu0 0.0
    %1550 = vmatprep.subr.mxu0 0.0
    %1551 = vmatpush1.msra.mxu0 0.0
    %1552 = vmatprep.subr.mxu0 0.0
    %1553 = vmatpush1.msra.mxu0 0.0
    %1554 = vmatprep.subr.mxu0 0.0
    %1555 = vmatpush1.msra.mxu0 0.0
    %1556 = vmatprep.subr.mxu0 0.0
    %1557 = vmatpush1.msra.mxu0 0.0
    %1558 = vmatprep.subr.mxu0 0.0
    %1559 = vmatpush1.msra.mxu0 0.0
    %1560 = vmatprep.subr.mxu0 0.0
    %1561 = vmatpush1.msra.mxu0 0.0
    %1562 = vmatprep.subr.mxu0 0.0
    %1563 = vmatpush1.msra.mxu0 0.0
    %1564 = vmatprep.subr.mxu0 0.0
    %1565 = vmatpush1.msra.mxu0 0.0
    %1566 = vmatprep.subr.mxu0 0.0
    %1567 = vmatpush1.msra.mxu0 0.0
    %1568 = vmatprep.subr.mxu0 0.0
    %1569 = vmatpush1.msra.mxu0 0.0
    %1570 = vmatprep.subr.mxu0 0.0
    %1571 = vmatpush1.msra.mxu0 0.0
    %1572 = vmatprep.mubr.f32.mxu0 0.0
    %1573 = vmatmul.mubr.f32.gmra.mrb[0].mxu0 %v1436
    %v1574 = vpop.f32.mrb[0].mxu0
    %v1575 = vadd.f32 0.0, %v1574
    %v1576 = vpop.f32.mrb[0].mxu0
    %1577 = vdwg.mxu0
    %v1578 = vadd.f32 %v1505, %v1575
    %v1579 = vmul.f32 %v1578, 0.5
    %v1580 = vmul.f32 %v1578, 0.70710677
    %vm1581 = vcmp.ge.f32.partialorder %v1580, 0.0
    %v1582 = vsel %vm1581, 1.0, -1.0
    %v1583 = vand.u32 2147483647, %v1580
    %v1584 = vmul.f32 %v1583, 0.3275911
    %v1585 = vadd.f32 %v1584, 1.0
    %v1586 = vrcp.pop %v1585
    %v1587 = vmul.f32 1.0, %v1586
    %v1588 = vmul.f32 %v1587, 1.0614054
    %v1589 = vadd.f32 %v1588, -1.4531521
    %v1590 = vmul.f32 %v1589, %v1587
    %v1591 = vadd.f32 %v1590, 1.4214138
    %v1592 = vmul.f32 %v1591, %v1587
    %v1593 = vadd.f32 %v1592, -0.28449672
    %v1594 = vmul.f32 %v1593, %v1587
    %v1595 = vadd.f32 %v1594, 0.2548296
    %v1596 = vmul.f32 %v1595, %v1587
    %v1597 = vsub.f32 0.0, %v1583
    %v1598 = vmul.f32 %v1597, %v1583
    %v1599 = vmul.f32 %v1598, 1.442695
    %v1600 = vpow.pop %v1599
    %v1601 = vmul.f32 %v1596, %v1600
    %v1602 = vsub.f32 1.0, %v1601
    %v1603 = vmul.f32 %v1582, %v1602
    %v1604 = vadd.f32 %v1603, 1.0
    %v1605 = vmul.f32 %v1579, %v1604
    %v1606 = vld [vmem:[%s55] sm:$0xff]
    %v1607 = vld [vmem:[%s55 + $0x8] sm:$0xff]
    %v1608 = vld [vmem:[%s55 + $0x10] sm:$0xff]
    %v1609 = vld [vmem:[%s55 + $0x18] sm:$0xff]
    %v1610 = vld [vmem:[%s57] sm:$0x1]
    %v1611 = vld [vmem:[%s59] sm:$0xff]
    %v1612 = vld [vmem:[%s59 + $0x8] sm:$0xff]
    %v1613 = vld [vmem:[%s59 + $0x10] sm:$0xff]
    %v1614 = vld [vmem:[%s59 + $0x18] sm:$0xff]
    %v1616 = vsel %vm334, %v1605, 0
    %1618 = vmatprep.subr.mxu0 0.0
    %1619 = vmatpush1.msra.mxu0 %v1606
    %1620 = vmatprep.subr.mxu0 0.0
    %1621 = vmatpush1.msra.mxu0 %v1607
    %1622 = vmatprep.subr.mxu0 0.0
    %1623 = vmatpush1.msra.mxu0 %v1608
    %1624 = vmatprep.subr.mxu0 0.0
    %1625 = vmatpush1.msra.mxu0 %v1609
    %1626 = vmatprep.subr.mxu0 0.0
    %1627 = vmatpush1.msra.mxu0 0.0
    %1628 = vmatprep.subr.mxu0 0.0
    %1629 = vmatpush1.msra.mxu0 0.0
    %1630 = vmatprep.subr.mxu0 0.0
    %1631 = vmatpush1.msra.mxu0 0.0
    %1632 = vmatprep.subr.mxu0 0.0
    %1633 = vmatpush1.msra.mxu0 0.0
    %1634 = vmatprep.subr.mxu0 0.0
    %1635 = vmatpush1.msra.mxu0 0.0
    %1636 = vmatprep.subr.mxu0 0.0
    %1637 = vmatpush1.msra.mxu0 0.0
    %1638 = vmatprep.subr.mxu0 0.0
    %1639 = vmatpush1.msra.mxu0 0.0
    %1640 = vmatprep.subr.mxu0 0.0
    %1641 = vmatpush1.msra.mxu0 0.0
    %1642 = vmatprep.subr.mxu0 0.0
    %1643 = vmatpush1.msra.mxu0 0.0
    %1644 = vmatprep.subr.mxu0 0.0
    %1645 = vmatpush1.msra.mxu0 0.0
    %1646 = vmatprep.subr.mxu0 0.0
    %1647 = vmatpush1.msra.mxu0 0.0
    %1648 = vmatprep.subr.mxu0 0.0
    %1649 = vmatpush1.msra.mxu0 0.0
    %1650 = vmatprep.subr.mxu0 0.0
    %1651 = vmatpush1.msra.mxu0 0.0
    %1652 = vmatprep.subr.mxu0 0.0
    %1653 = vmatpush1.msra.mxu0 0.0
    %1654 = vmatprep.subr.mxu0 0.0
    %1655 = vmatpush1.msra.mxu0 0.0
    %1656 = vmatprep.subr.mxu0 0.0
    %1657 = vmatpush1.msra.mxu0 0.0
    %1658 = vmatprep.subr.mxu0 0.0
    %1659 = vmatpush1.msra.mxu0 0.0
    %1660 = vmatprep.subr.mxu0 0.0
    %1661 = vmatpush1.msra.mxu0 0.0
    %1662 = vmatprep.subr.mxu0 0.0
    %1663 = vmatpush1.msra.mxu0 0.0
    %1664 = vmatprep.subr.mxu0 0.0
    %1665 = vmatpush1.msra.mxu0 0.0
    %1666 = vmatprep.subr.mxu0 0.0
    %1667 = vmatpush1.msra.mxu0 0.0
    %1668 = vmatprep.subr.mxu0 0.0
    %1669 = vmatpush1.msra.mxu0 0.0
    %1670 = vmatprep.subr.mxu0 0.0
    %1671 = vmatpush1.msra.mxu0 0.0
    %1672 = vmatprep.subr.mxu0 0.0
    %1673 = vmatpush1.msra.mxu0 0.0
    %1674 = vmatprep.subr.mxu0 0.0
    %1675 = vmatpush1.msra.mxu0 0.0
    %1676 = vmatprep.subr.mxu0 0.0
    %1677 = vmatpush1.msra.mxu0 0.0
    %1678 = vmatprep.subr.mxu0 0.0
    %1679 = vmatpush1.msra.mxu0 0.0
    %1680 = vmatprep.subr.mxu0 0.0
    %1681 = vmatpush1.msra.mxu0 0.0
    %1682 = vmatprep.mubr.f32.mxu0 0.0
    %1683 = vmatmul.mubr.f32.gmra.mrb[0].mxu0 %v1616
    %v1684 = vpop.f32.mrb[0].mxu0
    %v1685 = vadd.f32 %v1610, %v1684
    %v1686 = vpop.f32.mrb[0].mxu0
    %1687 = vdwg.mxu0
    %1688 = vmatprep.subr.mxu0 0.0
    %1689 = vmatpush1.msra.mxu0 %v1611
    %1690 = vmatprep.subr.mxu0 0.0
    %1691 = vmatpush1.msra.mxu0 %v1612
    %1692 = vmatprep.subr.mxu0 0.0
    %1693 = vmatpush1.msra.mxu0 %v1613
    %1694 = vmatprep.subr.mxu0 0.0
    %1695 = vmatpush1.msra.mxu0 %v1614
    %1696 = vmatprep.subr.mxu0 0.0
    %1697 = vmatpush1.msra.mxu0 0.0
    %1698 = vmatprep.subr.mxu0 0.0
    %1699 = vmatpush1.msra.mxu0 0.0
    %1700 = vmatprep.subr.mxu0 0.0
    %1701 = vmatpush1.msra.mxu0 0.0
    %1702 = vmatprep.subr.mxu0 0.0
    %1703 = vmatpush1.msra.mxu0 0.0
    %1704 = vmatprep.subr.mxu0 0.0
    %1705 = vmatpush1.msra.mxu0 0.0
    %1706 = vmatprep.subr.mxu0 0.0
    %1707 = vmatpush1.msra.mxu0 0.0
    %1708 = vmatprep.subr.mxu0 0.0
    %1709 = vmatpush1.msra.mxu0 0.0
    %1710 = vmatprep.subr.mxu0 0.0
    %1711 = vmatpush1.msra.mxu0 0.0
    %1712 = vmatprep.subr.mxu0 0.0
    %1713 = vmatpush1.msra.mxu0 0.0
    %1714 = vmatprep.subr.mxu0 0.0
    %1715 = vmatpush1.msra.mxu0 0.0
    %1716 = vmatprep.subr.mxu0 0.0
    %1717 = vmatpush1.msra.mxu0 0.0
    %1718 = vmatprep.subr.mxu0 0.0
    %1719 = vmatpush1.msra.mxu0 0.0
    %1720 = vmatprep.subr.mxu0 0.0
    %1721 = vmatpush1.msra.mxu0 0.0
    %1722 = vmatprep.subr.mxu0 0.0
    %1723 = vmatpush1.msra.mxu0 0.0
    %1724 = vmatprep.subr.mxu0 0.0
    %1725 = vmatpush1.msra.mxu0 0.0
    %1726 = vmatprep.subr.mxu0 0.0
    %1727 = vmatpush1.msra.mxu0 0.0
    %1728 = vmatprep.subr.mxu0 0.0
    %1729 = vmatpush1.msra.mxu0 0.0
    %1730 = vmatprep.subr.mxu0 0.0
    %1731 = vmatpush1.msra.mxu0 0.0
    %1732 = vmatprep.subr.mxu0 0.0
    %1733 = vmatpush1.msra.mxu0 0.0
    %1734 = vmatprep.subr.mxu0 0.0
    %1735 = vmatpush1.msra.mxu0 0.0
    %1736 = vmatprep.subr.mxu0 0.0
    %1737 = vmatpush1.msra.mxu0 0.0
    %1738 = vmatprep.subr.mxu0 0.0
    %1739 = vmatpush1.msra.mxu0 0.0
    %1740 = vmatprep.subr.mxu0 0.0
    %1741 = vmatpush1.msra.mxu0 0.0
    %1742 = vmatprep.subr.mxu0 0.0
    %1743 = vmatpush1.msra.mxu0 0.0
    %1744 = vmatprep.subr.mxu0 0.0
    %1745 = vmatpush1.msra.mxu0 0.0
    %1746 = vmatprep.subr.mxu0 0.0
    %1747 = vmatpush1.msra.mxu0 0.0
    %1748 = vmatprep.subr.mxu0 0.0
    %1749 = vmatpush1.msra.mxu0 0.0
    %1750 = vmatprep.subr.mxu0 0.0
    %1751 = vmatpush1.msra.mxu0 0.0
    %1752 = vmatprep.mubr.f32.mxu0 0.0
    %1753 = vmatmul.mubr.f32.gmra.mrb[0].mxu0 %v1616
    %v1754 = vpop.f32.mrb[0].mxu0
    %v1755 = vadd.f32 0.0, %v1754
    %v1756 = vpop.f32.mrb[0].mxu0
    %1757 = vdwg.mxu0
    %v1758 = vadd.f32 %v1685, %v1755
    %v1759 = vmul.f32 %v1758, 0.5
    %v1760 = vmul.f32 %v1758, 0.70710677
    %vm1761 = vcmp.ge.f32.partialorder %v1760, 0.0
    %v1762 = vsel %vm1761, 1.0, -1.0
    %v1763 = vand.u32 2147483647, %v1760
    %v1764 = vmul.f32 %v1763, 0.3275911
    %v1765 = vadd.f32 %v1764, 1.0
    %v1766 = vrcp.pop %v1765
    %v1767 = vmul.f32 1.0, %v1766
    %v1768 = vmul.f32 %v1767, 1.0614054
    %v1769 = vadd.f32 %v1768, -1.4531521
    %v1770 = vmul.f32 %v1769, %v1767
    %v1771 = vadd.f32 %v1770, 1.4214138
    %v1772 = vmul.f32 %v1771, %v1767
    %v1773 = vadd.f32 %v1772, -0.28449672
    %v1774 = vmul.f32 %v1773, %v1767
    %v1775 = vadd.f32 %v1774, 0.2548296
    %v1776 = vmul.f32 %v1775, %v1767
    %v1777 = vsub.f32 0.0, %v1763
    %v1778 = vmul.f32 %v1777, %v1763
    %v1779 = vmul.f32 %v1778, 1.442695
    %v1780 = vpow.pop %v1779
    %v1781 = vmul.f32 %v1776, %v1780
    %v1782 = vsub.f32 1.0, %v1781
    %v1783 = vmul.f32 %v1762, %v1782
    %v1784 = vadd.f32 %v1783, 1.0
    %v1785 = vmul.f32 %v1759, %v1784
    %v1786 = vld [vmem:[%s61] sm:$0xff]
    %v1787 = vld [vmem:[%s61 + $0x8] sm:$0xff]
    %v1788 = vld [vmem:[%s61 + $0x10] sm:$0xff]
    %v1789 = vld [vmem:[%s61 + $0x18] sm:$0xff]
    %v1790 = vld [vmem:[%s63] sm:$0x1]
    %v1791 = vld [vmem:[%s65] sm:$0xff]
    %v1792 = vld [vmem:[%s65 + $0x8] sm:$0xff]
    %v1793 = vld [vmem:[%s65 + $0x10] sm:$0xff]
    %v1794 = vld [vmem:[%s65 + $0x18] sm:$0xff]
    %v1796 = vsel %vm334, %v1785, 0
    %1798 = vmatprep.subr.mxu0 0.0
    %1799 = vmatpush1.msra.mxu0 %v1786
    %1800 = vmatprep.subr.mxu0 0.0
    %1801 = vmatpush1.msra.mxu0 %v1787
    %1802 = vmatprep.subr.mxu0 0.0
    %1803 = vmatpush1.msra.mxu0 %v1788
    %1804 = vmatprep.subr.mxu0 0.0
    %1805 = vmatpush1.msra.mxu0 %v1789
    %1806 = vmatprep.subr.mxu0 0.0
    %1807 = vmatpush1.msra.mxu0 0.0
    %1808 = vmatprep.subr.mxu0 0.0
    %1809 = vmatpush1.msra.mxu0 0.0
    %1810 = vmatprep.subr.mxu0 0.0
    %1811 = vmatpush1.msra.mxu0 0.0
    %1812 = vmatprep.subr.mxu0 0.0
    %1813 = vmatpush1.msra.mxu0 0.0
    %1814 = vmatprep.subr.mxu0 0.0
    %1815 = vmatpush1.msra.mxu0 0.0
    %1816 = vmatprep.subr.mxu0 0.0
    %1817 = vmatpush1.msra.mxu0 0.0
    %1818 = vmatprep.subr.mxu0 0.0
    %1819 = vmatpush1.msra.mxu0 0.0
    %1820 = vmatprep.subr.mxu0 0.0
    %1821 = vmatpush1.msra.mxu0 0.0
    %1822 = vmatprep.subr.mxu0 0.0
    %1823 = vmatpush1.msra.mxu0 0.0
    %1824 = vmatprep.subr.mxu0 0.0
    %1825 = vmatpush1.msra.mxu0 0.0
    %1826 = vmatprep.subr.mxu0 0.0
    %1827 = vmatpush1.msra.mxu0 0.0
    %1828 = vmatprep.subr.mxu0 0.0
    %1829 = vmatpush1.msra.mxu0 0.0
    %1830 = vmatprep.subr.mxu0 0.0
    %1831 = vmatpush1.msra.mxu0 0.0
    %1832 = vmatprep.subr.mxu0 0.0
    %1833 = vmatpush1.msra.mxu0 0.0
    %1834 = vmatprep.subr.mxu0 0.0
    %1835 = vmatpush1.msra.mxu0 0.0
    %1836 = vmatprep.subr.mxu0 0.0
    %1837 = vmatpush1.msra.mxu0 0.0
    %1838 = vmatprep.subr.mxu0 0.0
    %1839 = vmatpush1.msra.mxu0 0.0
    %1840 = vmatprep.subr.mxu0 0.0
    %1841 = vmatpush1.msra.mxu0 0.0
    %1842 = vmatprep.subr.mxu0 0.0
    %1843 = vmatpush1.msra.mxu0 0.0
    %1844 = vmatprep.subr.mxu0 0.0
    %1845 = vmatpush1.msra.mxu0 0.0
    %1846 = vmatprep.subr.mxu0 0.0
    %1847 = vmatpush1.msra.mxu0 0.0
    %1848 = vmatprep.subr.mxu0 0.0
    %1849 = vmatpush1.msra.mxu0 0.0
    %1850 = vmatprep.subr.mxu0 0.0
    %1851 = vmatpush1.msra.mxu0 0.0
    %1852 = vmatprep.subr.mxu0 0.0
    %1853 = vmatpush1.msra.mxu0 0.0
    %1854 = vmatprep.subr.mxu0 0.0
    %1855 = vmatpush1.msra.mxu0 0.0
    %1856 = vmatprep.subr.mxu0 0.0
    %1857 = vmatpush1.msra.mxu0 0.0
    %1858 = vmatprep.subr.mxu0 0.0
    %1859 = vmatpush1.msra.mxu0 0.0
    %1860 = vmatprep.subr.mxu0 0.0
    %1861 = vmatpush1.msra.mxu0 0.0
    %1862 = vmatprep.mubr.f32.mxu0 0.0
    %1863 = vmatmul.mubr.f32.gmra.mrb[0].mxu0 %v1796
    %v1864 = vpop.f32.mrb[0].mxu0
    %v1865 = vadd.f32 %v1790, %v1864
    %v1866 = vpop.f32.mrb[0].mxu0
    %1867 = vdwg.mxu0
    %1868 = vmatprep.subr.mxu0 0.0
    %1869 = vmatpush1.msra.mxu0 %v1791
    %1870 = vmatprep.subr.mxu0 0.0
    %1871 = vmatpush1.msra.mxu0 %v1792
    %1872 = vmatprep.subr.mxu0 0.0
    %1873 = vmatpush1.msra.mxu0 %v1793
    %1874 = vmatprep.subr.mxu0 0.0
    %1875 = vmatpush1.msra.mxu0 %v1794
    %1876 = vmatprep.subr.mxu0 0.0
    %1877 = vmatpush1.msra.mxu0 0.0
    %1878 = vmatprep.subr.mxu0 0.0
    %1879 = vmatpush1.msra.mxu0 0.0
    %1880 = vmatprep.subr.mxu0 0.0
    %1881 = vmatpush1.msra.mxu0 0.0
    %1882 = vmatprep.subr.mxu0 0.0
    %1883 = vmatpush1.msra.mxu0 0.0
    %1884 = vmatprep.subr.mxu0 0.0
    %1885 = vmatpush1.msra.mxu0 0.0
    %1886 = vmatprep.subr.mxu0 0.0
    %1887 = vmatpush1.msra.mxu0 0.0
    %1888 = vmatprep.subr.mxu0 0.0
    %1889 = vmatpush1.msra.mxu0 0.0
    %1890 = vmatprep.subr.mxu0 0.0
    %1891 = vmatpush1.msra.mxu0 0.0
    %1892 = vmatprep.subr.mxu0 0.0
    %1893 = vmatpush1.msra.mxu0 0.0
    %1894 = vmatprep.subr.mxu0 0.0
    %1895 = vmatpush1.msra.mxu0 0.0
    %1896 = vmatprep.subr.mxu0 0.0
    %1897 = vmatpush1.msra.mxu0 0.0
    %1898 = vmatprep.subr.mxu0 0.0
    %1899 = vmatpush1.msra.mxu0 0.0
    %1900 = vmatprep.subr.mxu0 0.0
    %1901 = vmatpush1.msra.mxu0 0.0
    %1902 = vmatprep.subr.mxu0 0.0
    %1903 = vmatpush1.msra.mxu0 0.0
    %1904 = vmatprep.subr.mxu0 0.0
    %1905 = vmatpush1.msra.mxu0 0.0
    %1906 = vmatprep.subr.mxu0 0.0
    %1907 = vmatpush1.msra.mxu0 0.0
    %1908 = vmatprep.subr.mxu0 0.0
    %1909 = vmatpush1.msra.mxu0 0.0
    %1910 = vmatprep.subr.mxu0 0.0
    %1911 = vmatpush1.msra.mxu0 0.0
    %1912 = vmatprep.subr.mxu0 0.0
    %1913 = vmatpush1.msra.mxu0 0.0
    %1914 = vmatprep.subr.mxu0 0.0
    %1915 = vmatpush1.msra.mxu0 0.0
    %1916 = vmatprep.subr.mxu0 0.0
    %1917 = vmatpush1.msra.mxu0 0.0
    %1918 = vmatprep.subr.mxu0 0.0
    %1919 = vmatpush1.msra.mxu0 0.0
    %1920 = vmatprep.subr.mxu0 0.0
    %1921 = vmatpush1.msra.mxu0 0.0
    %1922 = vmatprep.subr.mxu0 0.0
    %1923 = vmatpush1.msra.mxu0 0.0
    %1924 = vmatprep.subr.mxu0 0.0
    %1925 = vmatpush1.msra.mxu0 0.0
    %1926 = vmatprep.subr.mxu0 0.0
    %1927 = vmatpush1.msra.mxu0 0.0
    %1928 = vmatprep.subr.mxu0 0.0
    %1929 = vmatpush1.msra.mxu0 0.0
    %1930 = vmatprep.subr.mxu0 0.0
    %1931 = vmatpush1.msra.mxu0 0.0
    %1932 = vmatprep.mubr.f32.mxu0 0.0
    %1933 = vmatmul.mubr.f32.gmra.mrb[0].mxu0 %v1796
    %v1934 = vpop.f32.mrb[0].mxu0
    %v1935 = vadd.f32 0.0, %v1934
    %v1936 = vpop.f32.mrb[0].mxu0
    %1937 = vdwg.mxu0
    %v1938 = vadd.f32 %v1865, %v1935
    %v1939 = vmul.f32 %v1938, 0.5
    %v1940 = vmul.f32 %v1938, 0.70710677
    %vm1941 = vcmp.ge.f32.partialorder %v1940, 0.0
    %v1942 = vsel %vm1941, 1.0, -1.0
    %v1943 = vand.u32 2147483647, %v1940
    %v1944 = vmul.f32 %v1943, 0.3275911
    %v1945 = vadd.f32 %v1944, 1.0
    %v1946 = vrcp.pop %v1945
    %v1947 = vmul.f32 1.0, %v1946
    %v1948 = vmul.f32 %v1947, 1.0614054
    %v1949 = vadd.f32 %v1948, -1.4531521
    %v1950 = vmul.f32 %v1949, %v1947
    %v1951 = vadd.f32 %v1950, 1.4214138
    %v1952 = vmul.f32 %v1951, %v1947
    %v1953 = vadd.f32 %v1952, -0.28449672
    %v1954 = vmul.f32 %v1953, %v1947
    %v1955 = vadd.f32 %v1954, 0.2548296
    %v1956 = vmul.f32 %v1955, %v1947
    %v1957 = vsub.f32 0.0, %v1943
    %v1958 = vmul.f32 %v1957, %v1943
    %v1959 = vmul.f32 %v1958, 1.442695
    %v1960 = vpow.pop %v1959
    %v1961 = vmul.f32 %v1956, %v1960
    %v1962 = vsub.f32 1.0, %v1961
    %v1963 = vmul.f32 %v1942, %v1962
    %v1964 = vadd.f32 %v1963, 1.0
    %v1965 = vmul.f32 %v1939, %v1964
    %v1966 = vld [vmem:[%s67] sm:$0xff]
    %v1967 = vld [vmem:[%s67 + $0x8] sm:$0xff]
    %v1968 = vld [vmem:[%s67 + $0x10] sm:$0xff]
    %v1969 = vld [vmem:[%s67 + $0x18] sm:$0xff]
    %v1970 = vld [vmem:[#allocation13] sm:$0x1]
    %v1971 = vld [vmem:[%s71] sm:$0xff]
    %v1972 = vld [vmem:[%s71 + $0x8] sm:$0xff]
    %v1973 = vld [vmem:[%s71 + $0x10] sm:$0xff]
    %v1974 = vld [vmem:[%s71 + $0x18] sm:$0xff]
    %v1975 = vld [vmem:[%s71 + $0x20] sm:$0xff]
    %v1976 = vld [vmem:[%s71 + $0x28] sm:$0xff]
    %v1977 = vld [vmem:[%s71 + $0x30] sm:$0xff]
    %v1978 = vld [vmem:[%s71 + $0x38] sm:$0xff]
    %v1979 = vld [vmem:[%s71 + $0x40] sm:$0xff]
    %v1980 = vld [vmem:[%s71 + $0x48] sm:$0xff]
    %v1981 = vld [vmem:[%s71 + $0x50] sm:$0xff]
    %v1982 = vld [vmem:[%s71 + $0x58] sm:$0xff]
    %v1983 = vld [vmem:[%s71 + $0x60] sm:$0xff]
    %v1984 = vld [vmem:[%s71 + $0x68] sm:$0xff]
    %v1985 = vld [vmem:[%s71 + $0x70] sm:$0xff]
    %v1986 = vld [vmem:[%s71 + $0x78] sm:$0xff]
    %v1987 = vld [vmem:[#allocation15] sm:$0x1]
    %v1989 = vsel %vm334, %v1965, 0
    %1991 = vmatprep.subr.mxu0 0.0
    %1992 = vmatpush1.msra.mxu0 %v1966
    %1993 = vmatprep.subr.mxu0 0.0
    %1994 = vmatpush1.msra.mxu0 %v1967
    %1995 = vmatprep.subr.mxu0 0.0
    %1996 = vmatpush1.msra.mxu0 %v1968
    %1997 = vmatprep.subr.mxu0 0.0
    %1998 = vmatpush1.msra.mxu0 %v1969
    %1999 = vmatprep.subr.mxu0 0.0
    %2000 = vmatpush1.msra.mxu0 0.0
    %2001 = vmatprep.subr.mxu0 0.0
    %2002 = vmatpush1.msra.mxu0 0.0
    %2003 = vmatprep.subr.mxu0 0.0
    %2004 = vmatpush1.msra.mxu0 0.0
    %2005 = vmatprep.subr.mxu0 0.0
    %2006 = vmatpush1.msra.mxu0 0.0
    %2007 = vmatprep.subr.mxu0 0.0
    %2008 = vmatpush1.msra.mxu0 0.0
    %2009 = vmatprep.subr.mxu0 0.0
    %2010 = vmatpush1.msra.mxu0 0.0
    %2011 = vmatprep.subr.mxu0 0.0
    %2012 = vmatpush1.msra.mxu0 0.0
    %2013 = vmatprep.subr.mxu0 0.0
    %2014 = vmatpush1.msra.mxu0 0.0
    %2015 = vmatprep.subr.mxu0 0.0
    %2016 = vmatpush1.msra.mxu0 0.0
    %2017 = vmatprep.subr.mxu0 0.0
    %2018 = vmatpush1.msra.mxu0 0.0
    %2019 = vmatprep.subr.mxu0 0.0
    %2020 = vmatpush1.msra.mxu0 0.0
    %2021 = vmatprep.subr.mxu0 0.0
    %2022 = vmatpush1.msra.mxu0 0.0
    %2023 = vmatprep.subr.mxu0 0.0
    %2024 = vmatpush1.msra.mxu0 0.0
    %2025 = vmatprep.subr.mxu0 0.0
    %2026 = vmatpush1.msra.mxu0 0.0
    %2027 = vmatprep.subr.mxu0 0.0
    %2028 = vmatpush1.msra.mxu0 0.0
    %2029 = vmatprep.subr.mxu0 0.0
    %2030 = vmatpush1.msra.mxu0 0.0
    %2031 = vmatprep.subr.mxu0 0.0
    %2032 = vmatpush1.msra.mxu0 0.0
    %2033 = vmatprep.subr.mxu0 0.0
    %2034 = vmatpush1.msra.mxu0 0.0
    %2035 = vmatprep.subr.mxu0 0.0
    %2036 = vmatpush1.msra.mxu0 0.0
    %2037 = vmatprep.subr.mxu0 0.0
    %2038 = vmatpush1.msra.mxu0 0.0
    %2039 = vmatprep.subr.mxu0 0.0
    %2040 = vmatpush1.msra.mxu0 0.0
    %2041 = vmatprep.subr.mxu0 0.0
    %2042 = vmatpush1.msra.mxu0 0.0
    %2043 = vmatprep.subr.mxu0 0.0
    %2044 = vmatpush1.msra.mxu0 0.0
    %2045 = vmatprep.subr.mxu0 0.0
    %2046 = vmatpush1.msra.mxu0 0.0
    %2047 = vmatprep.subr.mxu0 0.0
    %2048 = vmatpush1.msra.mxu0 0.0
    %2049 = vmatprep.subr.mxu0 0.0
    %2050 = vmatpush1.msra.mxu0 0.0
    %2051 = vmatprep.subr.mxu0 0.0
    %2052 = vmatpush1.msra.mxu0 0.0
    %2053 = vmatprep.subr.mxu0 0.0
    %2054 = vmatpush1.msra.mxu0 0.0
    %2055 = vmatprep.mubr.f32.mxu0 0.0
    %2056 = vmatmul.mubr.f32.gmra.mrb[0].mxu0 %v1989
    %v2057 = vpop.f32.mrb[0].mxu0
    %v2058 = vadd.f32 %v1970, %v2057
    %v2059 = vpop.f32.mrb[0].mxu0
    %2060 = vdwg.mxu0
    %v2061 = vtanh.pop %v2058
    %2062 = vmatprep.subr.mxu0 0.0
    %2063 = vmatpush1.msra.mxu0 %v1971
    %2064 = vmatprep.subr.mxu0 0.0
    %2065 = vmatpush1.msra.mxu0 %v1972
    %2066 = vmatprep.subr.mxu0 0.0
    %2067 = vmatpush1.msra.mxu0 %v1973
    %2068 = vmatprep.subr.mxu0 0.0
    %2069 = vmatpush1.msra.mxu0 %v1974
    %2070 = vmatprep.subr.mxu0 0.0
    %2071 = vmatpush1.msra.mxu0 %v1975
    %2072 = vmatprep.subr.mxu0 0.0
    %2073 = vmatpush1.msra.mxu0 %v1976
    %2074 = vmatprep.subr.mxu0 0.0
    %2075 = vmatpush1.msra.mxu0 %v1977
    %2076 = vmatprep.subr.mxu0 0.0
    %2077 = vmatpush1.msra.mxu0 %v1978
    %2078 = vmatprep.subr.mxu0 0.0
    %2079 = vmatpush1.msra.mxu0 %v1979
    %2080 = vmatprep.subr.mxu0 0.0
    %2081 = vmatpush1.msra.mxu0 %v1980
    %2082 = vmatprep.subr.mxu0 0.0
    %2083 = vmatpush1.msra.mxu0 %v1981
    %2084 = vmatprep.subr.mxu0 0.0
    %2085 = vmatpush1.msra.mxu0 %v1982
    %2086 = vmatprep.subr.mxu0 0.0
    %2087 = vmatpush1.msra.mxu0 %v1983
    %2088 = vmatprep.subr.mxu0 0.0
    %2089 = vmatpush1.msra.mxu0 %v1984
    %2090 = vmatprep.subr.mxu0 0.0
    %2091 = vmatpush1.msra.mxu0 %v1985
    %2092 = vmatprep.subr.mxu0 0.0
    %2093 = vmatpush1.msra.mxu0 %v1986
    %2094 = vmatprep.subr.mxu0 0.0
    %2095 = vmatpush1.msra.mxu0 0.0
    %2096 = vmatprep.subr.mxu0 0.0
    %2097 = vmatpush1.msra.mxu0 0.0
    %2098 = vmatprep.subr.mxu0 0.0
    %2099 = vmatpush1.msra.mxu0 0.0
    %2100 = vmatprep.subr.mxu0 0.0
    %2101 = vmatpush1.msra.mxu0 0.0
    %2102 = vmatprep.subr.mxu0 0.0
    %2103 = vmatpush1.msra.mxu0 0.0
    %2104 = vmatprep.subr.mxu0 0.0
    %2105 = vmatpush1.msra.mxu0 0.0
    %2106 = vmatprep.subr.mxu0 0.0
    %2107 = vmatpush1.msra.mxu0 0.0
    %2108 = vmatprep.subr.mxu0 0.0
    %2109 = vmatpush1.msra.mxu0 0.0
    %2110 = vmatprep.subr.mxu0 0.0
    %2111 = vmatpush1.msra.mxu0 0.0
    %2112 = vmatprep.subr.mxu0 0.0
    %2113 = vmatpush1.msra.mxu0 0.0
    %2114 = vmatprep.subr.mxu0 0.0
    %2115 = vmatpush1.msra.mxu0 0.0
    %2116 = vmatprep.subr.mxu0 0.0
    %2117 = vmatpush1.msra.mxu0 0.0
    %2118 = vmatprep.subr.mxu0 0.0
    %2119 = vmatpush1.msra.mxu0 0.0
    %2120 = vmatprep.subr.mxu0 0.0
    %2121 = vmatpush1.msra.mxu0 0.0
    %2122 = vmatprep.subr.mxu0 0.0
    %2123 = vmatpush1.msra.mxu0 0.0
    %2124 = vmatprep.subr.mxu0 0.0
    %2125 = vmatpush1.msra.mxu0 0.0
    %2126 = vmatprep.mubr.f32.mxu0 0.0
    %2127 = vmatmul.mubr.f32.gmra.mrb[0].mxu0 %v2061
    %v2128 = vpop.f32.mrb[0].mxu0
    %v2129 = vadd.f32 %v1987, %v2128
    %v2130 = vpop.f32.mrb[0].mxu0
    %2131 = vdwg.mxu0
    %v2132 = vld [vmem:[#allocation16] sm:$0x1]
    %v2133 = vld [vmem:[#allocation18] sm:$0x1]
    %vm2134 = vcmask 253952
    %v2135 = vsel %vm2134, %v2129, 0.0
    %2136 = vadd.xlane.f32.xlu0 %v2135
    %v2137 = vpop.xlane.xlu0 %2136
    %v2138 = vmul.f32 %v2137, %v1226
    %v2139 = vsub.f32 %v2129, %v2138
    %v2140 = vmul.f32 %v2139, %v2139
    %v2141 = vsel %vm2134, %v2140, 0.0
    %2142 = vadd.xlane.f32.xlu0 %v2141
    %v2143 = vpop.xlane.xlu0 %2142
    %v2144 = vmul.f32 %v2143, %v1226
    %v2145 = vadd.f32 %v2144, 1e-05
    %v2146 = vrsqrt.pop %v2145
    %v2147 = vmul.f32 %v2139, %v2146
    %v2148 = vmul.f32 %v2147, %v2132
    %v2149 = vadd.f32 %v2148, %v2133
    %v2150 = vld [vmem:[%s79] sm:$0xff]
    %v2151 = vld [vmem:[%s79 + $0x8] sm:$0xff]
    %v2152 = vld [vmem:[%s79 + $0x10] sm:$0xff]
    %v2153 = vld [vmem:[%s79 + $0x18] sm:$0xff]
    %v2154 = vld [vmem:[%s81] sm:$0x1]
    %v2155 = vld [vmem:[%s83] sm:$0xff]
    %v2156 = vld [vmem:[%s83 + $0x8] sm:$0xff]
    %v2157 = vld [vmem:[%s83 + $0x10] sm:$0xff]
    %v2158 = vld [vmem:[%s83 + $0x18] sm:$0xff]
    %v2159 = vld [vmem:[%s83 + $0x20] sm:$0xff]
    %v2160 = vld [vmem:[%s83 + $0x28] sm:$0xff]
    %v2161 = vld [vmem:[%s83 + $0x30] sm:$0xff]
    %v2162 = vld [vmem:[%s83 + $0x38] sm:$0xff]
    %v2163 = vld [vmem:[%s83 + $0x40] sm:$0xff]
    %v2164 = vld [vmem:[%s83 + $0x48] sm:$0xff]
    %v2165 = vld [vmem:[%s83 + $0x50] sm:$0xff]
    %v2166 = vld [vmem:[%s83 + $0x58] sm:$0xff]
    %v2167 = vld [vmem:[%s83 + $0x60] sm:$0xff]
    %v2168 = vld [vmem:[%s83 + $0x68] sm:$0xff]
    %v2169 = vld [vmem:[%s83 + $0x70] sm:$0xff]
    %v2170 = vld [vmem:[%s83 + $0x78] sm:$0xff]
    %v2171 = vld [vmem:[%s85] sm:$0x1]
    %v2173 = vsel %vm334, %v2149, 0
    %2175 = vmatprep.subr.mxu0 0.0
    %2176 = vmatpush1.msra.mxu0 %v2150
    %2177 = vmatprep.subr.mxu0 0.0
    %2178 = vmatpush1.msra.mxu0 %v2151
    %2179 = vmatprep.subr.mxu0 0.0
    %2180 = vmatpush1.msra.mxu0 %v2152
    %2181 = vmatprep.subr.mxu0 0.0
    %2182 = vmatpush1.msra.mxu0 %v2153
    %2183 = vmatprep.subr.mxu0 0.0
    %2184 = vmatpush1.msra.mxu0 0.0
    %2185 = vmatprep.subr.mxu0 0.0
    %2186 = vmatpush1.msra.mxu0 0.0
    %2187 = vmatprep.subr.mxu0 0.0
    %2188 = vmatpush1.msra.mxu0 0.0
    %2189 = vmatprep.subr.mxu0 0.0
    %2190 = vmatpush1.msra.mxu0 0.0
    %2191 = vmatprep.subr.mxu0 0.0
    %2192 = vmatpush1.msra.mxu0 0.0
    %2193 = vmatprep.subr.mxu0 0.0
    %2194 = vmatpush1.msra.mxu0 0.0
    %2195 = vmatprep.subr.mxu0 0.0
    %2196 = vmatpush1.msra.mxu0 0.0
    %2197 = vmatprep.subr.mxu0 0.0
    %2198 = vmatpush1.msra.mxu0 0.0
    %2199 = vmatprep.subr.mxu0 0.0
    %2200 = vmatpush1.msra.mxu0 0.0
    %2201 = vmatprep.subr.mxu0 0.0
    %2202 = vmatpush1.msra.mxu0 0.0
    %2203 = vmatprep.subr.mxu0 0.0
    %2204 = vmatpush1.msra.mxu0 0.0
    %2205 = vmatprep.subr.mxu0 0.0
    %2206 = vmatpush1.msra.mxu0 0.0
    %2207 = vmatprep.subr.mxu0 0.0
    %2208 = vmatpush1.msra.mxu0 0.0
    %2209 = vmatprep.subr.mxu0 0.0
    %2210 = vmatpush1.msra.mxu0 0.0
    %2211 = vmatprep.subr.mxu0 0.0
    %2212 = vmatpush1.msra.mxu0 0.0
    %2213 = vmatprep.subr.mxu0 0.0
    %2214 = vmatpush1.msra.mxu0 0.0
    %2215 = vmatprep.subr.mxu0 0.0
    %2216 = vmatpush1.msra.mxu0 0.0
    %2217 = vmatprep.subr.mxu0 0.0
    %2218 = vmatpush1.msra.mxu0 0.0
    %2219 = vmatprep.subr.mxu0 0.0
    %2220 = vmatpush1.msra.mxu0 0.0
    %2221 = vmatprep.subr.mxu0 0.0
    %2222 = vmatpush1.msra.mxu0 0.0
    %2223 = vmatprep.subr.mxu0 0.0
    %2224 = vmatpush1.msra.mxu0 0.0
    %2225 = vmatprep.subr.mxu0 0.0
    %2226 = vmatpush1.msra.mxu0 0.0
    %2227 = vmatprep.subr.mxu0 0.0
    %2228 = vmatpush1.msra.mxu0 0.0
    %2229 = vmatprep.subr.mxu0 0.0
    %2230 = vmatpush1.msra.mxu0 0.0
    %2231 = vmatprep.subr.mxu0 0.0
    %2232 = vmatpush1.msra.mxu0 0.0
    %2233 = vmatprep.subr.mxu0 0.0
    %2234 = vmatpush1.msra.mxu0 0.0
    %2235 = vmatprep.subr.mxu0 0.0
    %2236 = vmatpush1.msra.mxu0 0.0
    %2237 = vmatprep.subr.mxu0 0.0
    %2238 = vmatpush1.msra.mxu0 0.0
    %2239 = vmatprep.mubr.f32.mxu0 0.0
    %2240 = vmatmul.mubr.f32.gmra.mrb[0].mxu0 %v2173
    %v2241 = vpop.f32.mrb[0].mxu0
    %v2242 = vadd.f32 %v2154, %v2241
    %v2243 = vpop.f32.mrb[0].mxu0
    %2244 = vdwg.mxu0
    %v2245 = vmax.f32 %v2242, 0.0
    %2246 = vmatprep.subr.mxu0 0.0
    %2247 = vmatpush1.msra.mxu0 %v2155
    %2248 = vmatprep.subr.mxu0 0.0
    %2249 = vmatpush1.msra.mxu0 %v2156
    %2250 = vmatprep.subr.mxu0 0.0
    %2251 = vmatpush1.msra.mxu0 %v2157
    %2252 = vmatprep.subr.mxu0 0.0
    %2253 = vmatpush1.msra.mxu0 %v2158
    %2254 = vmatprep.subr.mxu0 0.0
    %2255 = vmatpush1.msra.mxu0 %v2159
    %2256 = vmatprep.subr.mxu0 0.0
    %2257 = vmatpush1.msra.mxu0 %v2160
    %2258 = vmatprep.subr.mxu0 0.0
    %2259 = vmatpush1.msra.mxu0 %v2161
    %2260 = vmatprep.subr.mxu0 0.0
    %2261 = vmatpush1.msra.mxu0 %v2162
    %2262 = vmatprep.subr.mxu0 0.0
    %2263 = vmatpush1.msra.mxu0 %v2163
    %2264 = vmatprep.subr.mxu0 0.0
    %2265 = vmatpush1.msra.mxu0 %v2164
    %2266 = vmatprep.subr.mxu0 0.0
    %2267 = vmatpush1.msra.mxu0 %v2165
    %2268 = vmatprep.subr.mxu0 0.0
    %2269 = vmatpush1.msra.mxu0 %v2166
    %2270 = vmatprep.subr.mxu0 0.0
    %2271 = vmatpush1.msra.mxu0 %v2167
    %2272 = vmatprep.subr.mxu0 0.0
    %2273 = vmatpush1.msra.mxu0 %v2168
    %2274 = vmatprep.subr.mxu0 0.0
    %2275 = vmatpush1.msra.mxu0 %v2169
    %2276 = vmatprep.subr.mxu0 0.0
    %2277 = vmatpush1.msra.mxu0 %v2170
    %2278 = vmatprep.subr.mxu0 0.0
    %2279 = vmatpush1.msra.mxu0 0.0
    %2280 = vmatprep.subr.mxu0 0.0
    %2281 = vmatpush1.msra.mxu0 0.0
    %2282 = vmatprep.subr.mxu0 0.0
    %2283 = vmatpush1.msra.mxu0 0.0
    %2284 = vmatprep.subr.mxu0 0.0
    %2285 = vmatpush1.msra.mxu0 0.0
    %2286 = vmatprep.subr.mxu0 0.0
    %2287 = vmatpush1.msra.mxu0 0.0
    %2288 = vmatprep.subr.mxu0 0.0
    %2289 = vmatpush1.msra.mxu0 0.0
    %2290 = vmatprep.subr.mxu0 0.0
    %2291 = vmatpush1.msra.mxu0 0.0
    %2292 = vmatprep.subr.mxu0 0.0
    %2293 = vmatpush1.msra.mxu0 0.0
    %2294 = vmatprep.subr.mxu0 0.0
    %2295 = vmatpush1.msra.mxu0 0.0
    %2296 = vmatprep.subr.mxu0 0.0
    %2297 = vmatpush1.msra.mxu0 0.0
    %2298 = vmatprep.subr.mxu0 0.0
    %2299 = vmatpush1.msra.mxu0 0.0
    %2300 = vmatprep.subr.mxu0 0.0
    %2301 = vmatpush1.msra.mxu0 0.0
    %2302 = vmatprep.subr.mxu0 0.0
    %2303 = vmatpush1.msra.mxu0 0.0
    %2304 = vmatprep.subr.mxu0 0.0
    %2305 = vmatpush1.msra.mxu0 0.0
    %2306 = vmatprep.subr.mxu0 0.0
    %2307 = vmatpush1.msra.mxu0 0.0
    %2308 = vmatprep.subr.mxu0 0.0
    %2309 = vmatpush1.msra.mxu0 0.0
    %2310 = vmatprep.mubr.f32.mxu0 0.0
    %2311 = vmatmul.mubr.f32.gmra.mrb[0].mxu0 %v2245
    %v2312 = vpop.f32.mrb[0].mxu0
    %v2313 = vadd.f32 %v2171, %v2312
    %v2314 = vpop.f32.mrb[0].mxu0
    %2315 = vdwg.mxu0
    %v2316 = vlaneseq
    %v2317 = vand.u32 %v2316, 127
    %vm2318 = vcmp.lt.s32.totalorder %v2317, 2
    %v2319 = vsel %vm2318, %v2313, -1e+30
    %vm2320 = vcmask 1040384
    %v2321 = vsel %vm2320, %v2319, -inf
    %2322 = vmax.xlane.f32.xlu0 %v2321
    %v2323 = vpop.xlane.xlu0 %2322
    %v2324 = vsub.f32 %v2319, %v2323
    %v2325 = vmul.f32 %v2324, 1.442695
    %v2326 = vpow.pop %v2325
    %v2327 = vsel %vm2318, %v2326, 0.0
    %v2328 = vsel %vm2320, %v2327, 0.0
    %2329 = vadd.xlane.f32.xlu0 %v2328
    %v2330 = vpop.xlane.xlu0 %2329
    %v2331 = vrcp.pop %v2330
    %v2332 = vmul.f32 %v2327, %v2331
    %2333 = vst [vmem:[%s87] sm:$0x1] %v2332
    // Predicated region
    $region218: #{fno_forward.1} parent=1 // pred_check
      _
    $region219: #{fno_forward.1} parent=1 // pred_check_branch
      %2335 = sbr.rel (0) target = $region221
    $region220: #{fno_forward.1} parent=1 // pred_region
      _
    $region221: #{fno_forward.1} parent=1 // pred_fallthru
      _
    // Predicated region
    $region222: #{fno_forward.1} parent=1 // pred_check
      _
    $region223: #{fno_forward.1} parent=1 // pred_check_branch
      %2337 = sbr.rel (0) target = $region225
    $region224: #{fno_forward.1} parent=1 // pred_region
      _
    $region225: #{fno_forward.1} parent=1 // pred_fallthru
      _
    %2338 = vsyncpa [#allocation3], 1
    %2339 = vsyncpa [#allocation5], 1
    %2340 = vsyncpa [#allocation8], 1
    %2341 = vsyncpa [#allocation11], 1
    %2342 = vsyncpa [#allocation14], 1
    %2343 = vsyncpa [#allocation17], 1

</llo_original>
